<compile_context>
chip_gen: v7x
topology: tpu7x:2x2x1
jax: 0.10.0
libtpu: 0.0.40
codegen_flags: <defaults>
</compile_context>

<pallas_src>
import functools

import jax
import jax.numpy as jnp
from jax.experimental import pallas as pl
from jax.experimental.pallas import tpu as pltpu

# Set to jnp.bfloat16 on v6e/v7x for ~2x MXU throughput (accumulation stays f32).
# Kept f32 by default to preserve exact parity with the f32 PyTorch module.
MXU_DTYPE = jnp.float32


def _round_up(x, m):
    return (x + m - 1) // m * m


# ----------------------------------------------------------------------------
# Pallas kernels
# ----------------------------------------------------------------------------
def _linear_kernel(x_ref, wT_ref, b_ref, o_ref):
    # y = x @ W^T + b ; W^T is pre-transposed on the host (no in-kernel .T).
    o_ref[...] = (
        jnp.dot(x_ref[...].astype(MXU_DTYPE), wT_ref[...].astype(MXU_DTYPE),
                preferred_element_type=jnp.float32)
        + b_ref[...]
    ).astype(o_ref.dtype)


def _lstm_recurrent_kernel(gx_ref, whhT_ref, h0_ref, c0_ref,
                           out_ref, hT_ref, cT_ref, h_scr, c_scr,
                           *, seq_len, tt):
    """Grid: (batch blocks [parallel], time blocks [arbitrary]).

    gx_ref holds the precomputed input projection (x@W_ih^T + b_ih + b_hh) for
    TT timesteps; only the recurrent matmul h @ W_hh^T runs per step.
    """
    tblk = pl.program_id(1)

    @pl.when(tblk == 0)
    def _():
        h_scr[...] = h0_ref[...]
        c_scr[...] = c0_ref[...]

    whhT = whhT_ref[...].astype(MXU_DTYPE)      # (Hp, 4Hp), pre-transposed
    Hp = whhT_ref.shape[0]

    def step(i, carry):
        h, c = carry
        gates = gx_ref[i] + jnp.dot(h.astype(MXU_DTYPE), whhT,
                                    preferred_element_type=jnp.float32)
        # Hp is a multiple of 128 -> each gate slice is lane-aligned.
        i_g = jax.nn.sigmoid(gates[:, 0 * Hp:1 * Hp])
        f_g = jax.nn.sigmoid(gates[:, 1 * Hp:2 * Hp])
        g_g = jnp.tanh(gates[:, 2 * Hp:3 * Hp])
        o_g = jax.nn.sigmoid(gates[:, 3 * Hp:4 * Hp])
        c_new = f_g * c + i_g * g_g
        h_new = o_g * jnp.tanh(c_new)
        # Mask timesteps beyond the real sequence length (time padding).
        valid = (tblk * tt + i) < seq_len
        h_new = jnp.where(valid, h_new, h)
        c_new = jnp.where(valid, c_new, c)
        out_ref[i] = h_new.astype(out_ref.dtype)
        return h_new, c_new

    h, c = jax.lax.fori_loop(0, tt, step, (h_scr[...], c_scr[...]), unroll=True)
    h_scr[...] = h
    c_scr[...] = c

    @pl.when(tblk == pl.num_programs(1) - 1)
    def _():
        hT_ref[...] = h
        cT_ref[...] = c


# ----------------------------------------------------------------------------
# pallas_call wrappers
# ----------------------------------------------------------------------------
def linear_pallas(x2d, wT, b, *, tm=256):
    """x2d: (N, d_in), wT: (d_in, d_out) pre-transposed, b: (d_out,) -> (N, d_out)."""
    n, d_in = x2d.shape
    d_out = wT.shape[1]
    n_pad = _round_up(n, 8)
    tm = min(tm, n_pad)
    n_pad = _round_up(n_pad, tm)
    if n_pad != n:
        x2d = jnp.pad(x2d, ((0, n_pad - n), (0, 0)))
    b2d = b.reshape(1, d_out)

    out = pl.pallas_call(
        _linear_kernel,
        out_shape=jax.ShapeDtypeStruct((n_pad, d_out), jnp.float32),
        grid_spec=pltpu.PrefetchScalarGridSpec(
            num_scalar_prefetch=0,
            grid=(n_pad // tm,),
            in_specs=[
                pl.BlockSpec((tm, d_in), lambda i: (i, 0)),
                pl.BlockSpec((d_in, d_out), lambda i: (0, 0)),
                pl.BlockSpec((1, d_out), lambda i: (0, 0)),
            ],
            out_specs=pl.BlockSpec((tm, d_out), lambda i: (i, 0)),
        ),
        compiler_params=pltpu.CompilerParams(
            dimension_semantics=("parallel",)),
    )(x2d, wT, b2d)
    return out[:n] if n_pad != n else out


def lstm_recurrent_pallas(gates_x, whhT, h0, c0, *, seq_len, tt):
    """gates_x: (Tp, Bp, 4Hp) precomputed input projection (+bias);
    whhT: (Hp, 4Hp); h0/c0: (Bp, Hp). Returns (out (Tp,Bp,Hp), hT, cT)."""
    Tp, Bp, G = gates_x.shape
    Hp = whhT.shape[0]
    assert G == 4 * Hp and Tp % tt == 0

    # Two batch blocks when possible -> v7x megacore can split the parallel axis.
    tb = Bp // 2 if (Bp % 16 == 0) else Bp
    grid = (Bp // tb, Tp // tt)

    kernel = functools.partial(_lstm_recurrent_kernel, seq_len=seq_len, tt=tt)
    out_shapes = (
        jax.ShapeDtypeStruct((Tp, Bp, Hp), gates_x.dtype),
        jax.ShapeDtypeStruct((Bp, Hp), jnp.float32),
        jax.ShapeDtypeStruct((Bp, Hp), jnp.float32),
    )
    return pl.pallas_call(
        kernel,
        out_shape=out_shapes,
        grid_spec=pltpu.PrefetchScalarGridSpec(
            num_scalar_prefetch=0,
            grid=grid,
            in_specs=[
                pl.BlockSpec((tt, tb, 4 * Hp), lambda b, t: (t, b, 0)),
                pl.BlockSpec((Hp, 4 * Hp), lambda b, t: (0, 0)),
                pl.BlockSpec((tb, Hp), lambda b, t: (b, 0)),
                pl.BlockSpec((tb, Hp), lambda b, t: (b, 0)),
            ],
            out_specs=[
                pl.BlockSpec((tt, tb, Hp), lambda b, t: (t, b, 0)),
                pl.BlockSpec((tb, Hp), lambda b, t: (b, 0)),
                pl.BlockSpec((tb, Hp), lambda b, t: (b, 0)),
            ],
            scratch_shapes=[
                pltpu.VMEM((tb, Hp), jnp.float32),
                pltpu.VMEM((tb, Hp), jnp.float32),
            ],
        ),
        compiler_params=pltpu.CompilerParams(
            dimension_semantics=("parallel", "arbitrary"),
            vmem_limit_bytes=48 * 1024 * 1024,   # fits v7x's 64 MiB physical VMEM
        ),
    )(gates_x, whhT, h0, c0)


# ----------------------------------------------------------------------------
# RNNBase parameters (PyTorch convention) + prep (pad/transpose for TPU)
# ----------------------------------------------------------------------------
def _orthogonal(key, shape):
    """torch.nn.init.orthogonal_ equivalent (gain=1) for tall matrices."""
    a = jax.random.normal(key, shape, dtype=jnp.float32)
    q, r = jnp.linalg.qr(a)
    d = jnp.sign(jnp.diagonal(r))
    return q * d[None, :]


def init_rnn_base_params(key, d_data, d_emb, d_rnn, n_layer):
    keys = jax.random.split(key, 2 + 5 * n_layer)
    bound_emb = 1.0 / jnp.sqrt(d_data)
    params = {
        "emb_w": jax.random.uniform(keys[0], (d_emb, d_data), jnp.float32,
                                    -bound_emb, bound_emb),
        "emb_b": jax.random.uniform(keys[1], (d_emb,), jnp.float32,
                                    -bound_emb, bound_emb),
        "layers": [],
    }
    bound = 1.0 / jnp.sqrt(d_rnn)
    for l in range(n_layer):
        d_in = d_emb if l == 0 else d_rnn
        k = keys[2 + 5 * l: 2 + 5 * (l + 1)]
        layer = {
            "w_ih": jax.random.uniform(k[0], (4 * d_rnn, d_in), jnp.float32,
                                       -bound, bound),
            # weight_hh_l{i} orthogonally re-initialized, as RNNBase.__init__ does.
            "w_hh": _orthogonal(k[1], (4 * d_rnn, d_rnn)),
            "b_ih": jax.random.uniform(k[2], (4 * d_rnn,), jnp.float32,
                                       -bound, bound),
            "b_hh": jax.random.uniform(k[3], (4 * d_rnn,), jnp.float32,
                                       -bound, bound),
        }
        params["layers"].append(layer)
    return params


def prepare_params(params):
    """Pad feature dims to multiples of 128, combine biases, pre-transpose weights.

    Gate-wise zero padding keeps the padded hidden/cell units at exactly 0
    (sigmoid(0)*tanh(0) contributions vanish), so results match the unpadded math.
    """
    d_emb, d_data = params["emb_w"].shape
    H = params["layers"][0]["w_hh"].shape[1]
    Ep = _round_up(d_emb, 128)
    Hp = _round_up(H, 128)

    emb_wT = jnp.zeros((d_data, Ep), jnp.float32).at[:, :d_emb].set(params["emb_w"].T)
    emb_b = jnp.zeros((Ep,), jnp.float32).at[:d_emb].set(params["emb_b"])

    layers = []
    for l, layer in enumerate(params["layers"]):
        d_in = d_emb if l == 0 else H
        d_in_p = Ep if l == 0 else Hp
        w_ih = layer["w_ih"].reshape(4, H, d_in)
        w_hh = layer["w_hh"].reshape(4, H, H)
        b = (layer["b_ih"] + layer["b_hh"]).reshape(4, H)

        wih_p = jnp.zeros((4, Hp, d_in_p), jnp.float32).at[:, :H, :d_in].set(w_ih)
        whh_p = jnp.zeros((4, Hp, Hp), jnp.float32).at[:, :H, :H].set(w_hh)
        b_p = jnp.zeros((4, Hp), jnp.float32).at[:, :H].set(b)

        layers.append({
            "wihT": wih_p.reshape(4 * Hp, d_in_p).T,   # (d_in_p, 4Hp)
            "whhT": whh_p.reshape(4 * Hp, Hp).T,       # (Hp, 4Hp)
            "b": b_p.reshape(4 * Hp),
        })
    return {"emb_wT": emb_wT, "emb_b": emb_b, "layers": layers}


def init_hidden(n_layer, batch_size, d_rnn):
    h0 = jnp.zeros((n_layer, batch_size, d_rnn), jnp.float32)
    c0 = jnp.zeros((n_layer, batch_size, d_rnn), jnp.float32)
    return (h0, c0)


# ----------------------------------------------------------------------------
# Forward (dropout p=0.0 -> identity)
# ----------------------------------------------------------------------------
@jax.jit
def rnn_base_forward(prep, x, hidden):
    """x: (T, B, d_data) -> (out (T, B, d_rnn), (hT, cT) each (n_layer, B, d_rnn))."""
    T, B, d_data = x.shape
    h0_all, c0_all = hidden
    n_layer, _, H = h0_all.shape
    Ep = prep["emb_wT"].shape[1]
    Hp = prep["layers"][0]["whhT"].shape[0]

    Bp = _round_up(B, 8)
    TT = min(16, T)                  # timesteps per grid step
    Tp = _round_up(T, TT)

    xp = jnp.zeros((Tp, Bp, d_data), x.dtype).at[:T, :B].set(x)
    h0p = jnp.zeros((n_layer, Bp, Hp), jnp.float32).at[:, :B, :H].set(h0_all)
    c0p = jnp.zeros((n_layer, Bp, Hp), jnp.float32).at[:, :B, :H].set(c0_all)

    # inp_emb: Linear + Dropout(p=0.0) -> identity
    # TODO(synk): dropout omitted (p=0.0 / eval mode) -> identity.
    emb = linear_pallas(xp.reshape(Tp * Bp, d_data), prep["emb_wT"], prep["emb_b"])
    seq = emb.reshape(Tp, Bp, Ep)

    h_finals, c_finals = [], []
    for l, layer in enumerate(prep["layers"]):
        d_in_p = seq.shape[-1]
        # Hoisted input projection: one large GEMM over all timesteps
        # (combined bias b_ih + b_hh folded in).
        gx = linear_pallas(seq.reshape(Tp * Bp, d_in_p), layer["wihT"], layer["b"])
        gx = gx.reshape(Tp, Bp, 4 * Hp)
        seq, hT, cT = lstm_recurrent_pallas(gx, layer["whhT"], h0p[l], c0p[l],
                                            seq_len=T, tt=TT)
        h_finals.append(hT)
        c_finals.append(cT)
        # inter-layer dropout (p=0.0) -> identity

    out = seq[:T, :B, :H]            # self.drop(out) with p=0.0 -> identity
    hT = jnp.stack(h_finals, 0)[:, :B, :H]
    cT = jnp.stack(c_finals, 0)[:, :B, :H]
    return out, (hT, cT)


# ----------------------------------------------------------------------------
if __name__ == "__main__":
    d_data, d_emb, d_rnn, n_layer = 16, 32, 32, 2
    T, B = 8, 2

    key = jax.random.PRNGKey(0)
    kp, kx = jax.random.split(key)
    params = init_rnn_base_params(kp, d_data, d_emb, d_rnn, n_layer)
    prep = prepare_params(params)

    x = jax.random.normal(kx, (T, B, d_data), dtype=jnp.float32)
    hidden = init_hidden(n_layer, B, d_rnn)

    out, (hT, cT) = rnn_base_forward(prep, x, hidden)
    jax.block_until_ready((out, hT, cT))

    assert out.shape == (T, B, d_rnn)
    assert hT.shape == (n_layer, B, d_rnn) and cT.shape == (n_layer, B, d_rnn)
    assert bool(jnp.all(jnp.isfinite(out)))
    print("KERNEL_OK")
</pallas_src>

<mosaic_0001>
module attributes {stable_mosaic.version = 11 : i64} {
  func.func @_linear_kernel(%arg0: i32, %arg1: memref<64x16xf32, #tpu.memory_space<vmem>>, %arg2: memref<16x128xf32, #tpu.memory_space<vmem>>, %arg3: memref<1x128xf32, #tpu.memory_space<vmem>>, %arg4: memref<64x128xf32, #tpu.memory_space<vmem>>) attributes {dimension_semantics = [#tpu.dimension_semantics<parallel>], iteration_bounds = array<i64: 1>, scalar_prefetch = 0 : i64, scratch_operands = 0 : i64, tpu.core_type = #tpu.core_type<tc>, window_params = [{transform_indices = @transform_0, window_bounds = array<i64: 64, 16>}, {pipeline_mode = #tpu.pipeline_mode<synchronous>, transform_indices = @transform_1, window_bounds = array<i64: 16, 128>}, {pipeline_mode = #tpu.pipeline_mode<synchronous>, transform_indices = @transform_2, window_bounds = array<i64: 1, 128>}, {transform_indices = @transform_3, window_bounds = array<i64: 64, 128>}]} {
    %c0 = arith.constant 0 : index
    %c0_0 = arith.constant 0 : index
    %0 = vector.load %arg1[%c0, %c0_0] : memref<64x16xf32, #tpu.memory_space<vmem>>, vector<64x16xf32>
    %c0_1 = arith.constant 0 : index
    %c0_2 = arith.constant 0 : index
    %1 = vector.load %arg2[%c0_1, %c0_2] : memref<16x128xf32, #tpu.memory_space<vmem>>, vector<16x128xf32>
    %cst = arith.constant dense<0.000000e+00> : vector<64x128xf32>
    %2 = tpu.matmul %0, %1, %cst {dimension_numbers = #tpu.dot_dimension_numbers<[1], [0], [0], [1], [0, 0, 1, 1], [], []>} : vector<64x16xf32>, vector<16x128xf32>, vector<64x128xf32> -> vector<64x128xf32>
    %c0_3 = arith.constant 0 : index
    %c0_4 = arith.constant 0 : index
    %3 = vector.load %arg3[%c0_3, %c0_4] : memref<1x128xf32, #tpu.memory_space<vmem>>, vector<1x128xf32>
    %4 = vector.broadcast %3 : vector<1x128xf32> to vector<64x128xf32>
    %5 = arith.addf %2, %4 : vector<64x128xf32>
    %c0_5 = arith.constant 0 : index
    %c0_6 = arith.constant 0 : index
    %6 = vector.load %arg4[%c0_5, %c0_6] : memref<64x128xf32, #tpu.memory_space<vmem>>, vector<64x128xf32>
    tpu.vector_store %arg4[%c0_5, %c0_6], %5 {strides = array<i32>} : memref<64x128xf32, #tpu.memory_space<vmem>>, vector<64x128xf32>,
    return
  }
  func.func @transform_0(%arg0: i32) -> (i32, i32) {
    %c0_i32 = arith.constant 0 : i32
    %c0_i32_0 = arith.constant 0 : i32
    return %arg0, %c0_i32 : i32, i32
  }
  func.func @transform_1(%arg0: i32) -> (i32, i32) {
    %c0_i32 = arith.constant 0 : i32
    %c0_i32_0 = arith.constant 0 : i32
    %c0_i32_1 = arith.constant 0 : i32
    return %c0_i32, %c0_i32_0 : i32, i32
  }
  func.func @transform_2(%arg0: i32) -> (i32, i32) {
    %c0_i32 = arith.constant 0 : i32
    %c0_i32_0 = arith.constant 0 : i32
    %c0_i32_1 = arith.constant 0 : i32
    return %c0_i32, %c0_i32_0 : i32, i32
  }
  func.func @transform_3(%arg0: i32) -> (i32, i32) {
    %c0_i32 = arith.constant 0 : i32
    %c0_i32_0 = arith.constant 0 : i32
    return %arg0, %c0_i32 : i32, i32
  }
}

module attributes {stable_mosaic.version = 11 : i64} {
  func.func @_linear_kernel(%arg0: i32, %arg1: memref<64x128xf32, #tpu.memory_space<vmem>>, %arg2: memref<128x512xf32, #tpu.memory_space<vmem>>, %arg3: memref<1x512xf32, #tpu.memory_space<vmem>>, %arg4: memref<64x512xf32, #tpu.memory_space<vmem>>) attributes {dimension_semantics = [#tpu.dimension_semantics<parallel>], iteration_bounds = array<i64: 1>, scalar_prefetch = 0 : i64, scratch_operands = 0 : i64, tpu.core_type = #tpu.core_type<tc>, window_params = [{transform_indices = @transform_0, window_bounds = array<i64: 64, 128>}, {pipeline_mode = #tpu.pipeline_mode<synchronous>, transform_indices = @transform_1, window_bounds = array<i64: 128, 512>}, {pipeline_mode = #tpu.pipeline_mode<synchronous>, transform_indices = @transform_2, window_bounds = array<i64: 1, 512>}, {transform_indices = @transform_3, window_bounds = array<i64: 64, 512>}]} {
    %c0 = arith.constant 0 : index
    %c0_0 = arith.constant 0 : index
    %0 = vector.load %arg1[%c0, %c0_0] : memref<64x128xf32, #tpu.memory_space<vmem>>, vector<64x128xf32>
    %c0_1 = arith.constant 0 : index
    %c0_2 = arith.constant 0 : index
    %1 = vector.load %arg2[%c0_1, %c0_2] : memref<128x512xf32, #tpu.memory_space<vmem>>, vector<128x512xf32>
    %cst = arith.constant dense<0.000000e+00> : vector<64x512xf32>
    %2 = tpu.matmul %0, %1, %cst {dimension_numbers = #tpu.dot_dimension_numbers<[1], [0], [0], [1], [0, 0, 1, 1], [], []>} : vector<64x128xf32>, vector<128x512xf32>, vector<64x512xf32> -> vector<64x512xf32>
    %c0_3 = arith.constant 0 : index
    %c0_4 = arith.constant 0 : index
    %3 = vector.load %arg3[%c0_3, %c0_4] : memref<1x512xf32, #tpu.memory_space<vmem>>, vector<1x512xf32>
    %4 = vector.broadcast %3 : vector<1x512xf32> to vector<64x512xf32>
    %5 = arith.addf %2, %4 : vector<64x512xf32>
    %c0_5 = arith.constant 0 : index
    %c0_6 = arith.constant 0 : index
    %6 = vector.load %arg4[%c0_5, %c0_6] : memref<64x512xf32, #tpu.memory_space<vmem>>, vector<64x512xf32>
    tpu.vector_store %arg4[%c0_5, %c0_6], %5 {strides = array<i32>} : memref<64x512xf32, #tpu.memory_space<vmem>>, vector<64x512xf32>,
    return
  }
  func.func @transform_0(%arg0: i32) -> (i32, i32) {
    %c0_i32 = arith.constant 0 : i32
    %c0_i32_0 = arith.constant 0 : i32
    return %arg0, %c0_i32 : i32, i32
  }
  func.func @transform_1(%arg0: i32) -> (i32, i32) {
    %c0_i32 = arith.constant 0 : i32
    %c0_i32_0 = arith.constant 0 : i32
    %c0_i32_1 = arith.constant 0 : i32
    return %c0_i32, %c0_i32_0 : i32, i32
  }
  func.func @transform_2(%arg0: i32) -> (i32, i32) {
    %c0_i32 = arith.constant 0 : i32
    %c0_i32_0 = arith.constant 0 : i32
    %c0_i32_1 = arith.constant 0 : i32
    return %c0_i32, %c0_i32_0 : i32, i32
  }
  func.func @transform_3(%arg0: i32) -> (i32, i32) {
    %c0_i32 = arith.constant 0 : i32
    %c0_i32_0 = arith.constant 0 : i32
    return %arg0, %c0_i32 : i32, i32
  }
}

module attributes {stable_mosaic.version = 11 : i64} {
  func.func @_linear_kernel(%arg0: i32, %arg1: memref<64x128xf32, #tpu.memory_space<vmem>>, %arg2: memref<128x512xf32, #tpu.memory_space<vmem>>, %arg3: memref<1x512xf32, #tpu.memory_space<vmem>>, %arg4: memref<64x512xf32, #tpu.memory_space<vmem>>) attributes {dimension_semantics = [#tpu.dimension_semantics<parallel>], iteration_bounds = array<i64: 1>, scalar_prefetch = 0 : i64, scratch_operands = 0 : i64, tpu.core_type = #tpu.core_type<tc>, window_params = [{transform_indices = @transform_0, window_bounds = array<i64: 64, 128>}, {pipeline_mode = #tpu.pipeline_mode<synchronous>, transform_indices = @transform_1, window_bounds = array<i64: 128, 512>}, {pipeline_mode = #tpu.pipeline_mode<synchronous>, transform_indices = @transform_2, window_bounds = array<i64: 1, 512>}, {transform_indices = @transform_3, window_bounds = array<i64: 64, 512>}]} {
    %c0 = arith.constant 0 : index
    %c0_0 = arith.constant 0 : index
    %0 = vector.load %arg1[%c0, %c0_0] : memref<64x128xf32, #tpu.memory_space<vmem>>, vector<64x128xf32>
    %c0_1 = arith.constant 0 : index
    %c0_2 = arith.constant 0 : index
    %1 = vector.load %arg2[%c0_1, %c0_2] : memref<128x512xf32, #tpu.memory_space<vmem>>, vector<128x512xf32>
    %cst = arith.constant dense<0.000000e+00> : vector<64x512xf32>
    %2 = tpu.matmul %0, %1, %cst {dimension_numbers = #tpu.dot_dimension_numbers<[1], [0], [0], [1], [0, 0, 1, 1], [], []>} : vector<64x128xf32>, vector<128x512xf32>, vector<64x512xf32> -> vector<64x512xf32>
    %c0_3 = arith.constant 0 : index
    %c0_4 = arith.constant 0 : index
    %3 = vector.load %arg3[%c0_3, %c0_4] : memref<1x512xf32, #tpu.memory_space<vmem>>, vector<1x512xf32>
    %4 = vector.broadcast %3 : vector<1x512xf32> to vector<64x512xf32>
    %5 = arith.addf %2, %4 : vector<64x512xf32>
    %c0_5 = arith.constant 0 : index
    %c0_6 = arith.constant 0 : index
    %6 = vector.load %arg4[%c0_5, %c0_6] : memref<64x512xf32, #tpu.memory_space<vmem>>, vector<64x512xf32>
    tpu.vector_store %arg4[%c0_5, %c0_6], %5 {strides = array<i32>} : memref<64x512xf32, #tpu.memory_space<vmem>>, vector<64x512xf32>,
    return
  }
  func.func @transform_0(%arg0: i32) -> (i32, i32) {
    %c0_i32 = arith.constant 0 : i32
    %c0_i32_0 = arith.constant 0 : i32
    return %arg0, %c0_i32 : i32, i32
  }
  func.func @transform_1(%arg0: i32) -> (i32, i32) {
    %c0_i32 = arith.constant 0 : i32
    %c0_i32_0 = arith.constant 0 : i32
    %c0_i32_1 = arith.constant 0 : i32
    return %c0_i32, %c0_i32_0 : i32, i32
  }
  func.func @transform_2(%arg0: i32) -> (i32, i32) {
    %c0_i32 = arith.constant 0 : i32
    %c0_i32_0 = arith.constant 0 : i32
    %c0_i32_1 = arith.constant 0 : i32
    return %c0_i32, %c0_i32_0 : i32, i32
  }
  func.func @transform_3(%arg0: i32) -> (i32, i32) {
    %c0_i32 = arith.constant 0 : i32
    %c0_i32_0 = arith.constant 0 : i32
    return %arg0, %c0_i32 : i32, i32
  }
}

module attributes {stable_mosaic.version = 11 : i64} {
  func.func @_lstm_recurrent_kernel(%arg0: i32, %arg1: i32, %arg2: memref<8x8x512xf32, #tpu.memory_space<vmem>>, %arg3: memref<128x512xf32, #tpu.memory_space<vmem>>, %arg4: memref<8x128xf32, #tpu.memory_space<vmem>>, %arg5: memref<8x128xf32, #tpu.memory_space<vmem>>, %arg6: memref<8x8x128xf32, #tpu.memory_space<vmem>>, %arg7: memref<8x128xf32, #tpu.memory_space<vmem>>, %arg8: memref<8x128xf32, #tpu.memory_space<vmem>>, %arg9: memref<8x128xf32, #tpu.memory_space<vmem>>, %arg10: memref<8x128xf32, #tpu.memory_space<vmem>>) attributes {dimension_semantics = [#tpu.dimension_semantics<parallel>, #tpu.dimension_semantics<arbitrary>], iteration_bounds = array<i64: 1, 1>, scalar_prefetch = 0 : i64, scratch_operands = 2 : i64, tpu.core_type = #tpu.core_type<tc>, window_params = [{transform_indices = @transform_0, window_bounds = array<i64: 8, 8, 512>}, {pipeline_mode = #tpu.pipeline_mode<synchronous>, transform_indices = @transform_1, window_bounds = array<i64: 128, 512>}, {transform_indices = @transform_2, window_bounds = array<i64: 8, 128>}, {transform_indices = @transform_3, window_bounds = array<i64: 8, 128>}, {transform_indices = @transform_4, window_bounds = array<i64: 8, 8, 128>}, {transform_indices = @transform_5, window_bounds = array<i64: 8, 128>}, {transform_indices = @transform_6, window_bounds = array<i64: 8, 128>}]} {
    %c0_i32 = arith.constant 0 : i32
    %0 = arith.cmpi eq, %arg1, %c0_i32 : i32
    %1 = arith.extui %0 : i1 to i32
    %c0_i32_0 = arith.constant 0 : i32
    %2 = arith.cmpi ne, %1, %c0_i32_0 : i32
    scf.if %2 {
      %c0_92 = arith.constant 0 : index
      %c0_93 = arith.constant 0 : index
      %323 = vector.load %arg4[%c0_92, %c0_93] : memref<8x128xf32, #tpu.memory_space<vmem>>, vector<8x128xf32>
      %c0_94 = arith.constant 0 : index
      %c0_95 = arith.constant 0 : index
      %324 = vector.load %arg9[%c0_94, %c0_95] : memref<8x128xf32, #tpu.memory_space<vmem>>, vector<8x128xf32>
      tpu.vector_store %arg9[%c0_94, %c0_95], %323 {strides = array<i32>} : memref<8x128xf32, #tpu.memory_space<vmem>>, vector<8x128xf32>,
      %c0_96 = arith.constant 0 : index
      %c0_97 = arith.constant 0 : index
      %325 = vector.load %arg5[%c0_96, %c0_97] : memref<8x128xf32, #tpu.memory_space<vmem>>, vector<8x128xf32>
      %c0_98 = arith.constant 0 : index
      %c0_99 = arith.constant 0 : index
      %326 = vector.load %arg10[%c0_98, %c0_99] : memref<8x128xf32, #tpu.memory_space<vmem>>, vector<8x128xf32>
      tpu.vector_store %arg10[%c0_98, %c0_99], %325 {strides = array<i32>} : memref<8x128xf32, #tpu.memory_space<vmem>>, vector<8x128xf32>,
    } else {
    }
    %c0 = arith.constant 0 : index
    %c0_1 = arith.constant 0 : index
    %3 = vector.load %arg3[%c0, %c0_1] : memref<128x512xf32, #tpu.memory_space<vmem>>, vector<128x512xf32>
    %c0_2 = arith.constant 0 : index
    %c0_3 = arith.constant 0 : index
    %4 = vector.load %arg9[%c0_2, %c0_3] : memref<8x128xf32, #tpu.memory_space<vmem>>, vector<8x128xf32>
    %c0_4 = arith.constant 0 : index
    %c0_5 = arith.constant 0 : index
    %5 = vector.load %arg10[%c0_4, %c0_5] : memref<8x128xf32, #tpu.memory_space<vmem>>, vector<8x128xf32>
    %c0_i32_6 = arith.constant 0 : i32
    %6 = arith.index_cast %c0_i32_6 : i32 to index
    %c0_7 = arith.constant 0 : index
    %c0_8 = arith.constant 0 : index
    %7 = vector.load %arg2[%6, %c0_7, %c0_8] : memref<8x8x512xf32, #tpu.memory_space<vmem>>, vector<1x8x512xf32>
    %8 = vector.shape_cast %7 : vector<1x8x512xf32> to vector<8x512xf32>
    %cst = arith.constant dense<0.000000e+00> : vector<8x512xf32>
    %9 = tpu.matmul %4, %3, %cst {dimension_numbers = #tpu.dot_dimension_numbers<[1], [0], [0], [1], [0, 0, 1, 1], [], []>} : vector<8x128xf32>, vector<128x512xf32>, vector<8x512xf32> -> vector<8x512xf32>
    %10 = arith.addf %8, %9 : vector<8x512xf32>
    %11 = vector.extract_strided_slice %10 {offsets = [0, 0], sizes = [8, 128], strides = [1, 1]} : vector<8x512xf32> to vector<8x128xf32>
    %12 = arith.negf %11 : vector<8x128xf32>
    %13 = math.exp %12 : vector<8x128xf32>
    %cst_9 = arith.constant 1.000000e+00 : f32
    %14 = vector.broadcast %cst_9 : f32 to vector<8x128xf32>
    %15 = arith.addf %14, %13 : vector<8x128xf32>
    %16 = arith.divf %14, %15 : vector<8x128xf32>
    %17 = vector.extract_strided_slice %10 {offsets = [0, 128], sizes = [8, 128], strides = [1, 1]} : vector<8x512xf32> to vector<8x128xf32>
    %18 = arith.negf %17 : vector<8x128xf32>
    %19 = math.exp %18 : vector<8x128xf32>
    %cst_10 = arith.constant 1.000000e+00 : f32
    %20 = vector.broadcast %cst_10 : f32 to vector<8x128xf32>
    %21 = arith.addf %20, %19 : vector<8x128xf32>
    %22 = arith.divf %20, %21 : vector<8x128xf32>
    %23 = vector.extract_strided_slice %10 {offsets = [0, 256], sizes = [8, 128], strides = [1, 1]} : vector<8x512xf32> to vector<8x128xf32>
    %24 = math.tanh %23 : vector<8x128xf32>
    %25 = vector.extract_strided_slice %10 {offsets = [0, 384], sizes = [8, 128], strides = [1, 1]} : vector<8x512xf32> to vector<8x128xf32>
    %26 = arith.negf %25 : vector<8x128xf32>
    %27 = math.exp %26 : vector<8x128xf32>
    %cst_11 = arith.constant 1.000000e+00 : f32
    %28 = vector.broadcast %cst_11 : f32 to vector<8x128xf32>
    %29 = arith.addf %28, %27 : vector<8x128xf32>
    %30 = arith.divf %28, %29 : vector<8x128xf32>
    %31 = arith.mulf %22, %5 : vector<8x128xf32>
    %32 = arith.mulf %16, %24 : vector<8x128xf32>
    %33 = arith.addf %31, %32 : vector<8x128xf32>
    %34 = math.tanh %33 : vector<8x128xf32>
    %35 = arith.mulf %30, %34 : vector<8x128xf32>
    %c8_i32 = arith.constant 8 : i32
    %36 = arith.muli %arg1, %c8_i32 : i32
    %37 = arith.addi %36, %c0_i32_6 : i32
    %c8_i32_12 = arith.constant 8 : i32
    %38 = arith.cmpi slt, %37, %c8_i32_12 : i32
    %39 = arith.select %38, %35, %4 : vector<8x128xf32>
    %40 = arith.select %38, %33, %5 : vector<8x128xf32>
    %41 = arith.index_cast %c0_i32_6 : i32 to index
    %c0_13 = arith.constant 0 : index
    %c0_14 = arith.constant 0 : index
    %42 = vector.load %arg6[%41, %c0_13, %c0_14] : memref<8x8x128xf32, #tpu.memory_space<vmem>>, vector<1x8x128xf32>
    %43 = vector.shape_cast %42 : vector<1x8x128xf32> to vector<8x128xf32>
    %44 = vector.shape_cast %39 : vector<8x128xf32> to vector<1x8x128xf32>
    tpu.vector_store %arg6[%41, %c0_13, %c0_14], %44 {strides = array<i32>} : memref<8x8x128xf32, #tpu.memory_space<vmem>>, vector<1x8x128xf32>,
    %c1_i32 = arith.constant 1 : i32
    %45 = arith.index_cast %c1_i32 : i32 to index
    %c0_15 = arith.constant 0 : index
    %c0_16 = arith.constant 0 : index
    %46 = vector.load %arg2[%45, %c0_15, %c0_16] : memref<8x8x512xf32, #tpu.memory_space<vmem>>, vector<1x8x512xf32>
    %47 = vector.shape_cast %46 : vector<1x8x512xf32> to vector<8x512xf32>
    %cst_17 = arith.constant dense<0.000000e+00> : vector<8x512xf32>
    %48 = tpu.matmul %39, %3, %cst_17 {dimension_numbers = #tpu.dot_dimension_numbers<[1], [0], [0], [1], [0, 0, 1, 1], [], []>} : vector<8x128xf32>, vector<128x512xf32>, vector<8x512xf32> -> vector<8x512xf32>
    %49 = arith.addf %47, %48 : vector<8x512xf32>
    %50 = vector.extract_strided_slice %49 {offsets = [0, 0], sizes = [8, 128], strides = [1, 1]} : vector<8x512xf32> to vector<8x128xf32>
    %51 = arith.negf %50 : vector<8x128xf32>
    %52 = math.exp %51 : vector<8x128xf32>
    %cst_18 = arith.constant 1.000000e+00 : f32
    %53 = vector.broadcast %cst_18 : f32 to vector<8x128xf32>
    %54 = arith.addf %53, %52 : vector<8x128xf32>
    %55 = arith.divf %53, %54 : vector<8x128xf32>
    %56 = vector.extract_strided_slice %49 {offsets = [0, 128], sizes = [8, 128], strides = [1, 1]} : vector<8x512xf32> to vector<8x128xf32>
    %57 = arith.negf %56 : vector<8x128xf32>
    %58 = math.exp %57 : vector<8x128xf32>
    %cst_19 = arith.constant 1.000000e+00 : f32
    %59 = vector.broadcast %cst_19 : f32 to vector<8x128xf32>
    %60 = arith.addf %59, %58 : vector<8x128xf32>
    %61 = arith.divf %59, %60 : vector<8x128xf32>
    %62 = vector.extract_strided_slice %49 {offsets = [0, 256], sizes = [8, 128], strides = [1, 1]} : vector<8x512xf32> to vector<8x128xf32>
    %63 = math.tanh %62 : vector<8x128xf32>
    %64 = vector.extract_strided_slice %49 {offsets = [0, 384], sizes = [8, 128], strides = [1, 1]} : vector<8x512xf32> to vector<8x128xf32>
    %65 = arith.negf %64 : vector<8x128xf32>
    %66 = math.exp %65 : vector<8x128xf32>
    %cst_20 = arith.constant 1.000000e+00 : f32
    %67 = vector.broadcast %cst_20 : f32 to vector<8x128xf32>
    %68 = arith.addf %67, %66 : vector<8x128xf32>
    %69 = arith.divf %67, %68 : vector<8x128xf32>
    %70 = arith.mulf %61, %40 : vector<8x128xf32>
    %71 = arith.mulf %55, %63 : vector<8x128xf32>
    %72 = arith.addf %70, %71 : vector<8x128xf32>
    %73 = math.tanh %72 : vector<8x128xf32>
    %74 = arith.mulf %69, %73 : vector<8x128xf32>
    %c8_i32_21 = arith.constant 8 : i32
    %75 = arith.muli %arg1, %c8_i32_21 : i32
    %76 = arith.addi %75, %c1_i32 : i32
    %c8_i32_22 = arith.constant 8 : i32
    %77 = arith.cmpi slt, %76, %c8_i32_22 : i32
    %78 = arith.select %77, %74, %39 : vector<8x128xf32>
    %79 = arith.select %77, %72, %40 : vector<8x128xf32>
    %80 = arith.index_cast %c1_i32 : i32 to index
    %c0_23 = arith.constant 0 : index
    %c0_24 = arith.constant 0 : index
    %81 = vector.load %arg6[%80, %c0_23, %c0_24] : memref<8x8x128xf32, #tpu.memory_space<vmem>>, vector<1x8x128xf32>
    %82 = vector.shape_cast %81 : vector<1x8x128xf32> to vector<8x128xf32>
    %83 = vector.shape_cast %78 : vector<8x128xf32> to vector<1x8x128xf32>
    tpu.vector_store %arg6[%80, %c0_23, %c0_24], %83 {strides = array<i32>} : memref<8x8x128xf32, #tpu.memory_space<vmem>>, vector<1x8x128xf32>,
    %c2_i32 = arith.constant 2 : i32
    %84 = arith.index_cast %c2_i32 : i32 to index
    %c0_25 = arith.constant 0 : index
    %c0_26 = arith.constant 0 : index
    %85 = vector.load %arg2[%84, %c0_25, %c0_26] : memref<8x8x512xf32, #tpu.memory_space<vmem>>, vector<1x8x512xf32>
    %86 = vector.shape_cast %85 : vector<1x8x512xf32> to vector<8x512xf32>
    %cst_27 = arith.constant dense<0.000000e+00> : vector<8x512xf32>
    %87 = tpu.matmul %78, %3, %cst_27 {dimension_numbers = #tpu.dot_dimension_numbers<[1], [0], [0], [1], [0, 0, 1, 1], [], []>} : vector<8x128xf32>, vector<128x512xf32>, vector<8x512xf32> -> vector<8x512xf32>
    %88 = arith.addf %86, %87 : vector<8x512xf32>
    %89 = vector.extract_strided_slice %88 {offsets = [0, 0], sizes = [8, 128], strides = [1, 1]} : vector<8x512xf32> to vector<8x128xf32>
    %90 = arith.negf %89 : vector<8x128xf32>
    %91 = math.exp %90 : vector<8x128xf32>
    %cst_28 = arith.constant 1.000000e+00 : f32
    %92 = vector.broadcast %cst_28 : f32 to vector<8x128xf32>
    %93 = arith.addf %92, %91 : vector<8x128xf32>
    %94 = arith.divf %92, %93 : vector<8x128xf32>
    %95 = vector.extract_strided_slice %88 {offsets = [0, 128], sizes = [8, 128], strides = [1, 1]} : vector<8x512xf32> to vector<8x128xf32>
    %96 = arith.negf %95 : vector<8x128xf32>
    %97 = math.exp %96 : vector<8x128xf32>
    %cst_29 = arith.constant 1.000000e+00 : f32
    %98 = vector.broadcast %cst_29 : f32 to vector<8x128xf32>
    %99 = arith.addf %98, %97 : vector<8x128xf32>
    %100 = arith.divf %98, %99 : vector<8x128xf32>
    %101 = vector.extract_strided_slice %88 {offsets = [0, 256], sizes = [8, 128], strides = [1, 1]} : vector<8x512xf32> to vector<8x128xf32>
    %102 = math.tanh %101 : vector<8x128xf32>
    %103 = vector.extract_strided_slice %88 {offsets = [0, 384], sizes = [8, 128], strides = [1, 1]} : vector<8x512xf32> to vector<8x128xf32>
    %104 = arith.negf %103 : vector<8x128xf32>
    %105 = math.exp %104 : vector<8x128xf32>
    %cst_30 = arith.constant 1.000000e+00 : f32
    %106 = vector.broadcast %cst_30 : f32 to vector<8x128xf32>
    %107 = arith.addf %106, %105 : vector<8x128xf32>
    %108 = arith.divf %106, %107 : vector<8x128xf32>
    %109 = arith.mulf %100, %79 : vector<8x128xf32>
    %110 = arith.mulf %94, %102 : vector<8x128xf32>
    %111 = arith.addf %109, %110 : vector<8x128xf32>
    %112 = math.tanh %111 : vector<8x128xf32>
    %113 = arith.mulf %108, %112 : vector<8x128xf32>
    %c8_i32_31 = arith.constant 8 : i32
    %114 = arith.muli %arg1, %c8_i32_31 : i32
    %115 = arith.addi %114, %c2_i32 : i32
    %c8_i32_32 = arith.constant 8 : i32
    %116 = arith.cmpi slt, %115, %c8_i32_32 : i32
    %117 = arith.select %116, %113, %78 : vector<8x128xf32>
    %118 = arith.select %116, %111, %79 : vector<8x128xf32>
    %119 = arith.index_cast %c2_i32 : i32 to index
    %c0_33 = arith.constant 0 : index
    %c0_34 = arith.constant 0 : index
    %120 = vector.load %arg6[%119, %c0_33, %c0_34] : memref<8x8x128xf32, #tpu.memory_space<vmem>>, vector<1x8x128xf32>
    %121 = vector.shape_cast %120 : vector<1x8x128xf32> to vector<8x128xf32>
    %122 = vector.shape_cast %117 : vector<8x128xf32> to vector<1x8x128xf32>
    tpu.vector_store %arg6[%119, %c0_33, %c0_34], %122 {strides = array<i32>} : memref<8x8x128xf32, #tpu.memory_space<vmem>>, vector<1x8x128xf32>,
    %c3_i32 = arith.constant 3 : i32
    %123 = arith.index_cast %c3_i32 : i32 to index
    %c0_35 = arith.constant 0 : index
    %c0_36 = arith.constant 0 : index
    %124 = vector.load %arg2[%123, %c0_35, %c0_36] : memref<8x8x512xf32, #tpu.memory_space<vmem>>, vector<1x8x512xf32>
    %125 = vector.shape_cast %124 : vector<1x8x512xf32> to vector<8x512xf32>
    %cst_37 = arith.constant dense<0.000000e+00> : vector<8x512xf32>
    %126 = tpu.matmul %117, %3, %cst_37 {dimension_numbers = #tpu.dot_dimension_numbers<[1], [0], [0], [1], [0, 0, 1, 1], [], []>} : vector<8x128xf32>, vector<128x512xf32>, vector<8x512xf32> -> vector<8x512xf32>
    %127 = arith.addf %125, %126 : vector<8x512xf32>
    %128 = vector.extract_strided_slice %127 {offsets = [0, 0], sizes = [8, 128], strides = [1, 1]} : vector<8x512xf32> to vector<8x128xf32>
    %129 = arith.negf %128 : vector<8x128xf32>
    %130 = math.exp %129 : vector<8x128xf32>
    %cst_38 = arith.constant 1.000000e+00 : f32
    %131 = vector.broadcast %cst_38 : f32 to vector<8x128xf32>
    %132 = arith.addf %131, %130 : vector<8x128xf32>
    %133 = arith.divf %131, %132 : vector<8x128xf32>
    %134 = vector.extract_strided_slice %127 {offsets = [0, 128], sizes = [8, 128], strides = [1, 1]} : vector<8x512xf32> to vector<8x128xf32>
    %135 = arith.negf %134 : vector<8x128xf32>
    %136 = math.exp %135 : vector<8x128xf32>
    %cst_39 = arith.constant 1.000000e+00 : f32
    %137 = vector.broadcast %cst_39 : f32 to vector<8x128xf32>
    %138 = arith.addf %137, %136 : vector<8x128xf32>
    %139 = arith.divf %137, %138 : vector<8x128xf32>
    %140 = vector.extract_strided_slice %127 {offsets = [0, 256], sizes = [8, 128], strides = [1, 1]} : vector<8x512xf32> to vector<8x128xf32>
    %141 = math.tanh %140 : vector<8x128xf32>
    %142 = vector.extract_strided_slice %127 {offsets = [0, 384], sizes = [8, 128], strides = [1, 1]} : vector<8x512xf32> to vector<8x128xf32>
    %143 = arith.negf %142 : vector<8x128xf32>
    %144 = math.exp %143 : vector<8x128xf32>
    %cst_40 = arith.constant 1.000000e+00 : f32
    %145 = vector.broadcast %cst_40 : f32 to vector<8x128xf32>
    %146 = arith.addf %145, %144 : vector<8x128xf32>
    %147 = arith.divf %145, %146 : vector<8x128xf32>
    %148 = arith.mulf %139, %118 : vector<8x128xf32>
    %149 = arith.mulf %133, %141 : vector<8x128xf32>
    %150 = arith.addf %148, %149 : vector<8x128xf32>
    %151 = math.tanh %150 : vector<8x128xf32>
    %152 = arith.mulf %147, %151 : vector<8x128xf32>
    %c8_i32_41 = arith.constant 8 : i32
    %153 = arith.muli %arg1, %c8_i32_41 : i32
    %154 = arith.addi %153, %c3_i32 : i32
    %c8_i32_42 = arith.constant 8 : i32
    %155 = arith.cmpi slt, %154, %c8_i32_42 : i32
    %156 = arith.select %155, %152, %117 : vector<8x128xf32>
    %157 = arith.select %155, %150, %118 : vector<8x128xf32>
    %158 = arith.index_cast %c3_i32 : i32 to index
    %c0_43 = arith.constant 0 : index
    %c0_44 = arith.constant 0 : index
    %159 = vector.load %arg6[%158, %c0_43, %c0_44] : memref<8x8x128xf32, #tpu.memory_space<vmem>>, vector<1x8x128xf32>
    %160 = vector.shape_cast %159 : vector<1x8x128xf32> to vector<8x128xf32>
    %161 = vector.shape_cast %156 : vector<8x128xf32> to vector<1x8x128xf32>
    tpu.vector_store %arg6[%158, %c0_43, %c0_44], %161 {strides = array<i32>} : memref<8x8x128xf32, #tpu.memory_space<vmem>>, vector<1x8x128xf32>,
    %c4_i32 = arith.constant 4 : i32
    %162 = arith.index_cast %c4_i32 : i32 to index
    %c0_45 = arith.constant 0 : index
    %c0_46 = arith.constant 0 : index
    %163 = vector.load %arg2[%162, %c0_45, %c0_46] : memref<8x8x512xf32, #tpu.memory_space<vmem>>, vector<1x8x512xf32>
    %164 = vector.shape_cast %163 : vector<1x8x512xf32> to vector<8x512xf32>
    %cst_47 = arith.constant dense<0.000000e+00> : vector<8x512xf32>
    %165 = tpu.matmul %156, %3, %cst_47 {dimension_numbers = #tpu.dot_dimension_numbers<[1], [0], [0], [1], [0, 0, 1, 1], [], []>} : vector<8x128xf32>, vector<128x512xf32>, vector<8x512xf32> -> vector<8x512xf32>
    %166 = arith.addf %164, %165 : vector<8x512xf32>
    %167 = vector.extract_strided_slice %166 {offsets = [0, 0], sizes = [8, 128], strides = [1, 1]} : vector<8x512xf32> to vector<8x128xf32>
    %168 = arith.negf %167 : vector<8x128xf32>
    %169 = math.exp %168 : vector<8x128xf32>
    %cst_48 = arith.constant 1.000000e+00 : f32
    %170 = vector.broadcast %cst_48 : f32 to vector<8x128xf32>
    %171 = arith.addf %170, %169 : vector<8x128xf32>
    %172 = arith.divf %170, %171 : vector<8x128xf32>
    %173 = vector.extract_strided_slice %166 {offsets = [0, 128], sizes = [8, 128], strides = [1, 1]} : vector<8x512xf32> to vector<8x128xf32>
    %174 = arith.negf %173 : vector<8x128xf32>
    %175 = math.exp %174 : vector<8x128xf32>
    %cst_49 = arith.constant 1.000000e+00 : f32
    %176 = vector.broadcast %cst_49 : f32 to vector<8x128xf32>
    %177 = arith.addf %176, %175 : vector<8x128xf32>
    %178 = arith.divf %176, %177 : vector<8x128xf32>
    %179 = vector.extract_strided_slice %166 {offsets = [0, 256], sizes = [8, 128], strides = [1, 1]} : vector<8x512xf32> to vector<8x128xf32>
    %180 = math.tanh %179 : vector<8x128xf32>
    %181 = vector.extract_strided_slice %166 {offsets = [0, 384], sizes = [8, 128], strides = [1, 1]} : vector<8x512xf32> to vector<8x128xf32>
    %182 = arith.negf %181 : vector<8x128xf32>
    %183 = math.exp %182 : vector<8x128xf32>
    %cst_50 = arith.constant 1.000000e+00 : f32
    %184 = vector.broadcast %cst_50 : f32 to vector<8x128xf32>
    %185 = arith.addf %184, %183 : vector<8x128xf32>
    %186 = arith.divf %184, %185 : vector<8x128xf32>
    %187 = arith.mulf %178, %157 : vector<8x128xf32>
    %188 = arith.mulf %172, %180 : vector<8x128xf32>
    %189 = arith.addf %187, %188 : vector<8x128xf32>
    %190 = math.tanh %189 : vector<8x128xf32>
    %191 = arith.mulf %186, %190 : vector<8x128xf32>
    %c8_i32_51 = arith.constant 8 : i32
    %192 = arith.muli %arg1, %c8_i32_51 : i32
    %193 = arith.addi %192, %c4_i32 : i32
    %c8_i32_52 = arith.constant 8 : i32
    %194 = arith.cmpi slt, %193, %c8_i32_52 : i32
    %195 = arith.select %194, %191, %156 : vector<8x128xf32>
    %196 = arith.select %194, %189, %157 : vector<8x128xf32>
    %197 = arith.index_cast %c4_i32 : i32 to index
    %c0_53 = arith.constant 0 : index
    %c0_54 = arith.constant 0 : index
    %198 = vector.load %arg6[%197, %c0_53, %c0_54] : memref<8x8x128xf32, #tpu.memory_space<vmem>>, vector<1x8x128xf32>
    %199 = vector.shape_cast %198 : vector<1x8x128xf32> to vector<8x128xf32>
    %200 = vector.shape_cast %195 : vector<8x128xf32> to vector<1x8x128xf32>
    tpu.vector_store %arg6[%197, %c0_53, %c0_54], %200 {strides = array<i32>} : memref<8x8x128xf32, #tpu.memory_space<vmem>>, vector<1x8x128xf32>,
    %c5_i32 = arith.constant 5 : i32
    %201 = arith.index_cast %c5_i32 : i32 to index
    %c0_55 = arith.constant 0 : index
    %c0_56 = arith.constant 0 : index
    %202 = vector.load %arg2[%201, %c0_55, %c0_56] : memref<8x8x512xf32, #tpu.memory_space<vmem>>, vector<1x8x512xf32>
    %203 = vector.shape_cast %202 : vector<1x8x512xf32> to vector<8x512xf32>
    %cst_57 = arith.constant dense<0.000000e+00> : vector<8x512xf32>
    %204 = tpu.matmul %195, %3, %cst_57 {dimension_numbers = #tpu.dot_dimension_numbers<[1], [0], [0], [1], [0, 0, 1, 1], [], []>} : vector<8x128xf32>, vector<128x512xf32>, vector<8x512xf32> -> vector<8x512xf32>
    %205 = arith.addf %203, %204 : vector<8x512xf32>
    %206 = vector.extract_strided_slice %205 {offsets = [0, 0], sizes = [8, 128], strides = [1, 1]} : vector<8x512xf32> to vector<8x128xf32>
    %207 = arith.negf %206 : vector<8x128xf32>
    %208 = math.exp %207 : vector<8x128xf32>
    %cst_58 = arith.constant 1.000000e+00 : f32
    %209 = vector.broadcast %cst_58 : f32 to vector<8x128xf32>
    %210 = arith.addf %209, %208 : vector<8x128xf32>
    %211 = arith.divf %209, %210 : vector<8x128xf32>
    %212 = vector.extract_strided_slice %205 {offsets = [0, 128], sizes = [8, 128], strides = [1, 1]} : vector<8x512xf32> to vector<8x128xf32>
    %213 = arith.negf %212 : vector<8x128xf32>
    %214 = math.exp %213 : vector<8x128xf32>
    %cst_59 = arith.constant 1.000000e+00 : f32
    %215 = vector.broadcast %cst_59 : f32 to vector<8x128xf32>
    %216 = arith.addf %215, %214 : vector<8x128xf32>
    %217 = arith.divf %215, %216 : vector<8x128xf32>
    %218 = vector.extract_strided_slice %205 {offsets = [0, 256], sizes = [8, 128], strides = [1, 1]} : vector<8x512xf32> to vector<8x128xf32>
    %219 = math.tanh %218 : vector<8x128xf32>
    %220 = vector.extract_strided_slice %205 {offsets = [0, 384], sizes = [8, 128], strides = [1, 1]} : vector<8x512xf32> to vector<8x128xf32>
    %221 = arith.negf %220 : vector<8x128xf32>
    %222 = math.exp %221 : vector<8x128xf32>
    %cst_60 = arith.constant 1.000000e+00 : f32
    %223 = vector.broadcast %cst_60 : f32 to vector<8x128xf32>
    %224 = arith.addf %223, %222 : vector<8x128xf32>
    %225 = arith.divf %223, %224 : vector<8x128xf32>
    %226 = arith.mulf %217, %196 : vector<8x128xf32>
    %227 = arith.mulf %211, %219 : vector<8x128xf32>
    %228 = arith.addf %226, %227 : vector<8x128xf32>
    %229 = math.tanh %228 : vector<8x128xf32>
    %230 = arith.mulf %225, %229 : vector<8x128xf32>
    %c8_i32_61 = arith.constant 8 : i32
    %231 = arith.muli %arg1, %c8_i32_61 : i32
    %232 = arith.addi %231, %c5_i32 : i32
    %c8_i32_62 = arith.constant 8 : i32
    %233 = arith.cmpi slt, %232, %c8_i32_62 : i32
    %234 = arith.select %233, %230, %195 : vector<8x128xf32>
    %235 = arith.select %233, %228, %196 : vector<8x128xf32>
    %236 = arith.index_cast %c5_i32 : i32 to index
    %c0_63 = arith.constant 0 : index
    %c0_64 = arith.constant 0 : index
    %237 = vector.load %arg6[%236, %c0_63, %c0_64] : memref<8x8x128xf32, #tpu.memory_space<vmem>>, vector<1x8x128xf32>
    %238 = vector.shape_cast %237 : vector<1x8x128xf32> to vector<8x128xf32>
    %239 = vector.shape_cast %234 : vector<8x128xf32> to vector<1x8x128xf32>
    tpu.vector_store %arg6[%236, %c0_63, %c0_64], %239 {strides = array<i32>} : memref<8x8x128xf32, #tpu.memory_space<vmem>>, vector<1x8x128xf32>,
    %c6_i32 = arith.constant 6 : i32
    %240 = arith.index_cast %c6_i32 : i32 to index
    %c0_65 = arith.constant 0 : index
    %c0_66 = arith.constant 0 : index
    %241 = vector.load %arg2[%240, %c0_65, %c0_66] : memref<8x8x512xf32, #tpu.memory_space<vmem>>, vector<1x8x512xf32>
    %242 = vector.shape_cast %241 : vector<1x8x512xf32> to vector<8x512xf32>
    %cst_67 = arith.constant dense<0.000000e+00> : vector<8x512xf32>
    %243 = tpu.matmul %234, %3, %cst_67 {dimension_numbers = #tpu.dot_dimension_numbers<[1], [0], [0], [1], [0, 0, 1, 1], [], []>} : vector<8x128xf32>, vector<128x512xf32>, vector<8x512xf32> -> vector<8x512xf32>
    %244 = arith.addf %242, %243 : vector<8x512xf32>
    %245 = vector.extract_strided_slice %244 {offsets = [0, 0], sizes = [8, 128], strides = [1, 1]} : vector<8x512xf32> to vector<8x128xf32>
    %246 = arith.negf %245 : vector<8x128xf32>
    %247 = math.exp %246 : vector<8x128xf32>
    %cst_68 = arith.constant 1.000000e+00 : f32
    %248 = vector.broadcast %cst_68 : f32 to vector<8x128xf32>
    %249 = arith.addf %248, %247 : vector<8x128xf32>
    %250 = arith.divf %248, %249 : vector<8x128xf32>
    %251 = vector.extract_strided_slice %244 {offsets = [0, 128], sizes = [8, 128], strides = [1, 1]} : vector<8x512xf32> to vector<8x128xf32>
    %252 = arith.negf %251 : vector<8x128xf32>
    %253 = math.exp %252 : vector<8x128xf32>
    %cst_69 = arith.constant 1.000000e+00 : f32
    %254 = vector.broadcast %cst_69 : f32 to vector<8x128xf32>
    %255 = arith.addf %254, %253 : vector<8x128xf32>
    %256 = arith.divf %254, %255 : vector<8x128xf32>
    %257 = vector.extract_strided_slice %244 {offsets = [0, 256], sizes = [8, 128], strides = [1, 1]} : vector<8x512xf32> to vector<8x128xf32>
    %258 = math.tanh %257 : vector<8x128xf32>
    %259 = vector.extract_strided_slice %244 {offsets = [0, 384], sizes = [8, 128], strides = [1, 1]} : vector<8x512xf32> to vector<8x128xf32>
    %260 = arith.negf %259 : vector<8x128xf32>
    %261 = math.exp %260 : vector<8x128xf32>
    %cst_70 = arith.constant 1.000000e+00 : f32
    %262 = vector.broadcast %cst_70 : f32 to vector<8x128xf32>
    %263 = arith.addf %262, %261 : vector<8x128xf32>
    %264 = arith.divf %262, %263 : vector<8x128xf32>
    %265 = arith.mulf %256, %235 : vector<8x128xf32>
    %266 = arith.mulf %250, %258 : vector<8x128xf32>
    %267 = arith.addf %265, %266 : vector<8x128xf32>
    %268 = math.tanh %267 : vector<8x128xf32>
    %269 = arith.mulf %264, %268 : vector<8x128xf32>
    %c8_i32_71 = arith.constant 8 : i32
    %270 = arith.muli %arg1, %c8_i32_71 : i32
    %271 = arith.addi %270, %c6_i32 : i32
    %c8_i32_72 = arith.constant 8 : i32
    %272 = arith.cmpi slt, %271, %c8_i32_72 : i32
    %273 = arith.select %272, %269, %234 : vector<8x128xf32>
    %274 = arith.select %272, %267, %235 : vector<8x128xf32>
    %275 = arith.index_cast %c6_i32 : i32 to index
    %c0_73 = arith.constant 0 : index
    %c0_74 = arith.constant 0 : index
    %276 = vector.load %arg6[%275, %c0_73, %c0_74] : memref<8x8x128xf32, #tpu.memory_space<vmem>>, vector<1x8x128xf32>
    %277 = vector.shape_cast %276 : vector<1x8x128xf32> to vector<8x128xf32>
    %278 = vector.shape_cast %273 : vector<8x128xf32> to vector<1x8x128xf32>
    tpu.vector_store %arg6[%275, %c0_73, %c0_74], %278 {strides = array<i32>} : memref<8x8x128xf32, #tpu.memory_space<vmem>>, vector<1x8x128xf32>,
    %c7_i32 = arith.constant 7 : i32
    %279 = arith.index_cast %c7_i32 : i32 to index
    %c0_75 = arith.constant 0 : index
    %c0_76 = arith.constant 0 : index
    %280 = vector.load %arg2[%279, %c0_75, %c0_76] : memref<8x8x512xf32, #tpu.memory_space<vmem>>, vector<1x8x512xf32>
    %281 = vector.shape_cast %280 : vector<1x8x512xf32> to vector<8x512xf32>
    %cst_77 = arith.constant dense<0.000000e+00> : vector<8x512xf32>
    %282 = tpu.matmul %273, %3, %cst_77 {dimension_numbers = #tpu.dot_dimension_numbers<[1], [0], [0], [1], [0, 0, 1, 1], [], []>} : vector<8x128xf32>, vector<128x512xf32>, vector<8x512xf32> -> vector<8x512xf32>
    %283 = arith.addf %281, %282 : vector<8x512xf32>
    %284 = vector.extract_strided_slice %283 {offsets = [0, 0], sizes = [8, 128], strides = [1, 1]} : vector<8x512xf32> to vector<8x128xf32>
    %285 = arith.negf %284 : vector<8x128xf32>
    %286 = math.exp %285 : vector<8x128xf32>
    %cst_78 = arith.constant 1.000000e+00 : f32
    %287 = vector.broadcast %cst_78 : f32 to vector<8x128xf32>
    %288 = arith.addf %287, %286 : vector<8x128xf32>
    %289 = arith.divf %287, %288 : vector<8x128xf32>
    %290 = vector.extract_strided_slice %283 {offsets = [0, 128], sizes = [8, 128], strides = [1, 1]} : vector<8x512xf32> to vector<8x128xf32>
    %291 = arith.negf %290 : vector<8x128xf32>
    %292 = math.exp %291 : vector<8x128xf32>
    %cst_79 = arith.constant 1.000000e+00 : f32
    %293 = vector.broadcast %cst_79 : f32 to vector<8x128xf32>
    %294 = arith.addf %293, %292 : vector<8x128xf32>
    %295 = arith.divf %293, %294 : vector<8x128xf32>
    %296 = vector.extract_strided_slice %283 {offsets = [0, 256], sizes = [8, 128], strides = [1, 1]} : vector<8x512xf32> to vector<8x128xf32>
    %297 = math.tanh %296 : vector<8x128xf32>
    %298 = vector.extract_strided_slice %283 {offsets = [0, 384], sizes = [8, 128], strides = [1, 1]} : vector<8x512xf32> to vector<8x128xf32>
    %299 = arith.negf %298 : vector<8x128xf32>
    %300 = math.exp %299 : vector<8x128xf32>
    %cst_80 = arith.constant 1.000000e+00 : f32
    %301 = vector.broadcast %cst_80 : f32 to vector<8x128xf32>
    %302 = arith.addf %301, %300 : vector<8x128xf32>
    %303 = arith.divf %301, %302 : vector<8x128xf32>
    %304 = arith.mulf %295, %274 : vector<8x128xf32>
    %305 = arith.mulf %289, %297 : vector<8x128xf32>
    %306 = arith.addf %304, %305 : vector<8x128xf32>
    %307 = math.tanh %306 : vector<8x128xf32>
    %308 = arith.mulf %303, %307 : vector<8x128xf32>
    %c8_i32_81 = arith.constant 8 : i32
    %309 = arith.muli %arg1, %c8_i32_81 : i32
    %310 = arith.addi %309, %c7_i32 : i32
    %c8_i32_82 = arith.constant 8 : i32
    %311 = arith.cmpi slt, %310, %c8_i32_82 : i32
    %312 = arith.select %311, %308, %273 : vector<8x128xf32>
    %313 = arith.select %311, %306, %274 : vector<8x128xf32>
    %314 = arith.index_cast %c7_i32 : i32 to index
    %c0_83 = arith.constant 0 : index
    %c0_84 = arith.constant 0 : index
    %315 = vector.load %arg6[%314, %c0_83, %c0_84] : memref<8x8x128xf32, #tpu.memory_space<vmem>>, vector<1x8x128xf32>
    %316 = vector.shape_cast %315 : vector<1x8x128xf32> to vector<8x128xf32>
    %317 = vector.shape_cast %312 : vector<8x128xf32> to vector<1x8x128xf32>
    tpu.vector_store %arg6[%314, %c0_83, %c0_84], %317 {strides = array<i32>} : memref<8x8x128xf32, #tpu.memory_space<vmem>>, vector<1x8x128xf32>,
    %c8_i32_85 = arith.constant 8 : i32
    %c0_86 = arith.constant 0 : index
    %c0_87 = arith.constant 0 : index
    %318 = vector.load %arg9[%c0_86, %c0_87] : memref<8x128xf32, #tpu.memory_space<vmem>>, vector<8x128xf32>
    tpu.vector_store %arg9[%c0_86, %c0_87], %312 {strides = array<i32>} : memref<8x128xf32, #tpu.memory_space<vmem>>, vector<8x128xf32>,
    %c0_88 = arith.constant 0 : index
    %c0_89 = arith.constant 0 : index
    %319 = vector.load %arg10[%c0_88, %c0_89] : memref<8x128xf32, #tpu.memory_space<vmem>>, vector<8x128xf32>
    tpu.vector_store %arg10[%c0_88, %c0_89], %313 {strides = array<i32>} : memref<8x128xf32, #tpu.memory_space<vmem>>, vector<8x128xf32>,
    %c0_i32_90 = arith.constant 0 : i32
    %320 = arith.cmpi eq, %arg1, %c0_i32_90 : i32
    %321 = arith.extui %320 : i1 to i32
    %c0_i32_91 = arith.constant 0 : i32
    %322 = arith.cmpi ne, %321, %c0_i32_91 : i32
    scf.if %322 {
      %c0_92 = arith.constant 0 : index
      %c0_93 = arith.constant 0 : index
      %323 = vector.load %arg7[%c0_92, %c0_93] : memref<8x128xf32, #tpu.memory_space<vmem>>, vector<8x128xf32>
      tpu.vector_store %arg7[%c0_92, %c0_93], %312 {strides = array<i32>} : memref<8x128xf32, #tpu.memory_space<vmem>>, vector<8x128xf32>,
      %c0_94 = arith.constant 0 : index
      %c0_95 = arith.constant 0 : index
      %324 = vector.load %arg8[%c0_94, %c0_95] : memref<8x128xf32, #tpu.memory_space<vmem>>, vector<8x128xf32>
      tpu.vector_store %arg8[%c0_94, %c0_95], %313 {strides = array<i32>} : memref<8x128xf32, #tpu.memory_space<vmem>>, vector<8x128xf32>,
    } else {
    }
    return
  }
  func.func @transform_0(%arg0: i32, %arg1: i32) -> (i32, i32, i32) {
    %c0_i32 = arith.constant 0 : i32
    %c0_i32_0 = arith.constant 0 : i32
    return %arg1, %arg0, %c0_i32 : i32, i32, i32
  }
  func.func @transform_1(%arg0: i32, %arg1: i32) -> (i32, i32) {
    %c0_i32 = arith.constant 0 : i32
    %c0_i32_0 = arith.constant 0 : i32
    %c0_i32_1 = arith.constant 0 : i32
    return %c0_i32, %c0_i32_0 : i32, i32
  }
  func.func @transform_2(%arg0: i32, %arg1: i32) -> (i32, i32) {
    %c0_i32 = arith.constant 0 : i32
    %c0_i32_0 = arith.constant 0 : i32
    return %arg0, %c0_i32 : i32, i32
  }
  func.func @transform_3(%arg0: i32, %arg1: i32) -> (i32, i32) {
    %c0_i32 = arith.constant 0 : i32
    %c0_i32_0 = arith.constant 0 : i32
    return %arg0, %c0_i32 : i32, i32
  }
  func.func @transform_4(%arg0: i32, %arg1: i32) -> (i32, i32, i32) {
    %c0_i32 = arith.constant 0 : i32
    %c0_i32_0 = arith.constant 0 : i32
    return %arg1, %arg0, %c0_i32 : i32, i32, i32
  }
  func.func @transform_5(%arg0: i32, %arg1: i32) -> (i32, i32) {
    %c0_i32 = arith.constant 0 : i32
    %c0_i32_0 = arith.constant 0 : i32
    return %arg0, %c0_i32 : i32, i32
  }
  func.func @transform_6(%arg0: i32, %arg1: i32) -> (i32, i32) {
    %c0_i32 = arith.constant 0 : i32
    %c0_i32_0 = arith.constant 0 : i32
    return %arg0, %c0_i32 : i32, i32
  }
}

</mosaic_0001>

<llo_original>
// kernel: rnn_base_forward.5
$region0: #{rnn_base_forward.5}
  #allocation0 [shape = 'u32[]', space=smem, size = 0x4, offset = 0x4, fixed_abs, tag = 'smem constant byte address 0x4 - core index']
  #allocation1 [shape = 'u32[144,128]{1,0:T(1,128)}', space=vmem, size = 0x12000, scoped, tag = 'internal scratch']
  %s0 = inlined_call_operand.vmem [shape: f32[64,16], index: 0, kind: input, shape index: {}]
  %s1 = inlined_call_operand.vmem [shape: f32[16,128], index: 1, kind: input, shape index: {}]
  %s2 = inlined_call_operand.vmem [shape: f32[1,128], index: 2, kind: input, shape index: {}]
  %s3 = inlined_call_operand.vmem [shape: f32[64,128], index: 3, kind: output, shape index: {}]
  %s4 = sld [smem:[#allocation0]]
  $region22: #{rnn_base_forward.5} parent=0
    _
  %s6 = ssub.s32 1, %s4
  %s7 = scalar_select 0, %s6, %s4
  // Predicated region
  $region2: #{rnn_base_forward.5} parent=0 // pred_check
    _
  $region3: #{rnn_base_forward.5} parent=0 // pred_check_branch
    %9 = sbr.rel (0) target = $region5
  $region4: #{rnn_base_forward.5} parent=0 // pred_region
    _
  $region5: #{rnn_base_forward.5} parent=0 // pred_fallthru
    _
  // Predicated region
  $region6: #{rnn_base_forward.5} parent=0 // pred_check
    _
  $region7: #{rnn_base_forward.5} parent=0 // pred_check_branch
    %11 = sbr.rel (0) target = $region9
  $region8: #{rnn_base_forward.5} parent=0 // pred_region
    _
  $region9: #{rnn_base_forward.5} parent=0 // pred_fallthru
    _
  // Predicated region
  $region10: #{rnn_base_forward.5} parent=0 // pred_check
    _
  $region11: #{rnn_base_forward.5} parent=0 // pred_check_branch
    %13 = sbr.rel (0) target = $region13
  $region12: #{rnn_base_forward.5} parent=0 // pred_region
    _
  $region13: #{rnn_base_forward.5} parent=0 // pred_fallthru
    _
  %v14 = vld [vmem:[%s0] sm:$0xff]
  %v15 = vld [vmem:[%s0 + $0x8] sm:$0xff]
  %v16 = vld [vmem:[%s0 + $0x10] sm:$0xff]
  %v17 = vld [vmem:[%s0 + $0x18] sm:$0xff]
  %v18 = vld [vmem:[%s0 + $0x20] sm:$0xff]
  %v19 = vld [vmem:[%s0 + $0x28] sm:$0xff]
  %v20 = vld [vmem:[%s0 + $0x30] sm:$0xff]
  %v21 = vld [vmem:[%s0 + $0x38] sm:$0xff]
  %v22 = vld [vmem:[%s1] sm:$0xff]
  %v23 = vld [vmem:[%s1 + $0x8] sm:$0xff]
  %v24 = vld [vmem:[%s2] sm:$0x1]
  %v26 = vlaneseq
  %v27 = vshrl.u32 %v26, 7
  %v28 = vsub.s32 0, %v27
  %v29 = vrot.slane %v24, %v28
  %vm31 = vcmask 130048
  %v33 = vsel %vm31, %v14, 0
  %v36 = vsel %vm31, %v15, 0
  %v39 = vsel %vm31, %v16, 0
  %v42 = vsel %vm31, %v17, 0
  %v45 = vsel %vm31, %v18, 0
  %v48 = vsel %vm31, %v19, 0
  %v51 = vsel %vm31, %v20, 0
  %v54 = vsel %vm31, %v21, 0
  %56 = vmatprep.subr.mxu0 0.0
  %57 = vmatpush1.msra.mxu0 %v22
  %58 = vmatprep.subr.mxu0 0.0
  %59 = vmatpush1.msra.mxu0 %v23
  %60 = vmatprep.subr.mxu0 0.0
  %61 = vmatpush1.msra.mxu0 0.0
  %62 = vmatprep.subr.mxu0 0.0
  %63 = vmatpush1.msra.mxu0 0.0
  %64 = vmatprep.subr.mxu0 0.0
  %65 = vmatpush1.msra.mxu0 0.0
  %66 = vmatprep.subr.mxu0 0.0
  %67 = vmatpush1.msra.mxu0 0.0
  %68 = vmatprep.subr.mxu0 0.0
  %69 = vmatpush1.msra.mxu0 0.0
  %70 = vmatprep.subr.mxu0 0.0
  %71 = vmatpush1.msra.mxu0 0.0
  %72 = vmatprep.subr.mxu0 0.0
  %73 = vmatpush1.msra.mxu0 0.0
  %74 = vmatprep.subr.mxu0 0.0
  %75 = vmatpush1.msra.mxu0 0.0
  %76 = vmatprep.subr.mxu0 0.0
  %77 = vmatpush1.msra.mxu0 0.0
  %78 = vmatprep.subr.mxu0 0.0
  %79 = vmatpush1.msra.mxu0 0.0
  %80 = vmatprep.subr.mxu0 0.0
  %81 = vmatpush1.msra.mxu0 0.0
  %82 = vmatprep.subr.mxu0 0.0
  %83 = vmatpush1.msra.mxu0 0.0
  %84 = vmatprep.subr.mxu0 0.0
  %85 = vmatpush1.msra.mxu0 0.0
  %86 = vmatprep.subr.mxu0 0.0
  %87 = vmatpush1.msra.mxu0 0.0
  %88 = vmatprep.subr.mxu0 0.0
  %89 = vmatpush1.msra.mxu0 0.0
  %90 = vmatprep.subr.mxu0 0.0
  %91 = vmatpush1.msra.mxu0 0.0
  %92 = vmatprep.subr.mxu0 0.0
  %93 = vmatpush1.msra.mxu0 0.0
  %94 = vmatprep.subr.mxu0 0.0
  %95 = vmatpush1.msra.mxu0 0.0
  %96 = vmatprep.subr.mxu0 0.0
  %97 = vmatpush1.msra.mxu0 0.0
  %98 = vmatprep.subr.mxu0 0.0
  %99 = vmatpush1.msra.mxu0 0.0
  %100 = vmatprep.subr.mxu0 0.0
  %101 = vmatpush1.msra.mxu0 0.0
  %102 = vmatprep.subr.mxu0 0.0
  %103 = vmatpush1.msra.mxu0 0.0
  %104 = vmatprep.subr.mxu0 0.0
  %105 = vmatpush1.msra.mxu0 0.0
  %106 = vmatprep.subr.mxu0 0.0
  %107 = vmatpush1.msra.mxu0 0.0
  %108 = vmatprep.subr.mxu0 0.0
  %109 = vmatpush1.msra.mxu0 0.0
  %110 = vmatprep.subr.mxu0 0.0
  %111 = vmatpush1.msra.mxu0 0.0
  %112 = vmatprep.subr.mxu0 0.0
  %113 = vmatpush1.msra.mxu0 0.0
  %114 = vmatprep.subr.mxu0 0.0
  %115 = vmatpush1.msra.mxu0 0.0
  %116 = vmatprep.subr.mxu0 0.0
  %117 = vmatpush1.msra.mxu0 0.0
  %118 = vmatprep.subr.mxu0 0.0
  %119 = vmatpush1.msra.mxu0 0.0
  %120 = vmatprep.mubr.f32.mxu0 0.0
  %121 = vmatmul.mubr.f32.gmra.mrb[0].mxu0 %v33
  %v122 = vpop.f32.mrb[0].mxu0
  %v123 = vadd.f32 %v29, %v122
  %v124 = vpop.f32.mrb[0].mxu0
  %125 = vmatprep.mubr.f32.mxu0 0.0
  %126 = vmatmul.mubr.f32.gmra.mrb[0].mxu0 %v36
  %v127 = vpop.f32.mrb[0].mxu0
  %v128 = vadd.f32 %v29, %v127
  %v129 = vpop.f32.mrb[0].mxu0
  %130 = vmatprep.mubr.f32.mxu0 0.0
  %131 = vmatmul.mubr.f32.gmra.mrb[0].mxu0 %v39
  %v132 = vpop.f32.mrb[0].mxu0
  %v133 = vadd.f32 %v29, %v132
  %v134 = vpop.f32.mrb[0].mxu0
  %135 = vmatprep.mubr.f32.mxu0 0.0
  %136 = vmatmul.mubr.f32.gmra.mrb[0].mxu0 %v42
  %v137 = vpop.f32.mrb[0].mxu0
  %v138 = vadd.f32 %v29, %v137
  %v139 = vpop.f32.mrb[0].mxu0
  %140 = vmatprep.mubr.f32.mxu0 0.0
  %141 = vmatmul.mubr.f32.gmra.mrb[0].mxu0 %v45
  %v142 = vpop.f32.mrb[0].mxu0
  %v143 = vadd.f32 %v29, %v142
  %v144 = vpop.f32.mrb[0].mxu0
  %145 = vmatprep.mubr.f32.mxu0 0.0
  %146 = vmatmul.mubr.f32.gmra.mrb[0].mxu0 %v48
  %v147 = vpop.f32.mrb[0].mxu0
  %v148 = vadd.f32 %v29, %v147
  %v149 = vpop.f32.mrb[0].mxu0
  %150 = vmatprep.mubr.f32.mxu0 0.0
  %151 = vmatmul.mubr.f32.gmra.mrb[0].mxu0 %v51
  %v152 = vpop.f32.mrb[0].mxu0
  %v153 = vadd.f32 %v29, %v152
  %v154 = vpop.f32.mrb[0].mxu0
  %155 = vmatprep.mubr.f32.mxu0 0.0
  %156 = vmatmul.mubr.f32.gmra.mrb[0].mxu0 %v54
  %v157 = vpop.f32.mrb[0].mxu0
  %v158 = vadd.f32 %v29, %v157
  %v159 = vpop.f32.mrb[0].mxu0
  %160 = vdwg.mxu0
  %161 = vst [vmem:[%s3] sm:$0xff] %v123
  %162 = vst [vmem:[%s3 + $0x8] sm:$0xff] %v128
  %163 = vst [vmem:[%s3 + $0x10] sm:$0xff] %v133
  %164 = vst [vmem:[%s3 + $0x18] sm:$0xff] %v138
  %165 = vst [vmem:[%s3 + $0x20] sm:$0xff] %v143
  %166 = vst [vmem:[%s3 + $0x28] sm:$0xff] %v148
  %167 = vst [vmem:[%s3 + $0x30] sm:$0xff] %v153
  %168 = vst [vmem:[%s3 + $0x38] sm:$0xff] %v158
  // Predicated region
  $region14: #{rnn_base_forward.5} parent=0 // pred_check
    _
  $region15: #{rnn_base_forward.5} parent=0 // pred_check_branch
    %170 = sbr.rel (0) target = $region17
  $region16: #{rnn_base_forward.5} parent=0 // pred_region
    _
  $region17: #{rnn_base_forward.5} parent=0 // pred_fallthru
    _
  // Predicated region
  $region18: #{rnn_base_forward.5} parent=0 // pred_check
    _
  $region19: #{rnn_base_forward.5} parent=0 // pred_check_branch
    %172 = sbr.rel (0) target = $region21
  $region20: #{rnn_base_forward.5} parent=0 // pred_region
    _
  $region21: #{rnn_base_forward.5} parent=0 // pred_fallthru
    _

// kernel: rnn_base_forward.6
$region0: #{rnn_base_forward.6}
  #allocation0 [shape = 'u32[]', space=smem, size = 0x4, offset = 0x4, fixed_abs, tag = 'smem constant byte address 0x4 - core index']
  #allocation1 [shape = 'u32[144,128]{1,0:T(1,128)}', space=vmem, size = 0x12000, scoped, tag = 'internal scratch']
  %s0 = inlined_call_operand.vmem [shape: f32[64,128], index: 0, kind: input, shape index: {}]
  %s1 = inlined_call_operand.hbm [shape: f32[128,512], index: 1, kind: input, shape index: {}]
  %s2 = inlined_call_operand.vmem [shape: f32[1,512], index: 2, kind: input, shape index: {}]
  %s3 = inlined_call_operand.vmem [shape: f32[64,512], index: 3, kind: output, shape index: {}]
  %s4 = sld [smem:[#allocation0]]
  $region26: #{rnn_base_forward.6} parent=0
    _
  %s6 = ssub.s32 1, %s4
  %s7 = scalar_select 0, %s6, %s4
  $region1: #{rnn_base_forward.6} parent=0
    #allocation2 [shape = 'u8[262144]{0}', space=vmem, size = 0x40000, scoped, tag = 'input window, operand 1, single buffered']
    #allocation3 [shape = 's32[1]{0}', space=sflag, size = 0x4, scoped, tag = 'scoped memory for rnn_base_forward.6']
    %8 = vsyncpa [#allocation3], 0
    // Predicated region
    $region2: #{rnn_base_forward.6} parent=1 // pred_check
      _
    $region3: #{rnn_base_forward.6} parent=1 // pred_check_branch
      %10 = sbr.rel (0) target = $region5
    $region4: #{rnn_base_forward.6} parent=1 // pred_region
      _
    $region5: #{rnn_base_forward.6} parent=1 // pred_fallthru
      _
    // Predicated region
    $region6: #{rnn_base_forward.6} parent=1 // pred_check
      _
    $region7: #{rnn_base_forward.6} parent=1 // pred_check_branch
      %12 = sbr.rel (0) target = $region9
    $region8: #{rnn_base_forward.6} parent=1 // pred_region
      %s14 = ssub.s32 8192, 8192
      %15 = vsyncadd [#allocation3], %s14
      %s16 = sshll.u32 [#allocation2], 4
      %s17 = int_to_ptr.vmem [resolvable:$true] %s16
      %22 = dma.hbm_to_vmem [thread:$0]  %s1, 8192, %s17, [#allocation3], 512, 512, 32
    $region9: #{rnn_base_forward.6} parent=1 // pred_fallthru
      _
    // Predicated region
    $region10: #{rnn_base_forward.6} parent=1 // pred_check
      _
    $region11: #{rnn_base_forward.6} parent=1 // pred_check_branch
      %24 = sbr.rel (0) target = $region13
    $region12: #{rnn_base_forward.6} parent=1 // pred_region
      _
    $region13: #{rnn_base_forward.6} parent=1 // pred_fallthru
      _
    // Predicated region
    $region14: #{rnn_base_forward.6} parent=1 // pred_check
      _
    $region15: #{rnn_base_forward.6} parent=1 // pred_check_branch
      %26 = sbr.rel (0) target = $region17
    $region16: #{rnn_base_forward.6} parent=1 // pred_region
      %27 = dma.done [#allocation3], 8192
    $region17: #{rnn_base_forward.6} parent=1 // pred_fallthru
      _
    %v28 = vld [vmem:[%s0] sm:$0xff]
    %v29 = vld [vmem:[%s0 + $0x8] sm:$0xff]
    %v30 = vld [vmem:[%s0 + $0x10] sm:$0xff]
    %v31 = vld [vmem:[%s0 + $0x18] sm:$0xff]
    %v32 = vld [vmem:[%s0 + $0x20] sm:$0xff]
    %v33 = vld [vmem:[%s0 + $0x28] sm:$0xff]
    %v34 = vld [vmem:[%s0 + $0x30] sm:$0xff]
    %v35 = vld [vmem:[%s0 + $0x38] sm:$0xff]
    %v36 = vld [vmem:[#allocation2] sm:$0xff]
    %v37 = vld [vmem:[#allocation2 + $0x8] sm:$0xff]
    %v38 = vld [vmem:[#allocation2 + $0x10] sm:$0xff]
    %v39 = vld [vmem:[#allocation2 + $0x18] sm:$0xff]
    %v40 = vld [vmem:[#allocation2 + $0x20] sm:$0xff]
    %v41 = vld [vmem:[#allocation2 + $0x28] sm:$0xff]
    %v42 = vld [vmem:[#allocation2 + $0x30] sm:$0xff]
    %v43 = vld [vmem:[#allocation2 + $0x38] sm:$0xff]
    %v44 = vld [vmem:[#allocation2 + $0x40] sm:$0xff]
    %v45 = vld [vmem:[#allocation2 + $0x48] sm:$0xff]
    %v46 = vld [vmem:[#allocation2 + $0x50] sm:$0xff]
    %v47 = vld [vmem:[#allocation2 + $0x58] sm:$0xff]
    %v48 = vld [vmem:[#allocation2 + $0x60] sm:$0xff]
    %v49 = vld [vmem:[#allocation2 + $0x68] sm:$0xff]
    %v50 = vld [vmem:[#allocation2 + $0x70] sm:$0xff]
    %v51 = vld [vmem:[#allocation2 + $0x78] sm:$0xff]
    %v52 = vld [vmem:[#allocation2 + $0x80] sm:$0xff]
    %v53 = vld [vmem:[#allocation2 + $0x88] sm:$0xff]
    %v54 = vld [vmem:[#allocation2 + $0x90] sm:$0xff]
    %v55 = vld [vmem:[#allocation2 + $0x98] sm:$0xff]
    %v56 = vld [vmem:[#allocation2 + $0xa0] sm:$0xff]
    %v57 = vld [vmem:[#allocation2 + $0xa8] sm:$0xff]
    %v58 = vld [vmem:[#allocation2 + $0xb0] sm:$0xff]
    %v59 = vld [vmem:[#allocation2 + $0xb8] sm:$0xff]
    %v60 = vld [vmem:[#allocation2 + $0xc0] sm:$0xff]
    %v61 = vld [vmem:[#allocation2 + $0xc8] sm:$0xff]
    %v62 = vld [vmem:[#allocation2 + $0xd0] sm:$0xff]
    %v63 = vld [vmem:[#allocation2 + $0xd8] sm:$0xff]
    %v64 = vld [vmem:[#allocation2 + $0xe0] sm:$0xff]
    %v65 = vld [vmem:[#allocation2 + $0xe8] sm:$0xff]
    %v66 = vld [vmem:[#allocation2 + $0xf0] sm:$0xff]
    %v67 = vld [vmem:[#allocation2 + $0xf8] sm:$0xff]
    %v68 = vld [vmem:[#allocation2 + $0x100] sm:$0xff]
    %v69 = vld [vmem:[#allocation2 + $0x108] sm:$0xff]
    %v70 = vld [vmem:[#allocation2 + $0x110] sm:$0xff]
    %v71 = vld [vmem:[#allocation2 + $0x118] sm:$0xff]
    %v72 = vld [vmem:[#allocation2 + $0x120] sm:$0xff]
    %v73 = vld [vmem:[#allocation2 + $0x128] sm:$0xff]
    %v74 = vld [vmem:[#allocation2 + $0x130] sm:$0xff]
    %v75 = vld [vmem:[#allocation2 + $0x138] sm:$0xff]
    %v76 = vld [vmem:[#allocation2 + $0x140] sm:$0xff]
    %v77 = vld [vmem:[#allocation2 + $0x148] sm:$0xff]
    %v78 = vld [vmem:[#allocation2 + $0x150] sm:$0xff]
    %v79 = vld [vmem:[#allocation2 + $0x158] sm:$0xff]
    %v80 = vld [vmem:[#allocation2 + $0x160] sm:$0xff]
    %v81 = vld [vmem:[#allocation2 + $0x168] sm:$0xff]
    %v82 = vld [vmem:[#allocation2 + $0x170] sm:$0xff]
    %v83 = vld [vmem:[#allocation2 + $0x178] sm:$0xff]
    %v84 = vld [vmem:[#allocation2 + $0x180] sm:$0xff]
    %v85 = vld [vmem:[#allocation2 + $0x188] sm:$0xff]
    %v86 = vld [vmem:[#allocation2 + $0x190] sm:$0xff]
    %v87 = vld [vmem:[#allocation2 + $0x198] sm:$0xff]
    %v88 = vld [vmem:[#allocation2 + $0x1a0] sm:$0xff]
    %v89 = vld [vmem:[#allocation2 + $0x1a8] sm:$0xff]
    %v90 = vld [vmem:[#allocation2 + $0x1b0] sm:$0xff]
    %v91 = vld [vmem:[#allocation2 + $0x1b8] sm:$0xff]
    %v92 = vld [vmem:[#allocation2 + $0x1c0] sm:$0xff]
    %v93 = vld [vmem:[#allocation2 + $0x1c8] sm:$0xff]
    %v94 = vld [vmem:[#allocation2 + $0x1d0] sm:$0xff]
    %v95 = vld [vmem:[#allocation2 + $0x1d8] sm:$0xff]
    %v96 = vld [vmem:[#allocation2 + $0x1e0] sm:$0xff]
    %v97 = vld [vmem:[#allocation2 + $0x1e8] sm:$0xff]
    %v98 = vld [vmem:[#allocation2 + $0x1f0] sm:$0xff]
    %v99 = vld [vmem:[#allocation2 + $0x1f8] sm:$0xff]
    %v100 = vld [vmem:[%s2] sm:$0xf]
    %v102 = vlaneseq
    %v103 = vshrl.u32 %v102, 7
    %v104 = vsub.s32 0, %v103
    %v105 = vrot.slane %v100, %v104
    %v106 = vlaneseq
    %v107 = vshrl.u32 %v106, 7
    %v108 = vsub.s32 1, %v107
    %v109 = vrot.slane %v100, %v108
    %v110 = vlaneseq
    %v111 = vshrl.u32 %v110, 7
    %v112 = vsub.s32 2, %v111
    %v113 = vrot.slane %v100, %v112
    %v114 = vlaneseq
    %v115 = vshrl.u32 %v114, 7
    %v116 = vsub.s32 3, %v115
    %v117 = vrot.slane %v100, %v116
    %122 = vmatprep.subr.mxu0 %v37
    %123 = vmatpush1.msra.mxu0 %v36
    %124 = vmatprep.subr.mxu0 %v41
    %125 = vmatpush1.msra.mxu0 %v40
    %126 = vmatprep.subr.mxu0 %v45
    %127 = vmatpush1.msra.mxu0 %v44
    %128 = vmatprep.subr.mxu0 %v49
    %129 = vmatpush1.msra.mxu0 %v48
    %130 = vmatprep.subr.mxu0 %v53
    %131 = vmatpush1.msra.mxu0 %v52
    %132 = vmatprep.subr.mxu0 %v57
    %133 = vmatpush1.msra.mxu0 %v56
    %134 = vmatprep.subr.mxu0 %v61
    %135 = vmatpush1.msra.mxu0 %v60
    %136 = vmatprep.subr.mxu0 %v65
    %137 = vmatpush1.msra.mxu0 %v64
    %138 = vmatprep.subr.mxu0 %v69
    %139 = vmatpush1.msra.mxu0 %v68
    %140 = vmatprep.subr.mxu0 %v73
    %141 = vmatpush1.msra.mxu0 %v72
    %142 = vmatprep.subr.mxu0 %v77
    %143 = vmatpush1.msra.mxu0 %v76
    %144 = vmatprep.subr.mxu0 %v81
    %145 = vmatpush1.msra.mxu0 %v80
    %146 = vmatprep.subr.mxu0 %v85
    %147 = vmatpush1.msra.mxu0 %v84
    %148 = vmatprep.subr.mxu0 %v89
    %149 = vmatpush1.msra.mxu0 %v88
    %150 = vmatprep.subr.mxu0 %v93
    %151 = vmatpush1.msra.mxu0 %v92
    %152 = vmatprep.subr.mxu0 %v97
    %153 = vmatpush1.msra.mxu0 %v96
    %154 = vmatprep.subr.mxu0 0.0
    %155 = vmatpush1.msra.mxu0 0.0
    %156 = vmatprep.subr.mxu0 0.0
    %157 = vmatpush1.msra.mxu0 0.0
    %158 = vmatprep.subr.mxu0 0.0
    %159 = vmatpush1.msra.mxu0 0.0
    %160 = vmatprep.subr.mxu0 0.0
    %161 = vmatpush1.msra.mxu0 0.0
    %162 = vmatprep.subr.mxu0 0.0
    %163 = vmatpush1.msra.mxu0 0.0
    %164 = vmatprep.subr.mxu0 0.0
    %165 = vmatpush1.msra.mxu0 0.0
    %166 = vmatprep.subr.mxu0 0.0
    %167 = vmatpush1.msra.mxu0 0.0
    %168 = vmatprep.subr.mxu0 0.0
    %169 = vmatpush1.msra.mxu0 0.0
    %170 = vmatprep.subr.mxu0 0.0
    %171 = vmatpush1.msra.mxu0 0.0
    %172 = vmatprep.subr.mxu0 0.0
    %173 = vmatpush1.msra.mxu0 0.0
    %174 = vmatprep.subr.mxu0 0.0
    %175 = vmatpush1.msra.mxu0 0.0
    %176 = vmatprep.subr.mxu0 0.0
    %177 = vmatpush1.msra.mxu0 0.0
    %178 = vmatprep.subr.mxu0 0.0
    %179 = vmatpush1.msra.mxu0 0.0
    %180 = vmatprep.subr.mxu0 0.0
    %181 = vmatpush1.msra.mxu0 0.0
    %182 = vmatprep.subr.mxu0 0.0
    %183 = vmatpush1.msra.mxu0 0.0
    %184 = vmatprep.subr.mxu0 0.0
    %185 = vmatpush1.msra.mxu0 0.0
    %186 = vmatprep.mubr.f32.mxu0 0.0
    %187 = vmatmul.mubr.f32.gmra.mrb[0].mxu0 %v28
    %v188 = vpop.f32.mrb[0].mxu0
    %v189 = vadd.f32 %v105, %v188
    %v190 = vpop.f32.mrb[0].mxu0
    %v191 = vadd.f32 %v109, %v190
    %192 = vmatprep.mubr.f32.mxu0 0.0
    %193 = vmatmul.mubr.f32.gmra.mrb[0].mxu0 %v29
    %v194 = vpop.f32.mrb[0].mxu0
    %v195 = vadd.f32 %v105, %v194
    %v196 = vpop.f32.mrb[0].mxu0
    %v197 = vadd.f32 %v109, %v196
    %198 = vmatprep.mubr.f32.mxu0 0.0
    %199 = vmatmul.mubr.f32.gmra.mrb[0].mxu0 %v30
    %v200 = vpop.f32.mrb[0].mxu0
    %v201 = vadd.f32 %v105, %v200
    %v202 = vpop.f32.mrb[0].mxu0
    %v203 = vadd.f32 %v109, %v202
    %204 = vmatprep.mubr.f32.mxu0 0.0
    %205 = vmatmul.mubr.f32.gmra.mrb[0].mxu0 %v31
    %v206 = vpop.f32.mrb[0].mxu0
    %v207 = vadd.f32 %v105, %v206
    %v208 = vpop.f32.mrb[0].mxu0
    %v209 = vadd.f32 %v109, %v208
    %210 = vmatprep.mubr.f32.mxu0 0.0
    %211 = vmatmul.mubr.f32.gmra.mrb[0].mxu0 %v32
    %v212 = vpop.f32.mrb[0].mxu0
    %v213 = vadd.f32 %v105, %v212
    %v214 = vpop.f32.mrb[0].mxu0
    %v215 = vadd.f32 %v109, %v214
    %216 = vmatprep.mubr.f32.mxu0 0.0
    %217 = vmatmul.mubr.f32.gmra.mrb[0].mxu0 %v33
    %v218 = vpop.f32.mrb[0].mxu0
    %v219 = vadd.f32 %v105, %v218
    %v220 = vpop.f32.mrb[0].mxu0
    %v221 = vadd.f32 %v109, %v220
    %222 = vmatprep.mubr.f32.mxu0 0.0
    %223 = vmatmul.mubr.f32.gmra.mrb[0].mxu0 %v34
    %v224 = vpop.f32.mrb[0].mxu0
    %v225 = vadd.f32 %v105, %v224
    %v226 = vpop.f32.mrb[0].mxu0
    %v227 = vadd.f32 %v109, %v226
    %228 = vmatprep.mubr.f32.mxu0 0.0
    %229 = vmatmul.mubr.f32.gmra.mrb[0].mxu0 %v35
    %v230 = vpop.f32.mrb[0].mxu0
    %v231 = vadd.f32 %v105, %v230
    %v232 = vpop.f32.mrb[0].mxu0
    %v233 = vadd.f32 %v109, %v232
    %234 = vdwg.mxu0
    %235 = vmatprep.subr.mxu0 %v39
    %236 = vmatpush1.msra.mxu0 %v38
    %237 = vmatprep.subr.mxu0 %v43
    %238 = vmatpush1.msra.mxu0 %v42
    %239 = vmatprep.subr.mxu0 %v47
    %240 = vmatpush1.msra.mxu0 %v46
    %241 = vmatprep.subr.mxu0 %v51
    %242 = vmatpush1.msra.mxu0 %v50
    %243 = vmatprep.subr.mxu0 %v55
    %244 = vmatpush1.msra.mxu0 %v54
    %245 = vmatprep.subr.mxu0 %v59
    %246 = vmatpush1.msra.mxu0 %v58
    %247 = vmatprep.subr.mxu0 %v63
    %248 = vmatpush1.msra.mxu0 %v62
    %249 = vmatprep.subr.mxu0 %v67
    %250 = vmatpush1.msra.mxu0 %v66
    %251 = vmatprep.subr.mxu0 %v71
    %252 = vmatpush1.msra.mxu0 %v70
    %253 = vmatprep.subr.mxu0 %v75
    %254 = vmatpush1.msra.mxu0 %v74
    %255 = vmatprep.subr.mxu0 %v79
    %256 = vmatpush1.msra.mxu0 %v78
    %257 = vmatprep.subr.mxu0 %v83
    %258 = vmatpush1.msra.mxu0 %v82
    %259 = vmatprep.subr.mxu0 %v87
    %260 = vmatpush1.msra.mxu0 %v86
    %261 = vmatprep.subr.mxu0 %v91
    %262 = vmatpush1.msra.mxu0 %v90
    %263 = vmatprep.subr.mxu0 %v95
    %264 = vmatpush1.msra.mxu0 %v94
    %265 = vmatprep.subr.mxu0 %v99
    %266 = vmatpush1.msra.mxu0 %v98
    %267 = vmatprep.subr.mxu0 0.0
    %268 = vmatpush1.msra.mxu0 0.0
    %269 = vmatprep.subr.mxu0 0.0
    %270 = vmatpush1.msra.mxu0 0.0
    %271 = vmatprep.subr.mxu0 0.0
    %272 = vmatpush1.msra.mxu0 0.0
    %273 = vmatprep.subr.mxu0 0.0
    %274 = vmatpush1.msra.mxu0 0.0
    %275 = vmatprep.subr.mxu0 0.0
    %276 = vmatpush1.msra.mxu0 0.0
    %277 = vmatprep.subr.mxu0 0.0
    %278 = vmatpush1.msra.mxu0 0.0
    %279 = vmatprep.subr.mxu0 0.0
    %280 = vmatpush1.msra.mxu0 0.0
    %281 = vmatprep.subr.mxu0 0.0
    %282 = vmatpush1.msra.mxu0 0.0
    %283 = vmatprep.subr.mxu0 0.0
    %284 = vmatpush1.msra.mxu0 0.0
    %285 = vmatprep.subr.mxu0 0.0
    %286 = vmatpush1.msra.mxu0 0.0
    %287 = vmatprep.subr.mxu0 0.0
    %288 = vmatpush1.msra.mxu0 0.0
    %289 = vmatprep.subr.mxu0 0.0
    %290 = vmatpush1.msra.mxu0 0.0
    %291 = vmatprep.subr.mxu0 0.0
    %292 = vmatpush1.msra.mxu0 0.0
    %293 = vmatprep.subr.mxu0 0.0
    %294 = vmatpush1.msra.mxu0 0.0
    %295 = vmatprep.subr.mxu0 0.0
    %296 = vmatpush1.msra.mxu0 0.0
    %297 = vmatprep.subr.mxu0 0.0
    %298 = vmatpush1.msra.mxu0 0.0
    %299 = vmatprep.mubr.f32.mxu0 0.0
    %300 = vmatmul.mubr.f32.gmra.mrb[0].mxu0 %v28
    %v301 = vpop.f32.mrb[0].mxu0
    %v302 = vadd.f32 %v113, %v301
    %v303 = vpop.f32.mrb[0].mxu0
    %v304 = vadd.f32 %v117, %v303
    %305 = vmatprep.mubr.f32.mxu0 0.0
    %306 = vmatmul.mubr.f32.gmra.mrb[0].mxu0 %v29
    %v307 = vpop.f32.mrb[0].mxu0
    %v308 = vadd.f32 %v113, %v307
    %v309 = vpop.f32.mrb[0].mxu0
    %v310 = vadd.f32 %v117, %v309
    %311 = vmatprep.mubr.f32.mxu0 0.0
    %312 = vmatmul.mubr.f32.gmra.mrb[0].mxu0 %v30
    %v313 = vpop.f32.mrb[0].mxu0
    %v314 = vadd.f32 %v113, %v313
    %v315 = vpop.f32.mrb[0].mxu0
    %v316 = vadd.f32 %v117, %v315
    %317 = vmatprep.mubr.f32.mxu0 0.0
    %318 = vmatmul.mubr.f32.gmra.mrb[0].mxu0 %v31
    %v319 = vpop.f32.mrb[0].mxu0
    %v320 = vadd.f32 %v113, %v319
    %v321 = vpop.f32.mrb[0].mxu0
    %v322 = vadd.f32 %v117, %v321
    %323 = vmatprep.mubr.f32.mxu0 0.0
    %324 = vmatmul.mubr.f32.gmra.mrb[0].mxu0 %v32
    %v325 = vpop.f32.mrb[0].mxu0
    %v326 = vadd.f32 %v113, %v325
    %v327 = vpop.f32.mrb[0].mxu0
    %v328 = vadd.f32 %v117, %v327
    %329 = vmatprep.mubr.f32.mxu0 0.0
    %330 = vmatmul.mubr.f32.gmra.mrb[0].mxu0 %v33
    %v331 = vpop.f32.mrb[0].mxu0
    %v332 = vadd.f32 %v113, %v331
    %v333 = vpop.f32.mrb[0].mxu0
    %v334 = vadd.f32 %v117, %v333
    %335 = vmatprep.mubr.f32.mxu0 0.0
    %336 = vmatmul.mubr.f32.gmra.mrb[0].mxu0 %v34
    %v337 = vpop.f32.mrb[0].mxu0
    %v338 = vadd.f32 %v113, %v337
    %v339 = vpop.f32.mrb[0].mxu0
    %v340 = vadd.f32 %v117, %v339
    %341 = vmatprep.mubr.f32.mxu0 0.0
    %342 = vmatmul.mubr.f32.gmra.mrb[0].mxu0 %v35
    %v343 = vpop.f32.mrb[0].mxu0
    %v344 = vadd.f32 %v113, %v343
    %v345 = vpop.f32.mrb[0].mxu0
    %v346 = vadd.f32 %v117, %v345
    %347 = vdwg.mxu0
    %348 = vst [vmem:[%s3] sm:$0xff] %v189
    %349 = vst [vmem:[%s3 + $0x8] sm:$0xff] %v191
    %350 = vst [vmem:[%s3 + $0x10] sm:$0xff] %v302
    %351 = vst [vmem:[%s3 + $0x18] sm:$0xff] %v304
    %352 = vst [vmem:[%s3 + $0x20] sm:$0xff] %v195
    %353 = vst [vmem:[%s3 + $0x28] sm:$0xff] %v197
    %354 = vst [vmem:[%s3 + $0x30] sm:$0xff] %v308
    %355 = vst [vmem:[%s3 + $0x38] sm:$0xff] %v310
    %356 = vst [vmem:[%s3 + $0x40] sm:$0xff] %v201
    %357 = vst [vmem:[%s3 + $0x48] sm:$0xff] %v203
    %358 = vst [vmem:[%s3 + $0x50] sm:$0xff] %v314
    %359 = vst [vmem:[%s3 + $0x58] sm:$0xff] %v316
    %360 = vst [vmem:[%s3 + $0x60] sm:$0xff] %v207
    %361 = vst [vmem:[%s3 + $0x68] sm:$0xff] %v209
    %362 = vst [vmem:[%s3 + $0x70] sm:$0xff] %v320
    %363 = vst [vmem:[%s3 + $0x78] sm:$0xff] %v322
    %364 = vst [vmem:[%s3 + $0x80] sm:$0xff] %v213
    %365 = vst [vmem:[%s3 + $0x88] sm:$0xff] %v215
    %366 = vst [vmem:[%s3 + $0x90] sm:$0xff] %v326
    %367 = vst [vmem:[%s3 + $0x98] sm:$0xff] %v328
    %368 = vst [vmem:[%s3 + $0xa0] sm:$0xff] %v219
    %369 = vst [vmem:[%s3 + $0xa8] sm:$0xff] %v221
    %370 = vst [vmem:[%s3 + $0xb0] sm:$0xff] %v332
    %371 = vst [vmem:[%s3 + $0xb8] sm:$0xff] %v334
    %372 = vst [vmem:[%s3 + $0xc0] sm:$0xff] %v225
    %373 = vst [vmem:[%s3 + $0xc8] sm:$0xff] %v227
    %374 = vst [vmem:[%s3 + $0xd0] sm:$0xff] %v338
    %375 = vst [vmem:[%s3 + $0xd8] sm:$0xff] %v340
    %376 = vst [vmem:[%s3 + $0xe0] sm:$0xff] %v231
    %377 = vst [vmem:[%s3 + $0xe8] sm:$0xff] %v233
    %378 = vst [vmem:[%s3 + $0xf0] sm:$0xff] %v344
    %379 = vst [vmem:[%s3 + $0xf8] sm:$0xff] %v346
    // Predicated region
    $region18: #{rnn_base_forward.6} parent=1 // pred_check
      _
    $region19: #{rnn_base_forward.6} parent=1 // pred_check_branch
      %381 = sbr.rel (0) target = $region21
    $region20: #{rnn_base_forward.6} parent=1 // pred_region
      _
    $region21: #{rnn_base_forward.6} parent=1 // pred_fallthru
      _
    // Predicated region
    $region22: #{rnn_base_forward.6} parent=1 // pred_check
      _
    $region23: #{rnn_base_forward.6} parent=1 // pred_check_branch
      %383 = sbr.rel (0) target = $region25
    $region24: #{rnn_base_forward.6} parent=1 // pred_region
      _
    $region25: #{rnn_base_forward.6} parent=1 // pred_fallthru
      _
    %384 = vsyncpa [#allocation3], 1

// kernel: rnn_base_forward.8
$region0: #{rnn_base_forward.8}
  #allocation0 [shape = 'u32[]', space=smem, size = 0x4, offset = 0x4, fixed_abs, tag = 'smem constant byte address 0x4 - core index']
  #allocation1 [shape = 'u32[144,128]{1,0:T(1,128)}', space=vmem, size = 0x12000, scoped, tag = 'internal scratch']
  %s0 = inlined_call_operand.vmem [shape: f32[64,128], index: 0, kind: input, shape index: {}]
  %s1 = inlined_call_operand.vmem [shape: f32[128,512], index: 1, kind: input, shape index: {}]
  %s2 = inlined_call_operand.vmem [shape: f32[1,512], index: 2, kind: input, shape index: {}]
  %s3 = inlined_call_operand.vmem [shape: f32[64,512], index: 3, kind: output, shape index: {}]
  %s4 = sld [smem:[#allocation0]]
  $region22: #{rnn_base_forward.8} parent=0
    _
  %s6 = ssub.s32 1, %s4
  %s7 = scalar_select 0, %s6, %s4
  // Predicated region
  $region2: #{rnn_base_forward.8} parent=0 // pred_check
    _
  $region3: #{rnn_base_forward.8} parent=0 // pred_check_branch
    %9 = sbr.rel (0) target = $region5
  $region4: #{rnn_base_forward.8} parent=0 // pred_region
    _
  $region5: #{rnn_base_forward.8} parent=0 // pred_fallthru
    _
  // Predicated region
  $region6: #{rnn_base_forward.8} parent=0 // pred_check
    _
  $region7: #{rnn_base_forward.8} parent=0 // pred_check_branch
    %11 = sbr.rel (0) target = $region9
  $region8: #{rnn_base_forward.8} parent=0 // pred_region
    _
  $region9: #{rnn_base_forward.8} parent=0 // pred_fallthru
    _
  // Predicated region
  $region10: #{rnn_base_forward.8} parent=0 // pred_check
    _
  $region11: #{rnn_base_forward.8} parent=0 // pred_check_branch
    %13 = sbr.rel (0) target = $region13
  $region12: #{rnn_base_forward.8} parent=0 // pred_region
    _
  $region13: #{rnn_base_forward.8} parent=0 // pred_fallthru
    _
  %v14 = vld [vmem:[%s0] sm:$0xff]
  %v15 = vld [vmem:[%s0 + $0x8] sm:$0xff]
  %v16 = vld [vmem:[%s0 + $0x10] sm:$0xff]
  %v17 = vld [vmem:[%s0 + $0x18] sm:$0xff]
  %v18 = vld [vmem:[%s0 + $0x20] sm:$0xff]
  %v19 = vld [vmem:[%s0 + $0x28] sm:$0xff]
  %v20 = vld [vmem:[%s0 + $0x30] sm:$0xff]
  %v21 = vld [vmem:[%s0 + $0x38] sm:$0xff]
  %v22 = vld [vmem:[%s1] sm:$0xff]
  %v23 = vld [vmem:[%s1 + $0x8] sm:$0xff]
  %v24 = vld [vmem:[%s1 + $0x10] sm:$0xff]
  %v25 = vld [vmem:[%s1 + $0x18] sm:$0xff]
  %v26 = vld [vmem:[%s1 + $0x20] sm:$0xff]
  %v27 = vld [vmem:[%s1 + $0x28] sm:$0xff]
  %v28 = vld [vmem:[%s1 + $0x30] sm:$0xff]
  %v29 = vld [vmem:[%s1 + $0x38] sm:$0xff]
  %v30 = vld [vmem:[%s1 + $0x40] sm:$0xff]
  %v31 = vld [vmem:[%s1 + $0x48] sm:$0xff]
  %v32 = vld [vmem:[%s1 + $0x50] sm:$0xff]
  %v33 = vld [vmem:[%s1 + $0x58] sm:$0xff]
  %v34 = vld [vmem:[%s1 + $0x60] sm:$0xff]
  %v35 = vld [vmem:[%s1 + $0x68] sm:$0xff]
  %v36 = vld [vmem:[%s1 + $0x70] sm:$0xff]
  %v37 = vld [vmem:[%s1 + $0x78] sm:$0xff]
  %v38 = vld [vmem:[%s1 + $0x80] sm:$0xff]
  %v39 = vld [vmem:[%s1 + $0x88] sm:$0xff]
  %v40 = vld [vmem:[%s1 + $0x90] sm:$0xff]
  %v41 = vld [vmem:[%s1 + $0x98] sm:$0xff]
  %v42 = vld [vmem:[%s1 + $0xa0] sm:$0xff]
  %v43 = vld [vmem:[%s1 + $0xa8] sm:$0xff]
  %v44 = vld [vmem:[%s1 + $0xb0] sm:$0xff]
  %v45 = vld [vmem:[%s1 + $0xb8] sm:$0xff]
  %v46 = vld [vmem:[%s1 + $0xc0] sm:$0xff]
  %v47 = vld [vmem:[%s1 + $0xc8] sm:$0xff]
  %v48 = vld [vmem:[%s1 + $0xd0] sm:$0xff]
  %v49 = vld [vmem:[%s1 + $0xd8] sm:$0xff]
  %v50 = vld [vmem:[%s1 + $0xe0] sm:$0xff]
  %v51 = vld [vmem:[%s1 + $0xe8] sm:$0xff]
  %v52 = vld [vmem:[%s1 + $0xf0] sm:$0xff]
  %v53 = vld [vmem:[%s1 + $0xf8] sm:$0xff]
  %v54 = vld [vmem:[%s1 + $0x100] sm:$0xff]
  %v55 = vld [vmem:[%s1 + $0x108] sm:$0xff]
  %v56 = vld [vmem:[%s1 + $0x110] sm:$0xff]
  %v57 = vld [vmem:[%s1 + $0x118] sm:$0xff]
  %v58 = vld [vmem:[%s1 + $0x120] sm:$0xff]
  %v59 = vld [vmem:[%s1 + $0x128] sm:$0xff]
  %v60 = vld [vmem:[%s1 + $0x130] sm:$0xff]
  %v61 = vld [vmem:[%s1 + $0x138] sm:$0xff]
  %v62 = vld [vmem:[%s1 + $0x140] sm:$0xff]
  %v63 = vld [vmem:[%s1 + $0x148] sm:$0xff]
  %v64 = vld [vmem:[%s1 + $0x150] sm:$0xff]
  %v65 = vld [vmem:[%s1 + $0x158] sm:$0xff]
  %v66 = vld [vmem:[%s1 + $0x160] sm:$0xff]
  %v67 = vld [vmem:[%s1 + $0x168] sm:$0xff]
  %v68 = vld [vmem:[%s1 + $0x170] sm:$0xff]
  %v69 = vld [vmem:[%s1 + $0x178] sm:$0xff]
  %v70 = vld [vmem:[%s1 + $0x180] sm:$0xff]
  %v71 = vld [vmem:[%s1 + $0x188] sm:$0xff]
  %v72 = vld [vmem:[%s1 + $0x190] sm:$0xff]
  %v73 = vld [vmem:[%s1 + $0x198] sm:$0xff]
  %v74 = vld [vmem:[%s1 + $0x1a0] sm:$0xff]
  %v75 = vld [vmem:[%s1 + $0x1a8] sm:$0xff]
  %v76 = vld [vmem:[%s1 + $0x1b0] sm:$0xff]
  %v77 = vld [vmem:[%s1 + $0x1b8] sm:$0xff]
  %v78 = vld [vmem:[%s1 + $0x1c0] sm:$0xff]
  %v79 = vld [vmem:[%s1 + $0x1c8] sm:$0xff]
  %v80 = vld [vmem:[%s1 + $0x1d0] sm:$0xff]
  %v81 = vld [vmem:[%s1 + $0x1d8] sm:$0xff]
  %v82 = vld [vmem:[%s1 + $0x1e0] sm:$0xff]
  %v83 = vld [vmem:[%s1 + $0x1e8] sm:$0xff]
  %v84 = vld [vmem:[%s1 + $0x1f0] sm:$0xff]
  %v85 = vld [vmem:[%s1 + $0x1f8] sm:$0xff]
  %v86 = vld [vmem:[%s2] sm:$0xf]
  %v88 = vlaneseq
  %v89 = vshrl.u32 %v88, 7
  %v90 = vsub.s32 0, %v89
  %v91 = vrot.slane %v86, %v90
  %v92 = vlaneseq
  %v93 = vshrl.u32 %v92, 7
  %v94 = vsub.s32 1, %v93
  %v95 = vrot.slane %v86, %v94
  %v96 = vlaneseq
  %v97 = vshrl.u32 %v96, 7
  %v98 = vsub.s32 2, %v97
  %v99 = vrot.slane %v86, %v98
  %v100 = vlaneseq
  %v101 = vshrl.u32 %v100, 7
  %v102 = vsub.s32 3, %v101
  %v103 = vrot.slane %v86, %v102
  %108 = vmatprep.subr.mxu0 %v23
  %109 = vmatpush1.msra.mxu0 %v22
  %110 = vmatprep.subr.mxu0 %v27
  %111 = vmatpush1.msra.mxu0 %v26
  %112 = vmatprep.subr.mxu0 %v31
  %113 = vmatpush1.msra.mxu0 %v30
  %114 = vmatprep.subr.mxu0 %v35
  %115 = vmatpush1.msra.mxu0 %v34
  %116 = vmatprep.subr.mxu0 %v39
  %117 = vmatpush1.msra.mxu0 %v38
  %118 = vmatprep.subr.mxu0 %v43
  %119 = vmatpush1.msra.mxu0 %v42
  %120 = vmatprep.subr.mxu0 %v47
  %121 = vmatpush1.msra.mxu0 %v46
  %122 = vmatprep.subr.mxu0 %v51
  %123 = vmatpush1.msra.mxu0 %v50
  %124 = vmatprep.subr.mxu0 %v55
  %125 = vmatpush1.msra.mxu0 %v54
  %126 = vmatprep.subr.mxu0 %v59
  %127 = vmatpush1.msra.mxu0 %v58
  %128 = vmatprep.subr.mxu0 %v63
  %129 = vmatpush1.msra.mxu0 %v62
  %130 = vmatprep.subr.mxu0 %v67
  %131 = vmatpush1.msra.mxu0 %v66
  %132 = vmatprep.subr.mxu0 %v71
  %133 = vmatpush1.msra.mxu0 %v70
  %134 = vmatprep.subr.mxu0 %v75
  %135 = vmatpush1.msra.mxu0 %v74
  %136 = vmatprep.subr.mxu0 %v79
  %137 = vmatpush1.msra.mxu0 %v78
  %138 = vmatprep.subr.mxu0 %v83
  %139 = vmatpush1.msra.mxu0 %v82
  %140 = vmatprep.subr.mxu0 0.0
  %141 = vmatpush1.msra.mxu0 0.0
  %142 = vmatprep.subr.mxu0 0.0
  %143 = vmatpush1.msra.mxu0 0.0
  %144 = vmatprep.subr.mxu0 0.0
  %145 = vmatpush1.msra.mxu0 0.0
  %146 = vmatprep.subr.mxu0 0.0
  %147 = vmatpush1.msra.mxu0 0.0
  %148 = vmatprep.subr.mxu0 0.0
  %149 = vmatpush1.msra.mxu0 0.0
  %150 = vmatprep.subr.mxu0 0.0
  %151 = vmatpush1.msra.mxu0 0.0
  %152 = vmatprep.subr.mxu0 0.0
  %153 = vmatpush1.msra.mxu0 0.0
  %154 = vmatprep.subr.mxu0 0.0
  %155 = vmatpush1.msra.mxu0 0.0
  %156 = vmatprep.subr.mxu0 0.0
  %157 = vmatpush1.msra.mxu0 0.0
  %158 = vmatprep.subr.mxu0 0.0
  %159 = vmatpush1.msra.mxu0 0.0
  %160 = vmatprep.subr.mxu0 0.0
  %161 = vmatpush1.msra.mxu0 0.0
  %162 = vmatprep.subr.mxu0 0.0
  %163 = vmatpush1.msra.mxu0 0.0
  %164 = vmatprep.subr.mxu0 0.0
  %165 = vmatpush1.msra.mxu0 0.0
  %166 = vmatprep.subr.mxu0 0.0
  %167 = vmatpush1.msra.mxu0 0.0
  %168 = vmatprep.subr.mxu0 0.0
  %169 = vmatpush1.msra.mxu0 0.0
  %170 = vmatprep.subr.mxu0 0.0
  %171 = vmatpush1.msra.mxu0 0.0
  %172 = vmatprep.mubr.f32.mxu0 0.0
  %173 = vmatmul.mubr.f32.gmra.mrb[0].mxu0 %v14
  %v174 = vpop.f32.mrb[0].mxu0
  %v175 = vadd.f32 %v91, %v174
  %v176 = vpop.f32.mrb[0].mxu0
  %v177 = vadd.f32 %v95, %v176
  %178 = vmatprep.mubr.f32.mxu0 0.0
  %179 = vmatmul.mubr.f32.gmra.mrb[0].mxu0 %v15
  %v180 = vpop.f32.mrb[0].mxu0
  %v181 = vadd.f32 %v91, %v180
  %v182 = vpop.f32.mrb[0].mxu0
  %v183 = vadd.f32 %v95, %v182
  %184 = vmatprep.mubr.f32.mxu0 0.0
  %185 = vmatmul.mubr.f32.gmra.mrb[0].mxu0 %v16
  %v186 = vpop.f32.mrb[0].mxu0
  %v187 = vadd.f32 %v91, %v186
  %v188 = vpop.f32.mrb[0].mxu0
  %v189 = vadd.f32 %v95, %v188
  %190 = vmatprep.mubr.f32.mxu0 0.0
  %191 = vmatmul.mubr.f32.gmra.mrb[0].mxu0 %v17
  %v192 = vpop.f32.mrb[0].mxu0
  %v193 = vadd.f32 %v91, %v192
  %v194 = vpop.f32.mrb[0].mxu0
  %v195 = vadd.f32 %v95, %v194
  %196 = vmatprep.mubr.f32.mxu0 0.0
  %197 = vmatmul.mubr.f32.gmra.mrb[0].mxu0 %v18
  %v198 = vpop.f32.mrb[0].mxu0
  %v199 = vadd.f32 %v91, %v198
  %v200 = vpop.f32.mrb[0].mxu0
  %v201 = vadd.f32 %v95, %v200
  %202 = vmatprep.mubr.f32.mxu0 0.0
  %203 = vmatmul.mubr.f32.gmra.mrb[0].mxu0 %v19
  %v204 = vpop.f32.mrb[0].mxu0
  %v205 = vadd.f32 %v91, %v204
  %v206 = vpop.f32.mrb[0].mxu0
  %v207 = vadd.f32 %v95, %v206
  %208 = vmatprep.mubr.f32.mxu0 0.0
  %209 = vmatmul.mubr.f32.gmra.mrb[0].mxu0 %v20
  %v210 = vpop.f32.mrb[0].mxu0
  %v211 = vadd.f32 %v91, %v210
  %v212 = vpop.f32.mrb[0].mxu0
  %v213 = vadd.f32 %v95, %v212
  %214 = vmatprep.mubr.f32.mxu0 0.0
  %215 = vmatmul.mubr.f32.gmra.mrb[0].mxu0 %v21
  %v216 = vpop.f32.mrb[0].mxu0
  %v217 = vadd.f32 %v91, %v216
  %v218 = vpop.f32.mrb[0].mxu0
  %v219 = vadd.f32 %v95, %v218
  %220 = vdwg.mxu0
  %221 = vmatprep.subr.mxu0 %v25
  %222 = vmatpush1.msra.mxu0 %v24
  %223 = vmatprep.subr.mxu0 %v29
  %224 = vmatpush1.msra.mxu0 %v28
  %225 = vmatprep.subr.mxu0 %v33
  %226 = vmatpush1.msra.mxu0 %v32
  %227 = vmatprep.subr.mxu0 %v37
  %228 = vmatpush1.msra.mxu0 %v36
  %229 = vmatprep.subr.mxu0 %v41
  %230 = vmatpush1.msra.mxu0 %v40
  %231 = vmatprep.subr.mxu0 %v45
  %232 = vmatpush1.msra.mxu0 %v44
  %233 = vmatprep.subr.mxu0 %v49
  %234 = vmatpush1.msra.mxu0 %v48
  %235 = vmatprep.subr.mxu0 %v53
  %236 = vmatpush1.msra.mxu0 %v52
  %237 = vmatprep.subr.mxu0 %v57
  %238 = vmatpush1.msra.mxu0 %v56
  %239 = vmatprep.subr.mxu0 %v61
  %240 = vmatpush1.msra.mxu0 %v60
  %241 = vmatprep.subr.mxu0 %v65
  %242 = vmatpush1.msra.mxu0 %v64
  %243 = vmatprep.subr.mxu0 %v69
  %244 = vmatpush1.msra.mxu0 %v68
  %245 = vmatprep.subr.mxu0 %v73
  %246 = vmatpush1.msra.mxu0 %v72
  %247 = vmatprep.subr.mxu0 %v77
  %248 = vmatpush1.msra.mxu0 %v76
  %249 = vmatprep.subr.mxu0 %v81
  %250 = vmatpush1.msra.mxu0 %v80
  %251 = vmatprep.subr.mxu0 %v85
  %252 = vmatpush1.msra.mxu0 %v84
  %253 = vmatprep.subr.mxu0 0.0
  %254 = vmatpush1.msra.mxu0 0.0
  %255 = vmatprep.subr.mxu0 0.0
  %256 = vmatpush1.msra.mxu0 0.0
  %257 = vmatprep.subr.mxu0 0.0
  %258 = vmatpush1.msra.mxu0 0.0
  %259 = vmatprep.subr.mxu0 0.0
  %260 = vmatpush1.msra.mxu0 0.0
  %261 = vmatprep.subr.mxu0 0.0
  %262 = vmatpush1.msra.mxu0 0.0
  %263 = vmatprep.subr.mxu0 0.0
  %264 = vmatpush1.msra.mxu0 0.0
  %265 = vmatprep.subr.mxu0 0.0
  %266 = vmatpush1.msra.mxu0 0.0
  %267 = vmatprep.subr.mxu0 0.0
  %268 = vmatpush1.msra.mxu0 0.0
  %269 = vmatprep.subr.mxu0 0.0
  %270 = vmatpush1.msra.mxu0 0.0
  %271 = vmatprep.subr.mxu0 0.0
  %272 = vmatpush1.msra.mxu0 0.0
  %273 = vmatprep.subr.mxu0 0.0
  %274 = vmatpush1.msra.mxu0 0.0
  %275 = vmatprep.subr.mxu0 0.0
  %276 = vmatpush1.msra.mxu0 0.0
  %277 = vmatprep.subr.mxu0 0.0
  %278 = vmatpush1.msra.mxu0 0.0
  %279 = vmatprep.subr.mxu0 0.0
  %280 = vmatpush1.msra.mxu0 0.0
  %281 = vmatprep.subr.mxu0 0.0
  %282 = vmatpush1.msra.mxu0 0.0
  %283 = vmatprep.subr.mxu0 0.0
  %284 = vmatpush1.msra.mxu0 0.0
  %285 = vmatprep.mubr.f32.mxu0 0.0
  %286 = vmatmul.mubr.f32.gmra.mrb[0].mxu0 %v14
  %v287 = vpop.f32.mrb[0].mxu0
  %v288 = vadd.f32 %v99, %v287
  %v289 = vpop.f32.mrb[0].mxu0
  %v290 = vadd.f32 %v103, %v289
  %291 = vmatprep.mubr.f32.mxu0 0.0
  %292 = vmatmul.mubr.f32.gmra.mrb[0].mxu0 %v15
  %v293 = vpop.f32.mrb[0].mxu0
  %v294 = vadd.f32 %v99, %v293
  %v295 = vpop.f32.mrb[0].mxu0
  %v296 = vadd.f32 %v103, %v295
  %297 = vmatprep.mubr.f32.mxu0 0.0
  %298 = vmatmul.mubr.f32.gmra.mrb[0].mxu0 %v16
  %v299 = vpop.f32.mrb[0].mxu0
  %v300 = vadd.f32 %v99, %v299
  %v301 = vpop.f32.mrb[0].mxu0
  %v302 = vadd.f32 %v103, %v301
  %303 = vmatprep.mubr.f32.mxu0 0.0
  %304 = vmatmul.mubr.f32.gmra.mrb[0].mxu0 %v17
  %v305 = vpop.f32.mrb[0].mxu0
  %v306 = vadd.f32 %v99, %v305
  %v307 = vpop.f32.mrb[0].mxu0
  %v308 = vadd.f32 %v103, %v307
  %309 = vmatprep.mubr.f32.mxu0 0.0
  %310 = vmatmul.mubr.f32.gmra.mrb[0].mxu0 %v18
  %v311 = vpop.f32.mrb[0].mxu0
  %v312 = vadd.f32 %v99, %v311
  %v313 = vpop.f32.mrb[0].mxu0
  %v314 = vadd.f32 %v103, %v313
  %315 = vmatprep.mubr.f32.mxu0 0.0
  %316 = vmatmul.mubr.f32.gmra.mrb[0].mxu0 %v19
  %v317 = vpop.f32.mrb[0].mxu0
  %v318 = vadd.f32 %v99, %v317
  %v319 = vpop.f32.mrb[0].mxu0
  %v320 = vadd.f32 %v103, %v319
  %321 = vmatprep.mubr.f32.mxu0 0.0
  %322 = vmatmul.mubr.f32.gmra.mrb[0].mxu0 %v20
  %v323 = vpop.f32.mrb[0].mxu0
  %v324 = vadd.f32 %v99, %v323
  %v325 = vpop.f32.mrb[0].mxu0
  %v326 = vadd.f32 %v103, %v325
  %327 = vmatprep.mubr.f32.mxu0 0.0
  %328 = vmatmul.mubr.f32.gmra.mrb[0].mxu0 %v21
  %v329 = vpop.f32.mrb[0].mxu0
  %v330 = vadd.f32 %v99, %v329
  %v331 = vpop.f32.mrb[0].mxu0
  %v332 = vadd.f32 %v103, %v331
  %333 = vdwg.mxu0
  %334 = vst [vmem:[%s3] sm:$0xff] %v175
  %335 = vst [vmem:[%s3 + $0x8] sm:$0xff] %v177
  %336 = vst [vmem:[%s3 + $0x10] sm:$0xff] %v288
  %337 = vst [vmem:[%s3 + $0x18] sm:$0xff] %v290
  %338 = vst [vmem:[%s3 + $0x20] sm:$0xff] %v181
  %339 = vst [vmem:[%s3 + $0x28] sm:$0xff] %v183
  %340 = vst [vmem:[%s3 + $0x30] sm:$0xff] %v294
  %341 = vst [vmem:[%s3 + $0x38] sm:$0xff] %v296
  %342 = vst [vmem:[%s3 + $0x40] sm:$0xff] %v187
  %343 = vst [vmem:[%s3 + $0x48] sm:$0xff] %v189
  %344 = vst [vmem:[%s3 + $0x50] sm:$0xff] %v300
  %345 = vst [vmem:[%s3 + $0x58] sm:$0xff] %v302
  %346 = vst [vmem:[%s3 + $0x60] sm:$0xff] %v193
  %347 = vst [vmem:[%s3 + $0x68] sm:$0xff] %v195
  %348 = vst [vmem:[%s3 + $0x70] sm:$0xff] %v306
  %349 = vst [vmem:[%s3 + $0x78] sm:$0xff] %v308
  %350 = vst [vmem:[%s3 + $0x80] sm:$0xff] %v199
  %351 = vst [vmem:[%s3 + $0x88] sm:$0xff] %v201
  %352 = vst [vmem:[%s3 + $0x90] sm:$0xff] %v312
  %353 = vst [vmem:[%s3 + $0x98] sm:$0xff] %v314
  %354 = vst [vmem:[%s3 + $0xa0] sm:$0xff] %v205
  %355 = vst [vmem:[%s3 + $0xa8] sm:$0xff] %v207
  %356 = vst [vmem:[%s3 + $0xb0] sm:$0xff] %v318
  %357 = vst [vmem:[%s3 + $0xb8] sm:$0xff] %v320
  %358 = vst [vmem:[%s3 + $0xc0] sm:$0xff] %v211
  %359 = vst [vmem:[%s3 + $0xc8] sm:$0xff] %v213
  %360 = vst [vmem:[%s3 + $0xd0] sm:$0xff] %v324
  %361 = vst [vmem:[%s3 + $0xd8] sm:$0xff] %v326
  %362 = vst [vmem:[%s3 + $0xe0] sm:$0xff] %v217
  %363 = vst [vmem:[%s3 + $0xe8] sm:$0xff] %v219
  %364 = vst [vmem:[%s3 + $0xf0] sm:$0xff] %v330
  %365 = vst [vmem:[%s3 + $0xf8] sm:$0xff] %v332
  // Predicated region
  $region14: #{rnn_base_forward.8} parent=0 // pred_check
    _
  $region15: #{rnn_base_forward.8} parent=0 // pred_check_branch
    %367 = sbr.rel (0) target = $region17
  $region16: #{rnn_base_forward.8} parent=0 // pred_region
    _
  $region17: #{rnn_base_forward.8} parent=0 // pred_fallthru
    _
  // Predicated region
  $region18: #{rnn_base_forward.8} parent=0 // pred_check
    _
  $region19: #{rnn_base_forward.8} parent=0 // pred_check_branch
    %369 = sbr.rel (0) target = $region21
  $region20: #{rnn_base_forward.8} parent=0 // pred_region
    _
  $region21: #{rnn_base_forward.8} parent=0 // pred_fallthru
    _

// kernel: rnn_base_forward.7
$region0: #{rnn_base_forward.7}
  #allocation0 [shape = 'u32[]', space=smem, size = 0x4, offset = 0x4, fixed_abs, tag = 'smem constant byte address 0x4 - core index']
  #allocation1 [shape = 'u32[144,128]{1,0:T(1,128)}', space=vmem, size = 0x12000, scoped, tag = 'internal scratch']
  #allocation2 [shape = 'f32[8,128]{1,0:T(8,128)}', space=vmem, size = 0x1000, scoped, tag = 'scratch operand']
  #allocation3 [shape = 'f32[8,128]{1,0:T(8,128)}', space=vmem, size = 0x1000, scoped, tag = 'scratch operand']
  %s0 = inlined_call_operand.vmem [shape: f32[8,8,512], index: 0, kind: input, shape index: {}]
  %s1 = inlined_call_operand.vmem [shape: f32[128,512], index: 1, kind: input, shape index: {}]
  %s2 = inlined_call_operand.vmem [shape: f32[8,128], index: 2, kind: input, shape index: {}]
  %s3 = inlined_call_operand.vmem [shape: f32[8,128], index: 3, kind: input, shape index: {}]
  %s4 = inlined_call_operand.vmem [shape: f32[8,8,128], index: 4, kind: output, shape index: {0}]
  %s5 = inlined_call_operand.vmem [shape: f32[8,128], index: 5, kind: output, shape index: {1}]
  %s6 = inlined_call_operand.vmem [shape: f32[8,128], index: 6, kind: output, shape index: {2}]
  %7 = xla_tuple %s4, %s5, %s6
  %s8 = sld [smem:[#allocation0]]
  $region50: #{rnn_base_forward.7} parent=0
    _
  %s10 = ssub.s32 1, %s8
  %s11 = scalar_select 0, %s10, %s8
  // Predicated region
  $region2: #{rnn_base_forward.7} parent=0 // pred_check
    _
  $region3: #{rnn_base_forward.7} parent=0 // pred_check_branch
    %13 = sbr.rel (0) target = $region5
  $region4: #{rnn_base_forward.7} parent=0 // pred_region
    _
  $region5: #{rnn_base_forward.7} parent=0 // pred_fallthru
    _
  // Predicated region
  $region6: #{rnn_base_forward.7} parent=0 // pred_check
    _
  $region7: #{rnn_base_forward.7} parent=0 // pred_check_branch
    %15 = sbr.rel (0) target = $region9
  $region8: #{rnn_base_forward.7} parent=0 // pred_region
    _
  $region9: #{rnn_base_forward.7} parent=0 // pred_fallthru
    _
  // Predicated region
  $region10: #{rnn_base_forward.7} parent=0 // pred_check
    _
  $region11: #{rnn_base_forward.7} parent=0 // pred_check_branch
    %17 = sbr.rel (0) target = $region13
  $region12: #{rnn_base_forward.7} parent=0 // pred_region
    _
  $region13: #{rnn_base_forward.7} parent=0 // pred_fallthru
    _
  // Predicated region
  $region14: #{rnn_base_forward.7} parent=0 // pred_check
    _
  $region15: #{rnn_base_forward.7} parent=0 // pred_check_branch
    %19 = sbr.rel (0) target = $region17
  $region16: #{rnn_base_forward.7} parent=0 // pred_region
    _
  $region17: #{rnn_base_forward.7} parent=0 // pred_fallthru
    _
  %p20 = scmp.eq.s32.totalorder 0, 0
  // Predicated region
  $region18: #{rnn_base_forward.7} parent=0 // pred_check
    %p21 = pneg %p20
  $region19: #{rnn_base_forward.7} parent=0 // pred_check_branch
    %23 = sbr.rel (%p21) target = $region21
  $region20: #{rnn_base_forward.7} parent=0 // pred_region
    %v24 = vld [vmem:[%s2] sm:$0xff]
    %25 = vst [vmem:[#allocation2] sm:$0xff] %v24
    %v26 = vld [vmem:[%s3] sm:$0xff]
    %27 = vst [vmem:[#allocation3] sm:$0xff] %v26
  $region21: #{rnn_base_forward.7} parent=0 // pred_fallthru
    _
  %v28 = vld [vmem:[%s1] sm:$0xff]
  %v29 = vld [vmem:[%s1 + $0x8] sm:$0xff]
  %v30 = vld [vmem:[%s1 + $0x10] sm:$0xff]
  %v31 = vld [vmem:[%s1 + $0x18] sm:$0xff]
  %v32 = vld [vmem:[%s1 + $0x20] sm:$0xff]
  %v33 = vld [vmem:[%s1 + $0x28] sm:$0xff]
  %v34 = vld [vmem:[%s1 + $0x30] sm:$0xff]
  %v35 = vld [vmem:[%s1 + $0x38] sm:$0xff]
  %v36 = vld [vmem:[%s1 + $0x40] sm:$0xff]
  %v37 = vld [vmem:[%s1 + $0x48] sm:$0xff]
  %v38 = vld [vmem:[%s1 + $0x50] sm:$0xff]
  %v39 = vld [vmem:[%s1 + $0x58] sm:$0xff]
  %v40 = vld [vmem:[%s1 + $0x60] sm:$0xff]
  %v41 = vld [vmem:[%s1 + $0x68] sm:$0xff]
  %v42 = vld [vmem:[%s1 + $0x70] sm:$0xff]
  %v43 = vld [vmem:[%s1 + $0x78] sm:$0xff]
  %v44 = vld [vmem:[%s1 + $0x80] sm:$0xff]
  %v45 = vld [vmem:[%s1 + $0x88] sm:$0xff]
  %v46 = vld [vmem:[%s1 + $0x90] sm:$0xff]
  %v47 = vld [vmem:[%s1 + $0x98] sm:$0xff]
  %v48 = vld [vmem:[%s1 + $0xa0] sm:$0xff]
  %v49 = vld [vmem:[%s1 + $0xa8] sm:$0xff]
  %v50 = vld [vmem:[%s1 + $0xb0] sm:$0xff]
  %v51 = vld [vmem:[%s1 + $0xb8] sm:$0xff]
  %v52 = vld [vmem:[%s1 + $0xc0] sm:$0xff]
  %v53 = vld [vmem:[%s1 + $0xc8] sm:$0xff]
  %v54 = vld [vmem:[%s1 + $0xd0] sm:$0xff]
  %v55 = vld [vmem:[%s1 + $0xd8] sm:$0xff]
  %v56 = vld [vmem:[%s1 + $0xe0] sm:$0xff]
  %v57 = vld [vmem:[%s1 + $0xe8] sm:$0xff]
  %v58 = vld [vmem:[%s1 + $0xf0] sm:$0xff]
  %v59 = vld [vmem:[%s1 + $0xf8] sm:$0xff]
  %v60 = vld [vmem:[%s1 + $0x100] sm:$0xff]
  %v61 = vld [vmem:[%s1 + $0x108] sm:$0xff]
  %v62 = vld [vmem:[%s1 + $0x110] sm:$0xff]
  %v63 = vld [vmem:[%s1 + $0x118] sm:$0xff]
  %v64 = vld [vmem:[%s1 + $0x120] sm:$0xff]
  %v65 = vld [vmem:[%s1 + $0x128] sm:$0xff]
  %v66 = vld [vmem:[%s1 + $0x130] sm:$0xff]
  %v67 = vld [vmem:[%s1 + $0x138] sm:$0xff]
  %v68 = vld [vmem:[%s1 + $0x140] sm:$0xff]
  %v69 = vld [vmem:[%s1 + $0x148] sm:$0xff]
  %v70 = vld [vmem:[%s1 + $0x150] sm:$0xff]
  %v71 = vld [vmem:[%s1 + $0x158] sm:$0xff]
  %v72 = vld [vmem:[%s1 + $0x160] sm:$0xff]
  %v73 = vld [vmem:[%s1 + $0x168] sm:$0xff]
  %v74 = vld [vmem:[%s1 + $0x170] sm:$0xff]
  %v75 = vld [vmem:[%s1 + $0x178] sm:$0xff]
  %v76 = vld [vmem:[%s1 + $0x180] sm:$0xff]
  %v77 = vld [vmem:[%s1 + $0x188] sm:$0xff]
  %v78 = vld [vmem:[%s1 + $0x190] sm:$0xff]
  %v79 = vld [vmem:[%s1 + $0x198] sm:$0xff]
  %v80 = vld [vmem:[%s1 + $0x1a0] sm:$0xff]
  %v81 = vld [vmem:[%s1 + $0x1a8] sm:$0xff]
  %v82 = vld [vmem:[%s1 + $0x1b0] sm:$0xff]
  %v83 = vld [vmem:[%s1 + $0x1b8] sm:$0xff]
  %v84 = vld [vmem:[%s1 + $0x1c0] sm:$0xff]
  %v85 = vld [vmem:[%s1 + $0x1c8] sm:$0xff]
  %v86 = vld [vmem:[%s1 + $0x1d0] sm:$0xff]
  %v87 = vld [vmem:[%s1 + $0x1d8] sm:$0xff]
  %v88 = vld [vmem:[%s1 + $0x1e0] sm:$0xff]
  %v89 = vld [vmem:[%s1 + $0x1e8] sm:$0xff]
  %v90 = vld [vmem:[%s1 + $0x1f0] sm:$0xff]
  %v91 = vld [vmem:[%s1 + $0x1f8] sm:$0xff]
  %v92 = vld [vmem:[#allocation2] sm:$0xff]
  %v93 = vld [vmem:[#allocation3] sm:$0xff]
  %v94 = vld [vmem:[%s0] sm:$0xff]
  %v95 = vld [vmem:[%s0 + $0x8] sm:$0xff]
  %v96 = vld [vmem:[%s0 + $0x10] sm:$0xff]
  %v97 = vld [vmem:[%s0 + $0x18] sm:$0xff]
  %98 = vmatprep.subr.mxu0 %v29
  %99 = vmatpush1.msra.mxu0 %v28
  %100 = vmatprep.subr.mxu0 %v33
  %101 = vmatpush1.msra.mxu0 %v32
  %102 = vmatprep.subr.mxu0 %v37
  %103 = vmatpush1.msra.mxu0 %v36
  %104 = vmatprep.subr.mxu0 %v41
  %105 = vmatpush1.msra.mxu0 %v40
  %106 = vmatprep.subr.mxu0 %v45
  %107 = vmatpush1.msra.mxu0 %v44
  %108 = vmatprep.subr.mxu0 %v49
  %109 = vmatpush1.msra.mxu0 %v48
  %110 = vmatprep.subr.mxu0 %v53
  %111 = vmatpush1.msra.mxu0 %v52
  %112 = vmatprep.subr.mxu0 %v57
  %113 = vmatpush1.msra.mxu0 %v56
  %114 = vmatprep.subr.mxu0 %v61
  %115 = vmatpush1.msra.mxu0 %v60
  %116 = vmatprep.subr.mxu0 %v65
  %117 = vmatpush1.msra.mxu0 %v64
  %118 = vmatprep.subr.mxu0 %v69
  %119 = vmatpush1.msra.mxu0 %v68
  %120 = vmatprep.subr.mxu0 %v73
  %121 = vmatpush1.msra.mxu0 %v72
  %122 = vmatprep.subr.mxu0 %v77
  %123 = vmatpush1.msra.mxu0 %v76
  %124 = vmatprep.subr.mxu0 %v81
  %125 = vmatpush1.msra.mxu0 %v80
  %126 = vmatprep.subr.mxu0 %v85
  %127 = vmatpush1.msra.mxu0 %v84
  %128 = vmatprep.subr.mxu0 %v89
  %129 = vmatpush1.msra.mxu0 %v88
  %130 = vmatprep.subr.mxu0 0.0
  %131 = vmatpush1.msra.mxu0 0.0
  %132 = vmatprep.subr.mxu0 0.0
  %133 = vmatpush1.msra.mxu0 0.0
  %134 = vmatprep.subr.mxu0 0.0
  %135 = vmatpush1.msra.mxu0 0.0
  %136 = vmatprep.subr.mxu0 0.0
  %137 = vmatpush1.msra.mxu0 0.0
  %138 = vmatprep.subr.mxu0 0.0
  %139 = vmatpush1.msra.mxu0 0.0
  %140 = vmatprep.subr.mxu0 0.0
  %141 = vmatpush1.msra.mxu0 0.0
  %142 = vmatprep.subr.mxu0 0.0
  %143 = vmatpush1.msra.mxu0 0.0
  %144 = vmatprep.subr.mxu0 0.0
  %145 = vmatpush1.msra.mxu0 0.0
  %146 = vmatprep.subr.mxu0 0.0
  %147 = vmatpush1.msra.mxu0 0.0
  %148 = vmatprep.subr.mxu0 0.0
  %149 = vmatpush1.msra.mxu0 0.0
  %150 = vmatprep.subr.mxu0 0.0
  %151 = vmatpush1.msra.mxu0 0.0
  %152 = vmatprep.subr.mxu0 0.0
  %153 = vmatpush1.msra.mxu0 0.0
  %154 = vmatprep.subr.mxu0 0.0
  %155 = vmatpush1.msra.mxu0 0.0
  %156 = vmatprep.subr.mxu0 0.0
  %157 = vmatpush1.msra.mxu0 0.0
  %158 = vmatprep.subr.mxu0 0.0
  %159 = vmatpush1.msra.mxu0 0.0
  %160 = vmatprep.subr.mxu0 0.0
  %161 = vmatpush1.msra.mxu0 0.0
  %162 = vmatprep.mubr.f32.mxu0 0.0
  %163 = vmatmul.mubr.f32.gmra.mrb[0].mxu0 %v92
  %v164 = vpop.f32.mrb[0].mxu0
  %v165 = vadd.f32 0.0, %v164
  %v166 = vpop.f32.mrb[0].mxu0
  %v167 = vadd.f32 0.0, %v166
  %168 = vdwg.mxu0
  %169 = vmatprep.subr.mxu0 %v31
  %170 = vmatpush1.msra.mxu0 %v30
  %171 = vmatprep.subr.mxu0 %v35
  %172 = vmatpush1.msra.mxu0 %v34
  %173 = vmatprep.subr.mxu0 %v39
  %174 = vmatpush1.msra.mxu0 %v38
  %175 = vmatprep.subr.mxu0 %v43
  %176 = vmatpush1.msra.mxu0 %v42
  %177 = vmatprep.subr.mxu0 %v47
  %178 = vmatpush1.msra.mxu0 %v46
  %179 = vmatprep.subr.mxu0 %v51
  %180 = vmatpush1.msra.mxu0 %v50
  %181 = vmatprep.subr.mxu0 %v55
  %182 = vmatpush1.msra.mxu0 %v54
  %183 = vmatprep.subr.mxu0 %v59
  %184 = vmatpush1.msra.mxu0 %v58
  %185 = vmatprep.subr.mxu0 %v63
  %186 = vmatpush1.msra.mxu0 %v62
  %187 = vmatprep.subr.mxu0 %v67
  %188 = vmatpush1.msra.mxu0 %v66
  %189 = vmatprep.subr.mxu0 %v71
  %190 = vmatpush1.msra.mxu0 %v70
  %191 = vmatprep.subr.mxu0 %v75
  %192 = vmatpush1.msra.mxu0 %v74
  %193 = vmatprep.subr.mxu0 %v79
  %194 = vmatpush1.msra.mxu0 %v78
  %195 = vmatprep.subr.mxu0 %v83
  %196 = vmatpush1.msra.mxu0 %v82
  %197 = vmatprep.subr.mxu0 %v87
  %198 = vmatpush1.msra.mxu0 %v86
  %199 = vmatprep.subr.mxu0 %v91
  %200 = vmatpush1.msra.mxu0 %v90
  %201 = vmatprep.subr.mxu0 0.0
  %202 = vmatpush1.msra.mxu0 0.0
  %203 = vmatprep.subr.mxu0 0.0
  %204 = vmatpush1.msra.mxu0 0.0
  %205 = vmatprep.subr.mxu0 0.0
  %206 = vmatpush1.msra.mxu0 0.0
  %207 = vmatprep.subr.mxu0 0.0
  %208 = vmatpush1.msra.mxu0 0.0
  %209 = vmatprep.subr.mxu0 0.0
  %210 = vmatpush1.msra.mxu0 0.0
  %211 = vmatprep.subr.mxu0 0.0
  %212 = vmatpush1.msra.mxu0 0.0
  %213 = vmatprep.subr.mxu0 0.0
  %214 = vmatpush1.msra.mxu0 0.0
  %215 = vmatprep.subr.mxu0 0.0
  %216 = vmatpush1.msra.mxu0 0.0
  %217 = vmatprep.subr.mxu0 0.0
  %218 = vmatpush1.msra.mxu0 0.0
  %219 = vmatprep.subr.mxu0 0.0
  %220 = vmatpush1.msra.mxu0 0.0
  %221 = vmatprep.subr.mxu0 0.0
  %222 = vmatpush1.msra.mxu0 0.0
  %223 = vmatprep.subr.mxu0 0.0
  %224 = vmatpush1.msra.mxu0 0.0
  %225 = vmatprep.subr.mxu0 0.0
  %226 = vmatpush1.msra.mxu0 0.0
  %227 = vmatprep.subr.mxu0 0.0
  %228 = vmatpush1.msra.mxu0 0.0
  %229 = vmatprep.subr.mxu0 0.0
  %230 = vmatpush1.msra.mxu0 0.0
  %231 = vmatprep.subr.mxu0 0.0
  %232 = vmatpush1.msra.mxu0 0.0
  %233 = vmatprep.mubr.f32.mxu0 0.0
  %234 = vmatmul.mubr.f32.gmra.mrb[0].mxu0 %v92
  %v235 = vpop.f32.mrb[0].mxu0
  %v236 = vadd.f32 0.0, %v235
  %v237 = vpop.f32.mrb[0].mxu0
  %v238 = vadd.f32 0.0, %v237
  %239 = vdwg.mxu0
  %v240 = vadd.f32 %v94, %v165
  %v241 = vadd.f32 %v95, %v167
  %v242 = vadd.f32 %v96, %v236
  %v243 = vadd.f32 %v97, %v238
  %v244 = vxor.u32 %v240, 2147483648
  %v245 = vmul.f32 %v244, 1.442695
  %v246 = vpow.pop %v245
  %v247 = vadd.f32 %v246, 1.0
  %v248 = vrcp.pop %v247
  %v249 = vmul.f32 1.0, %v248
  %v250 = vxor.u32 %v241, 2147483648
  %v251 = vmul.f32 %v250, 1.442695
  %v252 = vpow.pop %v251
  %v253 = vadd.f32 %v252, 1.0
  %v254 = vrcp.pop %v253
  %v255 = vmul.f32 1.0, %v254
  %v256 = vtanh.pop %v242
  %v257 = vxor.u32 %v243, 2147483648
  %v258 = vmul.f32 %v257, 1.442695
  %v259 = vpow.pop %v258
  %v260 = vadd.f32 %v259, 1.0
  %v261 = vrcp.pop %v260
  %v262 = vmul.f32 1.0, %v261
  %v263 = vmul.f32 %v255, %v93
  %v264 = vmul.f32 %v249, %v256
  %v265 = vadd.f32 %v263, %v264
  %v266 = vtanh.pop %v265
  %v267 = vmul.f32 %v262, %v266
  %s268 = smul.u32 0, 8
  %p269 = scmp.lt.s32.totalorder %s268, 8
  %s270 = scalar_select %p269, 1, 0
  %v271 = vstv %s270
  %vm272 = vcmp.eq.s32.totalorder %v271, 1
  %v273 = vsel %vm272, %v267, %v92
  %v274 = vsel %vm272, %v265, %v93
  %275 = vst [vmem:[%s4] sm:$0xff] %v273
  %s276 = scalar_lea.vmem %s0, 32
  %v277 = vld [vmem:[%s276] sm:$0xff]
  %v278 = vld [vmem:[%s276 + $0x8] sm:$0xff]
  %v279 = vld [vmem:[%s276 + $0x10] sm:$0xff]
  %v280 = vld [vmem:[%s276 + $0x18] sm:$0xff]
  %281 = vmatprep.subr.mxu0 %v29
  %282 = vmatpush1.msra.mxu0 %v28
  %283 = vmatprep.subr.mxu0 %v33
  %284 = vmatpush1.msra.mxu0 %v32
  %285 = vmatprep.subr.mxu0 %v37
  %286 = vmatpush1.msra.mxu0 %v36
  %287 = vmatprep.subr.mxu0 %v41
  %288 = vmatpush1.msra.mxu0 %v40
  %289 = vmatprep.subr.mxu0 %v45
  %290 = vmatpush1.msra.mxu0 %v44
  %291 = vmatprep.subr.mxu0 %v49
  %292 = vmatpush1.msra.mxu0 %v48
  %293 = vmatprep.subr.mxu0 %v53
  %294 = vmatpush1.msra.mxu0 %v52
  %295 = vmatprep.subr.mxu0 %v57
  %296 = vmatpush1.msra.mxu0 %v56
  %297 = vmatprep.subr.mxu0 %v61
  %298 = vmatpush1.msra.mxu0 %v60
  %299 = vmatprep.subr.mxu0 %v65
  %300 = vmatpush1.msra.mxu0 %v64
  %301 = vmatprep.subr.mxu0 %v69
  %302 = vmatpush1.msra.mxu0 %v68
  %303 = vmatprep.subr.mxu0 %v73
  %304 = vmatpush1.msra.mxu0 %v72
  %305 = vmatprep.subr.mxu0 %v77
  %306 = vmatpush1.msra.mxu0 %v76
  %307 = vmatprep.subr.mxu0 %v81
  %308 = vmatpush1.msra.mxu0 %v80
  %309 = vmatprep.subr.mxu0 %v85
  %310 = vmatpush1.msra.mxu0 %v84
  %311 = vmatprep.subr.mxu0 %v89
  %312 = vmatpush1.msra.mxu0 %v88
  %313 = vmatprep.subr.mxu0 0.0
  %314 = vmatpush1.msra.mxu0 0.0
  %315 = vmatprep.subr.mxu0 0.0
  %316 = vmatpush1.msra.mxu0 0.0
  %317 = vmatprep.subr.mxu0 0.0
  %318 = vmatpush1.msra.mxu0 0.0
  %319 = vmatprep.subr.mxu0 0.0
  %320 = vmatpush1.msra.mxu0 0.0
  %321 = vmatprep.subr.mxu0 0.0
  %322 = vmatpush1.msra.mxu0 0.0
  %323 = vmatprep.subr.mxu0 0.0
  %324 = vmatpush1.msra.mxu0 0.0
  %325 = vmatprep.subr.mxu0 0.0
  %326 = vmatpush1.msra.mxu0 0.0
  %327 = vmatprep.subr.mxu0 0.0
  %328 = vmatpush1.msra.mxu0 0.0
  %329 = vmatprep.subr.mxu0 0.0
  %330 = vmatpush1.msra.mxu0 0.0
  %331 = vmatprep.subr.mxu0 0.0
  %332 = vmatpush1.msra.mxu0 0.0
  %333 = vmatprep.subr.mxu0 0.0
  %334 = vmatpush1.msra.mxu0 0.0
  %335 = vmatprep.subr.mxu0 0.0
  %336 = vmatpush1.msra.mxu0 0.0
  %337 = vmatprep.subr.mxu0 0.0
  %338 = vmatpush1.msra.mxu0 0.0
  %339 = vmatprep.subr.mxu0 0.0
  %340 = vmatpush1.msra.mxu0 0.0
  %341 = vmatprep.subr.mxu0 0.0
  %342 = vmatpush1.msra.mxu0 0.0
  %343 = vmatprep.subr.mxu0 0.0
  %344 = vmatpush1.msra.mxu0 0.0
  %345 = vmatprep.mubr.f32.mxu0 0.0
  %346 = vmatmul.mubr.f32.gmra.mrb[0].mxu0 %v273
  %v347 = vpop.f32.mrb[0].mxu0
  %v348 = vadd.f32 0.0, %v347
  %v349 = vpop.f32.mrb[0].mxu0
  %v350 = vadd.f32 0.0, %v349
  %351 = vdwg.mxu0
  %352 = vmatprep.subr.mxu0 %v31
  %353 = vmatpush1.msra.mxu0 %v30
  %354 = vmatprep.subr.mxu0 %v35
  %355 = vmatpush1.msra.mxu0 %v34
  %356 = vmatprep.subr.mxu0 %v39
  %357 = vmatpush1.msra.mxu0 %v38
  %358 = vmatprep.subr.mxu0 %v43
  %359 = vmatpush1.msra.mxu0 %v42
  %360 = vmatprep.subr.mxu0 %v47
  %361 = vmatpush1.msra.mxu0 %v46
  %362 = vmatprep.subr.mxu0 %v51
  %363 = vmatpush1.msra.mxu0 %v50
  %364 = vmatprep.subr.mxu0 %v55
  %365 = vmatpush1.msra.mxu0 %v54
  %366 = vmatprep.subr.mxu0 %v59
  %367 = vmatpush1.msra.mxu0 %v58
  %368 = vmatprep.subr.mxu0 %v63
  %369 = vmatpush1.msra.mxu0 %v62
  %370 = vmatprep.subr.mxu0 %v67
  %371 = vmatpush1.msra.mxu0 %v66
  %372 = vmatprep.subr.mxu0 %v71
  %373 = vmatpush1.msra.mxu0 %v70
  %374 = vmatprep.subr.mxu0 %v75
  %375 = vmatpush1.msra.mxu0 %v74
  %376 = vmatprep.subr.mxu0 %v79
  %377 = vmatpush1.msra.mxu0 %v78
  %378 = vmatprep.subr.mxu0 %v83
  %379 = vmatpush1.msra.mxu0 %v82
  %380 = vmatprep.subr.mxu0 %v87
  %381 = vmatpush1.msra.mxu0 %v86
  %382 = vmatprep.subr.mxu0 %v91
  %383 = vmatpush1.msra.mxu0 %v90
  %384 = vmatprep.subr.mxu0 0.0
  %385 = vmatpush1.msra.mxu0 0.0
  %386 = vmatprep.subr.mxu0 0.0
  %387 = vmatpush1.msra.mxu0 0.0
  %388 = vmatprep.subr.mxu0 0.0
  %389 = vmatpush1.msra.mxu0 0.0
  %390 = vmatprep.subr.mxu0 0.0
  %391 = vmatpush1.msra.mxu0 0.0
  %392 = vmatprep.subr.mxu0 0.0
  %393 = vmatpush1.msra.mxu0 0.0
  %394 = vmatprep.subr.mxu0 0.0
  %395 = vmatpush1.msra.mxu0 0.0
  %396 = vmatprep.subr.mxu0 0.0
  %397 = vmatpush1.msra.mxu0 0.0
  %398 = vmatprep.subr.mxu0 0.0
  %399 = vmatpush1.msra.mxu0 0.0
  %400 = vmatprep.subr.mxu0 0.0
  %401 = vmatpush1.msra.mxu0 0.0
  %402 = vmatprep.subr.mxu0 0.0
  %403 = vmatpush1.msra.mxu0 0.0
  %404 = vmatprep.subr.mxu0 0.0
  %405 = vmatpush1.msra.mxu0 0.0
  %406 = vmatprep.subr.mxu0 0.0
  %407 = vmatpush1.msra.mxu0 0.0
  %408 = vmatprep.subr.mxu0 0.0
  %409 = vmatpush1.msra.mxu0 0.0
  %410 = vmatprep.subr.mxu0 0.0
  %411 = vmatpush1.msra.mxu0 0.0
  %412 = vmatprep.subr.mxu0 0.0
  %413 = vmatpush1.msra.mxu0 0.0
  %414 = vmatprep.subr.mxu0 0.0
  %415 = vmatpush1.msra.mxu0 0.0
  %416 = vmatprep.mubr.f32.mxu0 0.0
  %417 = vmatmul.mubr.f32.gmra.mrb[0].mxu0 %v273
  %v418 = vpop.f32.mrb[0].mxu0
  %v419 = vadd.f32 0.0, %v418
  %v420 = vpop.f32.mrb[0].mxu0
  %v421 = vadd.f32 0.0, %v420
  %422 = vdwg.mxu0
  %v423 = vadd.f32 %v277, %v348
  %v424 = vadd.f32 %v278, %v350
  %v425 = vadd.f32 %v279, %v419
  %v426 = vadd.f32 %v280, %v421
  %v427 = vxor.u32 %v423, 2147483648
  %v428 = vmul.f32 %v427, 1.442695
  %v429 = vpow.pop %v428
  %v430 = vadd.f32 %v429, 1.0
  %v431 = vrcp.pop %v430
  %v432 = vmul.f32 1.0, %v431
  %v433 = vxor.u32 %v424, 2147483648
  %v434 = vmul.f32 %v433, 1.442695
  %v435 = vpow.pop %v434
  %v436 = vadd.f32 %v435, 1.0
  %v437 = vrcp.pop %v436
  %v438 = vmul.f32 1.0, %v437
  %v439 = vtanh.pop %v425
  %v440 = vxor.u32 %v426, 2147483648
  %v441 = vmul.f32 %v440, 1.442695
  %v442 = vpow.pop %v441
  %v443 = vadd.f32 %v442, 1.0
  %v444 = vrcp.pop %v443
  %v445 = vmul.f32 1.0, %v444
  %v446 = vmul.f32 %v438, %v274
  %v447 = vmul.f32 %v432, %v439
  %v448 = vadd.f32 %v446, %v447
  %v449 = vtanh.pop %v448
  %v450 = vmul.f32 %v445, %v449
  %s451 = sadd.s32 %s268, 1
  %p452 = scmp.lt.s32.totalorder %s451, 8
  %s453 = scalar_select %p452, 1, 0
  %v454 = vstv %s453
  %vm455 = vcmp.eq.s32.totalorder %v454, 1
  %v456 = vsel %vm455, %v450, %v273
  %v457 = vsel %vm455, %v448, %v274
  %s458 = scalar_lea.vmem %s4, 8
  %459 = vst [vmem:[%s458] sm:$0xff] %v456
  %s460 = scalar_lea.vmem %s0, 64
  %v461 = vld [vmem:[%s460] sm:$0xff]
  %v462 = vld [vmem:[%s460 + $0x8] sm:$0xff]
  %v463 = vld [vmem:[%s460 + $0x10] sm:$0xff]
  %v464 = vld [vmem:[%s460 + $0x18] sm:$0xff]
  %465 = vmatprep.subr.mxu0 %v29
  %466 = vmatpush1.msra.mxu0 %v28
  %467 = vmatprep.subr.mxu0 %v33
  %468 = vmatpush1.msra.mxu0 %v32
  %469 = vmatprep.subr.mxu0 %v37
  %470 = vmatpush1.msra.mxu0 %v36
  %471 = vmatprep.subr.mxu0 %v41
  %472 = vmatpush1.msra.mxu0 %v40
  %473 = vmatprep.subr.mxu0 %v45
  %474 = vmatpush1.msra.mxu0 %v44
  %475 = vmatprep.subr.mxu0 %v49
  %476 = vmatpush1.msra.mxu0 %v48
  %477 = vmatprep.subr.mxu0 %v53
  %478 = vmatpush1.msra.mxu0 %v52
  %479 = vmatprep.subr.mxu0 %v57
  %480 = vmatpush1.msra.mxu0 %v56
  %481 = vmatprep.subr.mxu0 %v61
  %482 = vmatpush1.msra.mxu0 %v60
  %483 = vmatprep.subr.mxu0 %v65
  %484 = vmatpush1.msra.mxu0 %v64
  %485 = vmatprep.subr.mxu0 %v69
  %486 = vmatpush1.msra.mxu0 %v68
  %487 = vmatprep.subr.mxu0 %v73
  %488 = vmatpush1.msra.mxu0 %v72
  %489 = vmatprep.subr.mxu0 %v77
  %490 = vmatpush1.msra.mxu0 %v76
  %491 = vmatprep.subr.mxu0 %v81
  %492 = vmatpush1.msra.mxu0 %v80
  %493 = vmatprep.subr.mxu0 %v85
  %494 = vmatpush1.msra.mxu0 %v84
  %495 = vmatprep.subr.mxu0 %v89
  %496 = vmatpush1.msra.mxu0 %v88
  %497 = vmatprep.subr.mxu0 0.0
  %498 = vmatpush1.msra.mxu0 0.0
  %499 = vmatprep.subr.mxu0 0.0
  %500 = vmatpush1.msra.mxu0 0.0
  %501 = vmatprep.subr.mxu0 0.0
  %502 = vmatpush1.msra.mxu0 0.0
  %503 = vmatprep.subr.mxu0 0.0
  %504 = vmatpush1.msra.mxu0 0.0
  %505 = vmatprep.subr.mxu0 0.0
  %506 = vmatpush1.msra.mxu0 0.0
  %507 = vmatprep.subr.mxu0 0.0
  %508 = vmatpush1.msra.mxu0 0.0
  %509 = vmatprep.subr.mxu0 0.0
  %510 = vmatpush1.msra.mxu0 0.0
  %511 = vmatprep.subr.mxu0 0.0
  %512 = vmatpush1.msra.mxu0 0.0
  %513 = vmatprep.subr.mxu0 0.0
  %514 = vmatpush1.msra.mxu0 0.0
  %515 = vmatprep.subr.mxu0 0.0
  %516 = vmatpush1.msra.mxu0 0.0
  %517 = vmatprep.subr.mxu0 0.0
  %518 = vmatpush1.msra.mxu0 0.0
  %519 = vmatprep.subr.mxu0 0.0
  %520 = vmatpush1.msra.mxu0 0.0
  %521 = vmatprep.subr.mxu0 0.0
  %522 = vmatpush1.msra.mxu0 0.0
  %523 = vmatprep.subr.mxu0 0.0
  %524 = vmatpush1.msra.mxu0 0.0
  %525 = vmatprep.subr.mxu0 0.0
  %526 = vmatpush1.msra.mxu0 0.0
  %527 = vmatprep.subr.mxu0 0.0
  %528 = vmatpush1.msra.mxu0 0.0
  %529 = vmatprep.mubr.f32.mxu0 0.0
  %530 = vmatmul.mubr.f32.gmra.mrb[0].mxu0 %v456
  %v531 = vpop.f32.mrb[0].mxu0
  %v532 = vadd.f32 0.0, %v531
  %v533 = vpop.f32.mrb[0].mxu0
  %v534 = vadd.f32 0.0, %v533
  %535 = vdwg.mxu0
  %536 = vmatprep.subr.mxu0 %v31
  %537 = vmatpush1.msra.mxu0 %v30
  %538 = vmatprep.subr.mxu0 %v35
  %539 = vmatpush1.msra.mxu0 %v34
  %540 = vmatprep.subr.mxu0 %v39
  %541 = vmatpush1.msra.mxu0 %v38
  %542 = vmatprep.subr.mxu0 %v43
  %543 = vmatpush1.msra.mxu0 %v42
  %544 = vmatprep.subr.mxu0 %v47
  %545 = vmatpush1.msra.mxu0 %v46
  %546 = vmatprep.subr.mxu0 %v51
  %547 = vmatpush1.msra.mxu0 %v50
  %548 = vmatprep.subr.mxu0 %v55
  %549 = vmatpush1.msra.mxu0 %v54
  %550 = vmatprep.subr.mxu0 %v59
  %551 = vmatpush1.msra.mxu0 %v58
  %552 = vmatprep.subr.mxu0 %v63
  %553 = vmatpush1.msra.mxu0 %v62
  %554 = vmatprep.subr.mxu0 %v67
  %555 = vmatpush1.msra.mxu0 %v66
  %556 = vmatprep.subr.mxu0 %v71
  %557 = vmatpush1.msra.mxu0 %v70
  %558 = vmatprep.subr.mxu0 %v75
  %559 = vmatpush1.msra.mxu0 %v74
  %560 = vmatprep.subr.mxu0 %v79
  %561 = vmatpush1.msra.mxu0 %v78
  %562 = vmatprep.subr.mxu0 %v83
  %563 = vmatpush1.msra.mxu0 %v82
  %564 = vmatprep.subr.mxu0 %v87
  %565 = vmatpush1.msra.mxu0 %v86
  %566 = vmatprep.subr.mxu0 %v91
  %567 = vmatpush1.msra.mxu0 %v90
  %568 = vmatprep.subr.mxu0 0.0
  %569 = vmatpush1.msra.mxu0 0.0
  %570 = vmatprep.subr.mxu0 0.0
  %571 = vmatpush1.msra.mxu0 0.0
  %572 = vmatprep.subr.mxu0 0.0
  %573 = vmatpush1.msra.mxu0 0.0
  %574 = vmatprep.subr.mxu0 0.0
  %575 = vmatpush1.msra.mxu0 0.0
  %576 = vmatprep.subr.mxu0 0.0
  %577 = vmatpush1.msra.mxu0 0.0
  %578 = vmatprep.subr.mxu0 0.0
  %579 = vmatpush1.msra.mxu0 0.0
  %580 = vmatprep.subr.mxu0 0.0
  %581 = vmatpush1.msra.mxu0 0.0
  %582 = vmatprep.subr.mxu0 0.0
  %583 = vmatpush1.msra.mxu0 0.0
  %584 = vmatprep.subr.mxu0 0.0
  %585 = vmatpush1.msra.mxu0 0.0
  %586 = vmatprep.subr.mxu0 0.0
  %587 = vmatpush1.msra.mxu0 0.0
  %588 = vmatprep.subr.mxu0 0.0
  %589 = vmatpush1.msra.mxu0 0.0
  %590 = vmatprep.subr.mxu0 0.0
  %591 = vmatpush1.msra.mxu0 0.0
  %592 = vmatprep.subr.mxu0 0.0
  %593 = vmatpush1.msra.mxu0 0.0
  %594 = vmatprep.subr.mxu0 0.0
  %595 = vmatpush1.msra.mxu0 0.0
  %596 = vmatprep.subr.mxu0 0.0
  %597 = vmatpush1.msra.mxu0 0.0
  %598 = vmatprep.subr.mxu0 0.0
  %599 = vmatpush1.msra.mxu0 0.0
  %600 = vmatprep.mubr.f32.mxu0 0.0
  %601 = vmatmul.mubr.f32.gmra.mrb[0].mxu0 %v456
  %v602 = vpop.f32.mrb[0].mxu0
  %v603 = vadd.f32 0.0, %v602
  %v604 = vpop.f32.mrb[0].mxu0
  %v605 = vadd.f32 0.0, %v604
  %606 = vdwg.mxu0
  %v607 = vadd.f32 %v461, %v532
  %v608 = vadd.f32 %v462, %v534
  %v609 = vadd.f32 %v463, %v603
  %v610 = vadd.f32 %v464, %v605
  %v611 = vxor.u32 %v607, 2147483648
  %v612 = vmul.f32 %v611, 1.442695
  %v613 = vpow.pop %v612
  %v614 = vadd.f32 %v613, 1.0
  %v615 = vrcp.pop %v614
  %v616 = vmul.f32 1.0, %v615
  %v617 = vxor.u32 %v608, 2147483648
  %v618 = vmul.f32 %v617, 1.442695
  %v619 = vpow.pop %v618
  %v620 = vadd.f32 %v619, 1.0
  %v621 = vrcp.pop %v620
  %v622 = vmul.f32 1.0, %v621
  %v623 = vtanh.pop %v609
  %v624 = vxor.u32 %v610, 2147483648
  %v625 = vmul.f32 %v624, 1.442695
  %v626 = vpow.pop %v625
  %v627 = vadd.f32 %v626, 1.0
  %v628 = vrcp.pop %v627
  %v629 = vmul.f32 1.0, %v628
  %v630 = vmul.f32 %v622, %v457
  %v631 = vmul.f32 %v616, %v623
  %v632 = vadd.f32 %v630, %v631
  %v633 = vtanh.pop %v632
  %v634 = vmul.f32 %v629, %v633
  %s635 = sadd.s32 %s268, 2
  %p636 = scmp.lt.s32.totalorder %s635, 8
  %s637 = scalar_select %p636, 1, 0
  %v638 = vstv %s637
  %vm639 = vcmp.eq.s32.totalorder %v638, 1
  %v640 = vsel %vm639, %v634, %v456
  %v641 = vsel %vm639, %v632, %v457
  %s642 = scalar_lea.vmem %s4, 16
  %643 = vst [vmem:[%s642] sm:$0xff] %v640
  %s644 = scalar_lea.vmem %s0, 96
  %v645 = vld [vmem:[%s644] sm:$0xff]
  %v646 = vld [vmem:[%s644 + $0x8] sm:$0xff]
  %v647 = vld [vmem:[%s644 + $0x10] sm:$0xff]
  %v648 = vld [vmem:[%s644 + $0x18] sm:$0xff]
  %649 = vmatprep.subr.mxu0 %v29
  %650 = vmatpush1.msra.mxu0 %v28
  %651 = vmatprep.subr.mxu0 %v33
  %652 = vmatpush1.msra.mxu0 %v32
  %653 = vmatprep.subr.mxu0 %v37
  %654 = vmatpush1.msra.mxu0 %v36
  %655 = vmatprep.subr.mxu0 %v41
  %656 = vmatpush1.msra.mxu0 %v40
  %657 = vmatprep.subr.mxu0 %v45
  %658 = vmatpush1.msra.mxu0 %v44
  %659 = vmatprep.subr.mxu0 %v49
  %660 = vmatpush1.msra.mxu0 %v48
  %661 = vmatprep.subr.mxu0 %v53
  %662 = vmatpush1.msra.mxu0 %v52
  %663 = vmatprep.subr.mxu0 %v57
  %664 = vmatpush1.msra.mxu0 %v56
  %665 = vmatprep.subr.mxu0 %v61
  %666 = vmatpush1.msra.mxu0 %v60
  %667 = vmatprep.subr.mxu0 %v65
  %668 = vmatpush1.msra.mxu0 %v64
  %669 = vmatprep.subr.mxu0 %v69
  %670 = vmatpush1.msra.mxu0 %v68
  %671 = vmatprep.subr.mxu0 %v73
  %672 = vmatpush1.msra.mxu0 %v72
  %673 = vmatprep.subr.mxu0 %v77
  %674 = vmatpush1.msra.mxu0 %v76
  %675 = vmatprep.subr.mxu0 %v81
  %676 = vmatpush1.msra.mxu0 %v80
  %677 = vmatprep.subr.mxu0 %v85
  %678 = vmatpush1.msra.mxu0 %v84
  %679 = vmatprep.subr.mxu0 %v89
  %680 = vmatpush1.msra.mxu0 %v88
  %681 = vmatprep.subr.mxu0 0.0
  %682 = vmatpush1.msra.mxu0 0.0
  %683 = vmatprep.subr.mxu0 0.0
  %684 = vmatpush1.msra.mxu0 0.0
  %685 = vmatprep.subr.mxu0 0.0
  %686 = vmatpush1.msra.mxu0 0.0
  %687 = vmatprep.subr.mxu0 0.0
  %688 = vmatpush1.msra.mxu0 0.0
  %689 = vmatprep.subr.mxu0 0.0
  %690 = vmatpush1.msra.mxu0 0.0
  %691 = vmatprep.subr.mxu0 0.0
  %692 = vmatpush1.msra.mxu0 0.0
  %693 = vmatprep.subr.mxu0 0.0
  %694 = vmatpush1.msra.mxu0 0.0
  %695 = vmatprep.subr.mxu0 0.0
  %696 = vmatpush1.msra.mxu0 0.0
  %697 = vmatprep.subr.mxu0 0.0
  %698 = vmatpush1.msra.mxu0 0.0
  %699 = vmatprep.subr.mxu0 0.0
  %700 = vmatpush1.msra.mxu0 0.0
  %701 = vmatprep.subr.mxu0 0.0
  %702 = vmatpush1.msra.mxu0 0.0
  %703 = vmatprep.subr.mxu0 0.0
  %704 = vmatpush1.msra.mxu0 0.0
  %705 = vmatprep.subr.mxu0 0.0
  %706 = vmatpush1.msra.mxu0 0.0
  %707 = vmatprep.subr.mxu0 0.0
  %708 = vmatpush1.msra.mxu0 0.0
  %709 = vmatprep.subr.mxu0 0.0
  %710 = vmatpush1.msra.mxu0 0.0
  %711 = vmatprep.subr.mxu0 0.0
  %712 = vmatpush1.msra.mxu0 0.0
  %713 = vmatprep.mubr.f32.mxu0 0.0
  %714 = vmatmul.mubr.f32.gmra.mrb[0].mxu0 %v640
  %v715 = vpop.f32.mrb[0].mxu0
  %v716 = vadd.f32 0.0, %v715
  %v717 = vpop.f32.mrb[0].mxu0
  %v718 = vadd.f32 0.0, %v717
  %719 = vdwg.mxu0
  %720 = vmatprep.subr.mxu0 %v31
  %721 = vmatpush1.msra.mxu0 %v30
  %722 = vmatprep.subr.mxu0 %v35
  %723 = vmatpush1.msra.mxu0 %v34
  %724 = vmatprep.subr.mxu0 %v39
  %725 = vmatpush1.msra.mxu0 %v38
  %726 = vmatprep.subr.mxu0 %v43
  %727 = vmatpush1.msra.mxu0 %v42
  %728 = vmatprep.subr.mxu0 %v47
  %729 = vmatpush1.msra.mxu0 %v46
  %730 = vmatprep.subr.mxu0 %v51
  %731 = vmatpush1.msra.mxu0 %v50
  %732 = vmatprep.subr.mxu0 %v55
  %733 = vmatpush1.msra.mxu0 %v54
  %734 = vmatprep.subr.mxu0 %v59
  %735 = vmatpush1.msra.mxu0 %v58
  %736 = vmatprep.subr.mxu0 %v63
  %737 = vmatpush1.msra.mxu0 %v62
  %738 = vmatprep.subr.mxu0 %v67
  %739 = vmatpush1.msra.mxu0 %v66
  %740 = vmatprep.subr.mxu0 %v71
  %741 = vmatpush1.msra.mxu0 %v70
  %742 = vmatprep.subr.mxu0 %v75
  %743 = vmatpush1.msra.mxu0 %v74
  %744 = vmatprep.subr.mxu0 %v79
  %745 = vmatpush1.msra.mxu0 %v78
  %746 = vmatprep.subr.mxu0 %v83
  %747 = vmatpush1.msra.mxu0 %v82
  %748 = vmatprep.subr.mxu0 %v87
  %749 = vmatpush1.msra.mxu0 %v86
  %750 = vmatprep.subr.mxu0 %v91
  %751 = vmatpush1.msra.mxu0 %v90
  %752 = vmatprep.subr.mxu0 0.0
  %753 = vmatpush1.msra.mxu0 0.0
  %754 = vmatprep.subr.mxu0 0.0
  %755 = vmatpush1.msra.mxu0 0.0
  %756 = vmatprep.subr.mxu0 0.0
  %757 = vmatpush1.msra.mxu0 0.0
  %758 = vmatprep.subr.mxu0 0.0
  %759 = vmatpush1.msra.mxu0 0.0
  %760 = vmatprep.subr.mxu0 0.0
  %761 = vmatpush1.msra.mxu0 0.0
  %762 = vmatprep.subr.mxu0 0.0
  %763 = vmatpush1.msra.mxu0 0.0
  %764 = vmatprep.subr.mxu0 0.0
  %765 = vmatpush1.msra.mxu0 0.0
  %766 = vmatprep.subr.mxu0 0.0
  %767 = vmatpush1.msra.mxu0 0.0
  %768 = vmatprep.subr.mxu0 0.0
  %769 = vmatpush1.msra.mxu0 0.0
  %770 = vmatprep.subr.mxu0 0.0
  %771 = vmatpush1.msra.mxu0 0.0
  %772 = vmatprep.subr.mxu0 0.0
  %773 = vmatpush1.msra.mxu0 0.0
  %774 = vmatprep.subr.mxu0 0.0
  %775 = vmatpush1.msra.mxu0 0.0
  %776 = vmatprep.subr.mxu0 0.0
  %777 = vmatpush1.msra.mxu0 0.0
  %778 = vmatprep.subr.mxu0 0.0
  %779 = vmatpush1.msra.mxu0 0.0
  %780 = vmatprep.subr.mxu0 0.0
  %781 = vmatpush1.msra.mxu0 0.0
  %782 = vmatprep.subr.mxu0 0.0
  %783 = vmatpush1.msra.mxu0 0.0
  %784 = vmatprep.mubr.f32.mxu0 0.0
  %785 = vmatmul.mubr.f32.gmra.mrb[0].mxu0 %v640
  %v786 = vpop.f32.mrb[0].mxu0
  %v787 = vadd.f32 0.0, %v786
  %v788 = vpop.f32.mrb[0].mxu0
  %v789 = vadd.f32 0.0, %v788
  %790 = vdwg.mxu0
  %v791 = vadd.f32 %v645, %v716
  %v792 = vadd.f32 %v646, %v718
  %v793 = vadd.f32 %v647, %v787
  %v794 = vadd.f32 %v648, %v789
  %v795 = vxor.u32 %v791, 2147483648
  %v796 = vmul.f32 %v795, 1.442695
  %v797 = vpow.pop %v796
  %v798 = vadd.f32 %v797, 1.0
  %v799 = vrcp.pop %v798
  %v800 = vmul.f32 1.0, %v799
  %v801 = vxor.u32 %v792, 2147483648
  %v802 = vmul.f32 %v801, 1.442695
  %v803 = vpow.pop %v802
  %v804 = vadd.f32 %v803, 1.0
  %v805 = vrcp.pop %v804
  %v806 = vmul.f32 1.0, %v805
  %v807 = vtanh.pop %v793
  %v808 = vxor.u32 %v794, 2147483648
  %v809 = vmul.f32 %v808, 1.442695
  %v810 = vpow.pop %v809
  %v811 = vadd.f32 %v810, 1.0
  %v812 = vrcp.pop %v811
  %v813 = vmul.f32 1.0, %v812
  %v814 = vmul.f32 %v806, %v641
  %v815 = vmul.f32 %v800, %v807
  %v816 = vadd.f32 %v814, %v815
  %v817 = vtanh.pop %v816
  %v818 = vmul.f32 %v813, %v817
  %s819 = sadd.s32 %s268, 3
  %p820 = scmp.lt.s32.totalorder %s819, 8
  %s821 = scalar_select %p820, 1, 0
  %v822 = vstv %s821
  %vm823 = vcmp.eq.s32.totalorder %v822, 1
  %v824 = vsel %vm823, %v818, %v640
  %v825 = vsel %vm823, %v816, %v641
  %s826 = scalar_lea.vmem %s4, 24
  %827 = vst [vmem:[%s826] sm:$0xff] %v824
  %s828 = scalar_lea.vmem %s0, 128
  %v829 = vld [vmem:[%s828] sm:$0xff]
  %v830 = vld [vmem:[%s828 + $0x8] sm:$0xff]
  %v831 = vld [vmem:[%s828 + $0x10] sm:$0xff]
  %v832 = vld [vmem:[%s828 + $0x18] sm:$0xff]
  %833 = vmatprep.subr.mxu0 %v29
  %834 = vmatpush1.msra.mxu0 %v28
  %835 = vmatprep.subr.mxu0 %v33
  %836 = vmatpush1.msra.mxu0 %v32
  %837 = vmatprep.subr.mxu0 %v37
  %838 = vmatpush1.msra.mxu0 %v36
  %839 = vmatprep.subr.mxu0 %v41
  %840 = vmatpush1.msra.mxu0 %v40
  %841 = vmatprep.subr.mxu0 %v45
  %842 = vmatpush1.msra.mxu0 %v44
  %843 = vmatprep.subr.mxu0 %v49
  %844 = vmatpush1.msra.mxu0 %v48
  %845 = vmatprep.subr.mxu0 %v53
  %846 = vmatpush1.msra.mxu0 %v52
  %847 = vmatprep.subr.mxu0 %v57
  %848 = vmatpush1.msra.mxu0 %v56
  %849 = vmatprep.subr.mxu0 %v61
  %850 = vmatpush1.msra.mxu0 %v60
  %851 = vmatprep.subr.mxu0 %v65
  %852 = vmatpush1.msra.mxu0 %v64
  %853 = vmatprep.subr.mxu0 %v69
  %854 = vmatpush1.msra.mxu0 %v68
  %855 = vmatprep.subr.mxu0 %v73
  %856 = vmatpush1.msra.mxu0 %v72
  %857 = vmatprep.subr.mxu0 %v77
  %858 = vmatpush1.msra.mxu0 %v76
  %859 = vmatprep.subr.mxu0 %v81
  %860 = vmatpush1.msra.mxu0 %v80
  %861 = vmatprep.subr.mxu0 %v85
  %862 = vmatpush1.msra.mxu0 %v84
  %863 = vmatprep.subr.mxu0 %v89
  %864 = vmatpush1.msra.mxu0 %v88
  %865 = vmatprep.subr.mxu0 0.0
  %866 = vmatpush1.msra.mxu0 0.0
  %867 = vmatprep.subr.mxu0 0.0
  %868 = vmatpush1.msra.mxu0 0.0
  %869 = vmatprep.subr.mxu0 0.0
  %870 = vmatpush1.msra.mxu0 0.0
  %871 = vmatprep.subr.mxu0 0.0
  %872 = vmatpush1.msra.mxu0 0.0
  %873 = vmatprep.subr.mxu0 0.0
  %874 = vmatpush1.msra.mxu0 0.0
  %875 = vmatprep.subr.mxu0 0.0
  %876 = vmatpush1.msra.mxu0 0.0
  %877 = vmatprep.subr.mxu0 0.0
  %878 = vmatpush1.msra.mxu0 0.0
  %879 = vmatprep.subr.mxu0 0.0
  %880 = vmatpush1.msra.mxu0 0.0
  %881 = vmatprep.subr.mxu0 0.0
  %882 = vmatpush1.msra.mxu0 0.0
  %883 = vmatprep.subr.mxu0 0.0
  %884 = vmatpush1.msra.mxu0 0.0
  %885 = vmatprep.subr.mxu0 0.0
  %886 = vmatpush1.msra.mxu0 0.0
  %887 = vmatprep.subr.mxu0 0.0
  %888 = vmatpush1.msra.mxu0 0.0
  %889 = vmatprep.subr.mxu0 0.0
  %890 = vmatpush1.msra.mxu0 0.0
  %891 = vmatprep.subr.mxu0 0.0
  %892 = vmatpush1.msra.mxu0 0.0
  %893 = vmatprep.subr.mxu0 0.0
  %894 = vmatpush1.msra.mxu0 0.0
  %895 = vmatprep.subr.mxu0 0.0
  %896 = vmatpush1.msra.mxu0 0.0
  %897 = vmatprep.mubr.f32.mxu0 0.0
  %898 = vmatmul.mubr.f32.gmra.mrb[0].mxu0 %v824
  %v899 = vpop.f32.mrb[0].mxu0
  %v900 = vadd.f32 0.0, %v899
  %v901 = vpop.f32.mrb[0].mxu0
  %v902 = vadd.f32 0.0, %v901
  %903 = vdwg.mxu0
  %904 = vmatprep.subr.mxu0 %v31
  %905 = vmatpush1.msra.mxu0 %v30
  %906 = vmatprep.subr.mxu0 %v35
  %907 = vmatpush1.msra.mxu0 %v34
  %908 = vmatprep.subr.mxu0 %v39
  %909 = vmatpush1.msra.mxu0 %v38
  %910 = vmatprep.subr.mxu0 %v43
  %911 = vmatpush1.msra.mxu0 %v42
  %912 = vmatprep.subr.mxu0 %v47
  %913 = vmatpush1.msra.mxu0 %v46
  %914 = vmatprep.subr.mxu0 %v51
  %915 = vmatpush1.msra.mxu0 %v50
  %916 = vmatprep.subr.mxu0 %v55
  %917 = vmatpush1.msra.mxu0 %v54
  %918 = vmatprep.subr.mxu0 %v59
  %919 = vmatpush1.msra.mxu0 %v58
  %920 = vmatprep.subr.mxu0 %v63
  %921 = vmatpush1.msra.mxu0 %v62
  %922 = vmatprep.subr.mxu0 %v67
  %923 = vmatpush1.msra.mxu0 %v66
  %924 = vmatprep.subr.mxu0 %v71
  %925 = vmatpush1.msra.mxu0 %v70
  %926 = vmatprep.subr.mxu0 %v75
  %927 = vmatpush1.msra.mxu0 %v74
  %928 = vmatprep.subr.mxu0 %v79
  %929 = vmatpush1.msra.mxu0 %v78
  %930 = vmatprep.subr.mxu0 %v83
  %931 = vmatpush1.msra.mxu0 %v82
  %932 = vmatprep.subr.mxu0 %v87
  %933 = vmatpush1.msra.mxu0 %v86
  %934 = vmatprep.subr.mxu0 %v91
  %935 = vmatpush1.msra.mxu0 %v90
  %936 = vmatprep.subr.mxu0 0.0
  %937 = vmatpush1.msra.mxu0 0.0
  %938 = vmatprep.subr.mxu0 0.0
  %939 = vmatpush1.msra.mxu0 0.0
  %940 = vmatprep.subr.mxu0 0.0
  %941 = vmatpush1.msra.mxu0 0.0
  %942 = vmatprep.subr.mxu0 0.0
  %943 = vmatpush1.msra.mxu0 0.0
  %944 = vmatprep.subr.mxu0 0.0
  %945 = vmatpush1.msra.mxu0 0.0
  %946 = vmatprep.subr.mxu0 0.0
  %947 = vmatpush1.msra.mxu0 0.0
  %948 = vmatprep.subr.mxu0 0.0
  %949 = vmatpush1.msra.mxu0 0.0
  %950 = vmatprep.subr.mxu0 0.0
  %951 = vmatpush1.msra.mxu0 0.0
  %952 = vmatprep.subr.mxu0 0.0
  %953 = vmatpush1.msra.mxu0 0.0
  %954 = vmatprep.subr.mxu0 0.0
  %955 = vmatpush1.msra.mxu0 0.0
  %956 = vmatprep.subr.mxu0 0.0
  %957 = vmatpush1.msra.mxu0 0.0
  %958 = vmatprep.subr.mxu0 0.0
  %959 = vmatpush1.msra.mxu0 0.0
  %960 = vmatprep.subr.mxu0 0.0
  %961 = vmatpush1.msra.mxu0 0.0
  %962 = vmatprep.subr.mxu0 0.0
  %963 = vmatpush1.msra.mxu0 0.0
  %964 = vmatprep.subr.mxu0 0.0
  %965 = vmatpush1.msra.mxu0 0.0
  %966 = vmatprep.subr.mxu0 0.0
  %967 = vmatpush1.msra.mxu0 0.0
  %968 = vmatprep.mubr.f32.mxu0 0.0
  %969 = vmatmul.mubr.f32.gmra.mrb[0].mxu0 %v824
  %v970 = vpop.f32.mrb[0].mxu0
  %v971 = vadd.f32 0.0, %v970
  %v972 = vpop.f32.mrb[0].mxu0
  %v973 = vadd.f32 0.0, %v972
  %974 = vdwg.mxu0
  %v975 = vadd.f32 %v829, %v900
  %v976 = vadd.f32 %v830, %v902
  %v977 = vadd.f32 %v831, %v971
  %v978 = vadd.f32 %v832, %v973
  %v979 = vxor.u32 %v975, 2147483648
  %v980 = vmul.f32 %v979, 1.442695
  %v981 = vpow.pop %v980
  %v982 = vadd.f32 %v981, 1.0
  %v983 = vrcp.pop %v982
  %v984 = vmul.f32 1.0, %v983
  %v985 = vxor.u32 %v976, 2147483648
  %v986 = vmul.f32 %v985, 1.442695
  %v987 = vpow.pop %v986
  %v988 = vadd.f32 %v987, 1.0
  %v989 = vrcp.pop %v988
  %v990 = vmul.f32 1.0, %v989
  %v991 = vtanh.pop %v977
  %v992 = vxor.u32 %v978, 2147483648
  %v993 = vmul.f32 %v992, 1.442695
  %v994 = vpow.pop %v993
  %v995 = vadd.f32 %v994, 1.0
  %v996 = vrcp.pop %v995
  %v997 = vmul.f32 1.0, %v996
  %v998 = vmul.f32 %v990, %v825
  %v999 = vmul.f32 %v984, %v991
  %v1000 = vadd.f32 %v998, %v999
  %v1001 = vtanh.pop %v1000
  %v1002 = vmul.f32 %v997, %v1001
  %s1003 = sadd.s32 %s268, 4
  %p1004 = scmp.lt.s32.totalorder %s1003, 8
  %s1005 = scalar_select %p1004, 1, 0
  %v1006 = vstv %s1005
  %vm1007 = vcmp.eq.s32.totalorder %v1006, 1
  %v1008 = vsel %vm1007, %v1002, %v824
  %v1009 = vsel %vm1007, %v1000, %v825
  %s1010 = scalar_lea.vmem %s4, 32
  %1011 = vst [vmem:[%s1010] sm:$0xff] %v1008
  %s1012 = scalar_lea.vmem %s0, 160
  %v1013 = vld [vmem:[%s1012] sm:$0xff]
  %v1014 = vld [vmem:[%s1012 + $0x8] sm:$0xff]
  %v1015 = vld [vmem:[%s1012 + $0x10] sm:$0xff]
  %v1016 = vld [vmem:[%s1012 + $0x18] sm:$0xff]
  %1017 = vmatprep.subr.mxu0 %v29
  %1018 = vmatpush1.msra.mxu0 %v28
  %1019 = vmatprep.subr.mxu0 %v33
  %1020 = vmatpush1.msra.mxu0 %v32
  %1021 = vmatprep.subr.mxu0 %v37
  %1022 = vmatpush1.msra.mxu0 %v36
  %1023 = vmatprep.subr.mxu0 %v41
  %1024 = vmatpush1.msra.mxu0 %v40
  %1025 = vmatprep.subr.mxu0 %v45
  %1026 = vmatpush1.msra.mxu0 %v44
  %1027 = vmatprep.subr.mxu0 %v49
  %1028 = vmatpush1.msra.mxu0 %v48
  %1029 = vmatprep.subr.mxu0 %v53
  %1030 = vmatpush1.msra.mxu0 %v52
  %1031 = vmatprep.subr.mxu0 %v57
  %1032 = vmatpush1.msra.mxu0 %v56
  %1033 = vmatprep.subr.mxu0 %v61
  %1034 = vmatpush1.msra.mxu0 %v60
  %1035 = vmatprep.subr.mxu0 %v65
  %1036 = vmatpush1.msra.mxu0 %v64
  %1037 = vmatprep.subr.mxu0 %v69
  %1038 = vmatpush1.msra.mxu0 %v68
  %1039 = vmatprep.subr.mxu0 %v73
  %1040 = vmatpush1.msra.mxu0 %v72
  %1041 = vmatprep.subr.mxu0 %v77
  %1042 = vmatpush1.msra.mxu0 %v76
  %1043 = vmatprep.subr.mxu0 %v81
  %1044 = vmatpush1.msra.mxu0 %v80
  %1045 = vmatprep.subr.mxu0 %v85
  %1046 = vmatpush1.msra.mxu0 %v84
  %1047 = vmatprep.subr.mxu0 %v89
  %1048 = vmatpush1.msra.mxu0 %v88
  %1049 = vmatprep.subr.mxu0 0.0
  %1050 = vmatpush1.msra.mxu0 0.0
  %1051 = vmatprep.subr.mxu0 0.0
  %1052 = vmatpush1.msra.mxu0 0.0
  %1053 = vmatprep.subr.mxu0 0.0
  %1054 = vmatpush1.msra.mxu0 0.0
  %1055 = vmatprep.subr.mxu0 0.0
  %1056 = vmatpush1.msra.mxu0 0.0
  %1057 = vmatprep.subr.mxu0 0.0
  %1058 = vmatpush1.msra.mxu0 0.0
  %1059 = vmatprep.subr.mxu0 0.0
  %1060 = vmatpush1.msra.mxu0 0.0
  %1061 = vmatprep.subr.mxu0 0.0
  %1062 = vmatpush1.msra.mxu0 0.0
  %1063 = vmatprep.subr.mxu0 0.0
  %1064 = vmatpush1.msra.mxu0 0.0
  %1065 = vmatprep.subr.mxu0 0.0
  %1066 = vmatpush1.msra.mxu0 0.0
  %1067 = vmatprep.subr.mxu0 0.0
  %1068 = vmatpush1.msra.mxu0 0.0
  %1069 = vmatprep.subr.mxu0 0.0
  %1070 = vmatpush1.msra.mxu0 0.0
  %1071 = vmatprep.subr.mxu0 0.0
  %1072 = vmatpush1.msra.mxu0 0.0
  %1073 = vmatprep.subr.mxu0 0.0
  %1074 = vmatpush1.msra.mxu0 0.0
  %1075 = vmatprep.subr.mxu0 0.0
  %1076 = vmatpush1.msra.mxu0 0.0
  %1077 = vmatprep.subr.mxu0 0.0
  %1078 = vmatpush1.msra.mxu0 0.0
  %1079 = vmatprep.subr.mxu0 0.0
  %1080 = vmatpush1.msra.mxu0 0.0
  %1081 = vmatprep.mubr.f32.mxu0 0.0
  %1082 = vmatmul.mubr.f32.gmra.mrb[0].mxu0 %v1008
  %v1083 = vpop.f32.mrb[0].mxu0
  %v1084 = vadd.f32 0.0, %v1083
  %v1085 = vpop.f32.mrb[0].mxu0
  %v1086 = vadd.f32 0.0, %v1085
  %1087 = vdwg.mxu0
  %1088 = vmatprep.subr.mxu0 %v31
  %1089 = vmatpush1.msra.mxu0 %v30
  %1090 = vmatprep.subr.mxu0 %v35
  %1091 = vmatpush1.msra.mxu0 %v34
  %1092 = vmatprep.subr.mxu0 %v39
  %1093 = vmatpush1.msra.mxu0 %v38
  %1094 = vmatprep.subr.mxu0 %v43
  %1095 = vmatpush1.msra.mxu0 %v42
  %1096 = vmatprep.subr.mxu0 %v47
  %1097 = vmatpush1.msra.mxu0 %v46
  %1098 = vmatprep.subr.mxu0 %v51
  %1099 = vmatpush1.msra.mxu0 %v50
  %1100 = vmatprep.subr.mxu0 %v55
  %1101 = vmatpush1.msra.mxu0 %v54
  %1102 = vmatprep.subr.mxu0 %v59
  %1103 = vmatpush1.msra.mxu0 %v58
  %1104 = vmatprep.subr.mxu0 %v63
  %1105 = vmatpush1.msra.mxu0 %v62
  %1106 = vmatprep.subr.mxu0 %v67
  %1107 = vmatpush1.msra.mxu0 %v66
  %1108 = vmatprep.subr.mxu0 %v71
  %1109 = vmatpush1.msra.mxu0 %v70
  %1110 = vmatprep.subr.mxu0 %v75
  %1111 = vmatpush1.msra.mxu0 %v74
  %1112 = vmatprep.subr.mxu0 %v79
  %1113 = vmatpush1.msra.mxu0 %v78
  %1114 = vmatprep.subr.mxu0 %v83
  %1115 = vmatpush1.msra.mxu0 %v82
  %1116 = vmatprep.subr.mxu0 %v87
  %1117 = vmatpush1.msra.mxu0 %v86
  %1118 = vmatprep.subr.mxu0 %v91
  %1119 = vmatpush1.msra.mxu0 %v90
  %1120 = vmatprep.subr.mxu0 0.0
  %1121 = vmatpush1.msra.mxu0 0.0
  %1122 = vmatprep.subr.mxu0 0.0
  %1123 = vmatpush1.msra.mxu0 0.0
  %1124 = vmatprep.subr.mxu0 0.0
  %1125 = vmatpush1.msra.mxu0 0.0
  %1126 = vmatprep.subr.mxu0 0.0
  %1127 = vmatpush1.msra.mxu0 0.0
  %1128 = vmatprep.subr.mxu0 0.0
  %1129 = vmatpush1.msra.mxu0 0.0
  %1130 = vmatprep.subr.mxu0 0.0
  %1131 = vmatpush1.msra.mxu0 0.0
  %1132 = vmatprep.subr.mxu0 0.0
  %1133 = vmatpush1.msra.mxu0 0.0
  %1134 = vmatprep.subr.mxu0 0.0
  %1135 = vmatpush1.msra.mxu0 0.0
  %1136 = vmatprep.subr.mxu0 0.0
  %1137 = vmatpush1.msra.mxu0 0.0
  %1138 = vmatprep.subr.mxu0 0.0
  %1139 = vmatpush1.msra.mxu0 0.0
  %1140 = vmatprep.subr.mxu0 0.0
  %1141 = vmatpush1.msra.mxu0 0.0
  %1142 = vmatprep.subr.mxu0 0.0
  %1143 = vmatpush1.msra.mxu0 0.0
  %1144 = vmatprep.subr.mxu0 0.0
  %1145 = vmatpush1.msra.mxu0 0.0
  %1146 = vmatprep.subr.mxu0 0.0
  %1147 = vmatpush1.msra.mxu0 0.0
  %1148 = vmatprep.subr.mxu0 0.0
  %1149 = vmatpush1.msra.mxu0 0.0
  %1150 = vmatprep.subr.mxu0 0.0
  %1151 = vmatpush1.msra.mxu0 0.0
  %1152 = vmatprep.mubr.f32.mxu0 0.0
  %1153 = vmatmul.mubr.f32.gmra.mrb[0].mxu0 %v1008
  %v1154 = vpop.f32.mrb[0].mxu0
  %v1155 = vadd.f32 0.0, %v1154
  %v1156 = vpop.f32.mrb[0].mxu0
  %v1157 = vadd.f32 0.0, %v1156
  %1158 = vdwg.mxu0
  %v1159 = vadd.f32 %v1013, %v1084
  %v1160 = vadd.f32 %v1014, %v1086
  %v1161 = vadd.f32 %v1015, %v1155
  %v1162 = vadd.f32 %v1016, %v1157
  %v1163 = vxor.u32 %v1159, 2147483648
  %v1164 = vmul.f32 %v1163, 1.442695
  %v1165 = vpow.pop %v1164
  %v1166 = vadd.f32 %v1165, 1.0
  %v1167 = vrcp.pop %v1166
  %v1168 = vmul.f32 1.0, %v1167
  %v1169 = vxor.u32 %v1160, 2147483648
  %v1170 = vmul.f32 %v1169, 1.442695
  %v1171 = vpow.pop %v1170
  %v1172 = vadd.f32 %v1171, 1.0
  %v1173 = vrcp.pop %v1172
  %v1174 = vmul.f32 1.0, %v1173
  %v1175 = vtanh.pop %v1161
  %v1176 = vxor.u32 %v1162, 2147483648
  %v1177 = vmul.f32 %v1176, 1.442695
  %v1178 = vpow.pop %v1177
  %v1179 = vadd.f32 %v1178, 1.0
  %v1180 = vrcp.pop %v1179
  %v1181 = vmul.f32 1.0, %v1180
  %v1182 = vmul.f32 %v1174, %v1009
  %v1183 = vmul.f32 %v1168, %v1175
  %v1184 = vadd.f32 %v1182, %v1183
  %v1185 = vtanh.pop %v1184
  %v1186 = vmul.f32 %v1181, %v1185
  %s1187 = sadd.s32 %s268, 5
  %p1188 = scmp.lt.s32.totalorder %s1187, 8
  %s1189 = scalar_select %p1188, 1, 0
  %v1190 = vstv %s1189
  %vm1191 = vcmp.eq.s32.totalorder %v1190, 1
  %v1192 = vsel %vm1191, %v1186, %v1008
  %v1193 = vsel %vm1191, %v1184, %v1009
  %s1194 = scalar_lea.vmem %s4, 40
  %1195 = vst [vmem:[%s1194] sm:$0xff] %v1192
  %s1196 = scalar_lea.vmem %s0, 192
  %v1197 = vld [vmem:[%s1196] sm:$0xff]
  %v1198 = vld [vmem:[%s1196 + $0x8] sm:$0xff]
  %v1199 = vld [vmem:[%s1196 + $0x10] sm:$0xff]
  %v1200 = vld [vmem:[%s1196 + $0x18] sm:$0xff]
  %1201 = vmatprep.subr.mxu0 %v29
  %1202 = vmatpush1.msra.mxu0 %v28
  %1203 = vmatprep.subr.mxu0 %v33
  %1204 = vmatpush1.msra.mxu0 %v32
  %1205 = vmatprep.subr.mxu0 %v37
  %1206 = vmatpush1.msra.mxu0 %v36
  %1207 = vmatprep.subr.mxu0 %v41
  %1208 = vmatpush1.msra.mxu0 %v40
  %1209 = vmatprep.subr.mxu0 %v45
  %1210 = vmatpush1.msra.mxu0 %v44
  %1211 = vmatprep.subr.mxu0 %v49
  %1212 = vmatpush1.msra.mxu0 %v48
  %1213 = vmatprep.subr.mxu0 %v53
  %1214 = vmatpush1.msra.mxu0 %v52
  %1215 = vmatprep.subr.mxu0 %v57
  %1216 = vmatpush1.msra.mxu0 %v56
  %1217 = vmatprep.subr.mxu0 %v61
  %1218 = vmatpush1.msra.mxu0 %v60
  %1219 = vmatprep.subr.mxu0 %v65
  %1220 = vmatpush1.msra.mxu0 %v64
  %1221 = vmatprep.subr.mxu0 %v69
  %1222 = vmatpush1.msra.mxu0 %v68
  %1223 = vmatprep.subr.mxu0 %v73
  %1224 = vmatpush1.msra.mxu0 %v72
  %1225 = vmatprep.subr.mxu0 %v77
  %1226 = vmatpush1.msra.mxu0 %v76
  %1227 = vmatprep.subr.mxu0 %v81
  %1228 = vmatpush1.msra.mxu0 %v80
  %1229 = vmatprep.subr.mxu0 %v85
  %1230 = vmatpush1.msra.mxu0 %v84
  %1231 = vmatprep.subr.mxu0 %v89
  %1232 = vmatpush1.msra.mxu0 %v88
  %1233 = vmatprep.subr.mxu0 0.0
  %1234 = vmatpush1.msra.mxu0 0.0
  %1235 = vmatprep.subr.mxu0 0.0
  %1236 = vmatpush1.msra.mxu0 0.0
  %1237 = vmatprep.subr.mxu0 0.0
  %1238 = vmatpush1.msra.mxu0 0.0
  %1239 = vmatprep.subr.mxu0 0.0
  %1240 = vmatpush1.msra.mxu0 0.0
  %1241 = vmatprep.subr.mxu0 0.0
  %1242 = vmatpush1.msra.mxu0 0.0
  %1243 = vmatprep.subr.mxu0 0.0
  %1244 = vmatpush1.msra.mxu0 0.0
  %1245 = vmatprep.subr.mxu0 0.0
  %1246 = vmatpush1.msra.mxu0 0.0
  %1247 = vmatprep.subr.mxu0 0.0
  %1248 = vmatpush1.msra.mxu0 0.0
  %1249 = vmatprep.subr.mxu0 0.0
  %1250 = vmatpush1.msra.mxu0 0.0
  %1251 = vmatprep.subr.mxu0 0.0
  %1252 = vmatpush1.msra.mxu0 0.0
  %1253 = vmatprep.subr.mxu0 0.0
  %1254 = vmatpush1.msra.mxu0 0.0
  %1255 = vmatprep.subr.mxu0 0.0
  %1256 = vmatpush1.msra.mxu0 0.0
  %1257 = vmatprep.subr.mxu0 0.0
  %1258 = vmatpush1.msra.mxu0 0.0
  %1259 = vmatprep.subr.mxu0 0.0
  %1260 = vmatpush1.msra.mxu0 0.0
  %1261 = vmatprep.subr.mxu0 0.0
  %1262 = vmatpush1.msra.mxu0 0.0
  %1263 = vmatprep.subr.mxu0 0.0
  %1264 = vmatpush1.msra.mxu0 0.0
  %1265 = vmatprep.mubr.f32.mxu0 0.0
  %1266 = vmatmul.mubr.f32.gmra.mrb[0].mxu0 %v1192
  %v1267 = vpop.f32.mrb[0].mxu0
  %v1268 = vadd.f32 0.0, %v1267
  %v1269 = vpop.f32.mrb[0].mxu0
  %v1270 = vadd.f32 0.0, %v1269
  %1271 = vdwg.mxu0
  %1272 = vmatprep.subr.mxu0 %v31
  %1273 = vmatpush1.msra.mxu0 %v30
  %1274 = vmatprep.subr.mxu0 %v35
  %1275 = vmatpush1.msra.mxu0 %v34
  %1276 = vmatprep.subr.mxu0 %v39
  %1277 = vmatpush1.msra.mxu0 %v38
  %1278 = vmatprep.subr.mxu0 %v43
  %1279 = vmatpush1.msra.mxu0 %v42
  %1280 = vmatprep.subr.mxu0 %v47
  %1281 = vmatpush1.msra.mxu0 %v46
  %1282 = vmatprep.subr.mxu0 %v51
  %1283 = vmatpush1.msra.mxu0 %v50
  %1284 = vmatprep.subr.mxu0 %v55
  %1285 = vmatpush1.msra.mxu0 %v54
  %1286 = vmatprep.subr.mxu0 %v59
  %1287 = vmatpush1.msra.mxu0 %v58
  %1288 = vmatprep.subr.mxu0 %v63
  %1289 = vmatpush1.msra.mxu0 %v62
  %1290 = vmatprep.subr.mxu0 %v67
  %1291 = vmatpush1.msra.mxu0 %v66
  %1292 = vmatprep.subr.mxu0 %v71
  %1293 = vmatpush1.msra.mxu0 %v70
  %1294 = vmatprep.subr.mxu0 %v75
  %1295 = vmatpush1.msra.mxu0 %v74
  %1296 = vmatprep.subr.mxu0 %v79
  %1297 = vmatpush1.msra.mxu0 %v78
  %1298 = vmatprep.subr.mxu0 %v83
  %1299 = vmatpush1.msra.mxu0 %v82
  %1300 = vmatprep.subr.mxu0 %v87
  %1301 = vmatpush1.msra.mxu0 %v86
  %1302 = vmatprep.subr.mxu0 %v91
  %1303 = vmatpush1.msra.mxu0 %v90
  %1304 = vmatprep.subr.mxu0 0.0
  %1305 = vmatpush1.msra.mxu0 0.0
  %1306 = vmatprep.subr.mxu0 0.0
  %1307 = vmatpush1.msra.mxu0 0.0
  %1308 = vmatprep.subr.mxu0 0.0
  %1309 = vmatpush1.msra.mxu0 0.0
  %1310 = vmatprep.subr.mxu0 0.0
  %1311 = vmatpush1.msra.mxu0 0.0
  %1312 = vmatprep.subr.mxu0 0.0
  %1313 = vmatpush1.msra.mxu0 0.0
  %1314 = vmatprep.subr.mxu0 0.0
  %1315 = vmatpush1.msra.mxu0 0.0
  %1316 = vmatprep.subr.mxu0 0.0
  %1317 = vmatpush1.msra.mxu0 0.0
  %1318 = vmatprep.subr.mxu0 0.0
  %1319 = vmatpush1.msra.mxu0 0.0
  %1320 = vmatprep.subr.mxu0 0.0
  %1321 = vmatpush1.msra.mxu0 0.0
  %1322 = vmatprep.subr.mxu0 0.0
  %1323 = vmatpush1.msra.mxu0 0.0
  %1324 = vmatprep.subr.mxu0 0.0
  %1325 = vmatpush1.msra.mxu0 0.0
  %1326 = vmatprep.subr.mxu0 0.0
  %1327 = vmatpush1.msra.mxu0 0.0
  %1328 = vmatprep.subr.mxu0 0.0
  %1329 = vmatpush1.msra.mxu0 0.0
  %1330 = vmatprep.subr.mxu0 0.0
  %1331 = vmatpush1.msra.mxu0 0.0
  %1332 = vmatprep.subr.mxu0 0.0
  %1333 = vmatpush1.msra.mxu0 0.0
  %1334 = vmatprep.subr.mxu0 0.0
  %1335 = vmatpush1.msra.mxu0 0.0
  %1336 = vmatprep.mubr.f32.mxu0 0.0
  %1337 = vmatmul.mubr.f32.gmra.mrb[0].mxu0 %v1192
  %v1338 = vpop.f32.mrb[0].mxu0
  %v1339 = vadd.f32 0.0, %v1338
  %v1340 = vpop.f32.mrb[0].mxu0
  %v1341 = vadd.f32 0.0, %v1340
  %1342 = vdwg.mxu0
  %v1343 = vadd.f32 %v1197, %v1268
  %v1344 = vadd.f32 %v1198, %v1270
  %v1345 = vadd.f32 %v1199, %v1339
  %v1346 = vadd.f32 %v1200, %v1341
  %v1347 = vxor.u32 %v1343, 2147483648
  %v1348 = vmul.f32 %v1347, 1.442695
  %v1349 = vpow.pop %v1348
  %v1350 = vadd.f32 %v1349, 1.0
  %v1351 = vrcp.pop %v1350
  %v1352 = vmul.f32 1.0, %v1351
  %v1353 = vxor.u32 %v1344, 2147483648
  %v1354 = vmul.f32 %v1353, 1.442695
  %v1355 = vpow.pop %v1354
  %v1356 = vadd.f32 %v1355, 1.0
  %v1357 = vrcp.pop %v1356
  %v1358 = vmul.f32 1.0, %v1357
  %v1359 = vtanh.pop %v1345
  %v1360 = vxor.u32 %v1346, 2147483648
  %v1361 = vmul.f32 %v1360, 1.442695
  %v1362 = vpow.pop %v1361
  %v1363 = vadd.f32 %v1362, 1.0
  %v1364 = vrcp.pop %v1363
  %v1365 = vmul.f32 1.0, %v1364
  %v1366 = vmul.f32 %v1358, %v1193
  %v1367 = vmul.f32 %v1352, %v1359
  %v1368 = vadd.f32 %v1366, %v1367
  %v1369 = vtanh.pop %v1368
  %v1370 = vmul.f32 %v1365, %v1369
  %s1371 = sadd.s32 %s268, 6
  %p1372 = scmp.lt.s32.totalorder %s1371, 8
  %s1373 = scalar_select %p1372, 1, 0
  %v1374 = vstv %s1373
  %vm1375 = vcmp.eq.s32.totalorder %v1374, 1
  %v1376 = vsel %vm1375, %v1370, %v1192
  %v1377 = vsel %vm1375, %v1368, %v1193
  %s1378 = scalar_lea.vmem %s4, 48
  %1379 = vst [vmem:[%s1378] sm:$0xff] %v1376
  %s1380 = scalar_lea.vmem %s0, 224
  %v1381 = vld [vmem:[%s1380] sm:$0xff]
  %v1382 = vld [vmem:[%s1380 + $0x8] sm:$0xff]
  %v1383 = vld [vmem:[%s1380 + $0x10] sm:$0xff]
  %v1384 = vld [vmem:[%s1380 + $0x18] sm:$0xff]
  %1385 = vmatprep.subr.mxu0 %v29
  %1386 = vmatpush1.msra.mxu0 %v28
  %1387 = vmatprep.subr.mxu0 %v33
  %1388 = vmatpush1.msra.mxu0 %v32
  %1389 = vmatprep.subr.mxu0 %v37
  %1390 = vmatpush1.msra.mxu0 %v36
  %1391 = vmatprep.subr.mxu0 %v41
  %1392 = vmatpush1.msra.mxu0 %v40
  %1393 = vmatprep.subr.mxu0 %v45
  %1394 = vmatpush1.msra.mxu0 %v44
  %1395 = vmatprep.subr.mxu0 %v49
  %1396 = vmatpush1.msra.mxu0 %v48
  %1397 = vmatprep.subr.mxu0 %v53
  %1398 = vmatpush1.msra.mxu0 %v52
  %1399 = vmatprep.subr.mxu0 %v57
  %1400 = vmatpush1.msra.mxu0 %v56
  %1401 = vmatprep.subr.mxu0 %v61
  %1402 = vmatpush1.msra.mxu0 %v60
  %1403 = vmatprep.subr.mxu0 %v65
  %1404 = vmatpush1.msra.mxu0 %v64
  %1405 = vmatprep.subr.mxu0 %v69
  %1406 = vmatpush1.msra.mxu0 %v68
  %1407 = vmatprep.subr.mxu0 %v73
  %1408 = vmatpush1.msra.mxu0 %v72
  %1409 = vmatprep.subr.mxu0 %v77
  %1410 = vmatpush1.msra.mxu0 %v76
  %1411 = vmatprep.subr.mxu0 %v81
  %1412 = vmatpush1.msra.mxu0 %v80
  %1413 = vmatprep.subr.mxu0 %v85
  %1414 = vmatpush1.msra.mxu0 %v84
  %1415 = vmatprep.subr.mxu0 %v89
  %1416 = vmatpush1.msra.mxu0 %v88
  %1417 = vmatprep.subr.mxu0 0.0
  %1418 = vmatpush1.msra.mxu0 0.0
  %1419 = vmatprep.subr.mxu0 0.0
  %1420 = vmatpush1.msra.mxu0 0.0
  %1421 = vmatprep.subr.mxu0 0.0
  %1422 = vmatpush1.msra.mxu0 0.0
  %1423 = vmatprep.subr.mxu0 0.0
  %1424 = vmatpush1.msra.mxu0 0.0
  %1425 = vmatprep.subr.mxu0 0.0
  %1426 = vmatpush1.msra.mxu0 0.0
  %1427 = vmatprep.subr.mxu0 0.0
  %1428 = vmatpush1.msra.mxu0 0.0
  %1429 = vmatprep.subr.mxu0 0.0
  %1430 = vmatpush1.msra.mxu0 0.0
  %1431 = vmatprep.subr.mxu0 0.0
  %1432 = vmatpush1.msra.mxu0 0.0
  %1433 = vmatprep.subr.mxu0 0.0
  %1434 = vmatpush1.msra.mxu0 0.0
  %1435 = vmatprep.subr.mxu0 0.0
  %1436 = vmatpush1.msra.mxu0 0.0
  %1437 = vmatprep.subr.mxu0 0.0
  %1438 = vmatpush1.msra.mxu0 0.0
  %1439 = vmatprep.subr.mxu0 0.0
  %1440 = vmatpush1.msra.mxu0 0.0
  %1441 = vmatprep.subr.mxu0 0.0
  %1442 = vmatpush1.msra.mxu0 0.0
  %1443 = vmatprep.subr.mxu0 0.0
  %1444 = vmatpush1.msra.mxu0 0.0
  %1445 = vmatprep.subr.mxu0 0.0
  %1446 = vmatpush1.msra.mxu0 0.0
  %1447 = vmatprep.subr.mxu0 0.0
  %1448 = vmatpush1.msra.mxu0 0.0
  %1449 = vmatprep.mubr.f32.mxu0 0.0
  %1450 = vmatmul.mubr.f32.gmra.mrb[0].mxu0 %v1376
  %v1451 = vpop.f32.mrb[0].mxu0
  %v1452 = vadd.f32 0.0, %v1451
  %v1453 = vpop.f32.mrb[0].mxu0
  %v1454 = vadd.f32 0.0, %v1453
  %1455 = vdwg.mxu0
  %1456 = vmatprep.subr.mxu0 %v31
  %1457 = vmatpush1.msra.mxu0 %v30
  %1458 = vmatprep.subr.mxu0 %v35
  %1459 = vmatpush1.msra.mxu0 %v34
  %1460 = vmatprep.subr.mxu0 %v39
  %1461 = vmatpush1.msra.mxu0 %v38
  %1462 = vmatprep.subr.mxu0 %v43
  %1463 = vmatpush1.msra.mxu0 %v42
  %1464 = vmatprep.subr.mxu0 %v47
  %1465 = vmatpush1.msra.mxu0 %v46
  %1466 = vmatprep.subr.mxu0 %v51
  %1467 = vmatpush1.msra.mxu0 %v50
  %1468 = vmatprep.subr.mxu0 %v55
  %1469 = vmatpush1.msra.mxu0 %v54
  %1470 = vmatprep.subr.mxu0 %v59
  %1471 = vmatpush1.msra.mxu0 %v58
  %1472 = vmatprep.subr.mxu0 %v63
  %1473 = vmatpush1.msra.mxu0 %v62
  %1474 = vmatprep.subr.mxu0 %v67
  %1475 = vmatpush1.msra.mxu0 %v66
  %1476 = vmatprep.subr.mxu0 %v71
  %1477 = vmatpush1.msra.mxu0 %v70
  %1478 = vmatprep.subr.mxu0 %v75
  %1479 = vmatpush1.msra.mxu0 %v74
  %1480 = vmatprep.subr.mxu0 %v79
  %1481 = vmatpush1.msra.mxu0 %v78
  %1482 = vmatprep.subr.mxu0 %v83
  %1483 = vmatpush1.msra.mxu0 %v82
  %1484 = vmatprep.subr.mxu0 %v87
  %1485 = vmatpush1.msra.mxu0 %v86
  %1486 = vmatprep.subr.mxu0 %v91
  %1487 = vmatpush1.msra.mxu0 %v90
  %1488 = vmatprep.subr.mxu0 0.0
  %1489 = vmatpush1.msra.mxu0 0.0
  %1490 = vmatprep.subr.mxu0 0.0
  %1491 = vmatpush1.msra.mxu0 0.0
  %1492 = vmatprep.subr.mxu0 0.0
  %1493 = vmatpush1.msra.mxu0 0.0
  %1494 = vmatprep.subr.mxu0 0.0
  %1495 = vmatpush1.msra.mxu0 0.0
  %1496 = vmatprep.subr.mxu0 0.0
  %1497 = vmatpush1.msra.mxu0 0.0
  %1498 = vmatprep.subr.mxu0 0.0
  %1499 = vmatpush1.msra.mxu0 0.0
  %1500 = vmatprep.subr.mxu0 0.0
  %1501 = vmatpush1.msra.mxu0 0.0
  %1502 = vmatprep.subr.mxu0 0.0
  %1503 = vmatpush1.msra.mxu0 0.0
  %1504 = vmatprep.subr.mxu0 0.0
  %1505 = vmatpush1.msra.mxu0 0.0
  %1506 = vmatprep.subr.mxu0 0.0
  %1507 = vmatpush1.msra.mxu0 0.0
  %1508 = vmatprep.subr.mxu0 0.0
  %1509 = vmatpush1.msra.mxu0 0.0
  %1510 = vmatprep.subr.mxu0 0.0
  %1511 = vmatpush1.msra.mxu0 0.0
  %1512 = vmatprep.subr.mxu0 0.0
  %1513 = vmatpush1.msra.mxu0 0.0
  %1514 = vmatprep.subr.mxu0 0.0
  %1515 = vmatpush1.msra.mxu0 0.0
  %1516 = vmatprep.subr.mxu0 0.0
  %1517 = vmatpush1.msra.mxu0 0.0
  %1518 = vmatprep.subr.mxu0 0.0
  %1519 = vmatpush1.msra.mxu0 0.0
  %1520 = vmatprep.mubr.f32.mxu0 0.0
  %1521 = vmatmul.mubr.f32.gmra.mrb[0].mxu0 %v1376
  %v1522 = vpop.f32.mrb[0].mxu0
  %v1523 = vadd.f32 0.0, %v1522
  %v1524 = vpop.f32.mrb[0].mxu0
  %v1525 = vadd.f32 0.0, %v1524
  %1526 = vdwg.mxu0
  %v1527 = vadd.f32 %v1381, %v1452
  %v1528 = vadd.f32 %v1382, %v1454
  %v1529 = vadd.f32 %v1383, %v1523
  %v1530 = vadd.f32 %v1384, %v1525
  %v1531 = vxor.u32 %v1527, 2147483648
  %v1532 = vmul.f32 %v1531, 1.442695
  %v1533 = vpow.pop %v1532
  %v1534 = vadd.f32 %v1533, 1.0
  %v1535 = vrcp.pop %v1534
  %v1536 = vmul.f32 1.0, %v1535
  %v1537 = vxor.u32 %v1528, 2147483648
  %v1538 = vmul.f32 %v1537, 1.442695
  %v1539 = vpow.pop %v1538
  %v1540 = vadd.f32 %v1539, 1.0
  %v1541 = vrcp.pop %v1540
  %v1542 = vmul.f32 1.0, %v1541
  %v1543 = vtanh.pop %v1529
  %v1544 = vxor.u32 %v1530, 2147483648
  %v1545 = vmul.f32 %v1544, 1.442695
  %v1546 = vpow.pop %v1545
  %v1547 = vadd.f32 %v1546, 1.0
  %v1548 = vrcp.pop %v1547
  %v1549 = vmul.f32 1.0, %v1548
  %v1550 = vmul.f32 %v1542, %v1377
  %v1551 = vmul.f32 %v1536, %v1543
  %v1552 = vadd.f32 %v1550, %v1551
  %v1553 = vtanh.pop %v1552
  %v1554 = vmul.f32 %v1549, %v1553
  %s1555 = sadd.s32 %s268, 7
  %p1556 = scmp.lt.s32.totalorder %s1555, 8
  %s1557 = scalar_select %p1556, 1, 0
  %v1558 = vstv %s1557
  %vm1559 = vcmp.eq.s32.totalorder %v1558, 1
  %v1560 = vsel %vm1559, %v1554, %v1376
  %v1561 = vsel %vm1559, %v1552, %v1377
  %s1562 = scalar_lea.vmem %s4, 56
  %1563 = vst [vmem:[%s1562] sm:$0xff] %v1560
  %1564 = vst [vmem:[#allocation2] sm:$0xff] %v1560
  %1565 = vst [vmem:[#allocation3] sm:$0xff] %v1561
  // Predicated region
  $region22: #{rnn_base_forward.7} parent=0 // pred_check
    %p1566 = pneg %p20
  $region23: #{rnn_base_forward.7} parent=0 // pred_check_branch
    %1568 = sbr.rel (%p1566) target = $region25
  $region24: #{rnn_base_forward.7} parent=0 // pred_region
    %1569 = vst [vmem:[%s5] sm:$0xff] %v1560
    %1570 = vst [vmem:[%s6] sm:$0xff] %v1561
  $region25: #{rnn_base_forward.7} parent=0 // pred_fallthru
    _
  // Predicated region
  $region26: #{rnn_base_forward.7} parent=0 // pred_check
    _
  $region27: #{rnn_base_forward.7} parent=0 // pred_check_branch
    %1572 = sbr.rel (0) target = $region29
  $region28: #{rnn_base_forward.7} parent=0 // pred_region
    _
  $region29: #{rnn_base_forward.7} parent=0 // pred_fallthru
    _
  // Predicated region
  $region30: #{rnn_base_forward.7} parent=0 // pred_check
    _
  $region31: #{rnn_base_forward.7} parent=0 // pred_check_branch
    %1574 = sbr.rel (0) target = $region33
  $region32: #{rnn_base_forward.7} parent=0 // pred_region
    _
  $region33: #{rnn_base_forward.7} parent=0 // pred_fallthru
    _
  // Predicated region
  $region34: #{rnn_base_forward.7} parent=0 // pred_check
    _
  $region35: #{rnn_base_forward.7} parent=0 // pred_check_branch
    %1576 = sbr.rel (0) target = $region37
  $region36: #{rnn_base_forward.7} parent=0 // pred_region
    _
  $region37: #{rnn_base_forward.7} parent=0 // pred_fallthru
    _
  // Predicated region
  $region38: #{rnn_base_forward.7} parent=0 // pred_check
    _
  $region39: #{rnn_base_forward.7} parent=0 // pred_check_branch
    %1578 = sbr.rel (0) target = $region41
  $region40: #{rnn_base_forward.7} parent=0 // pred_region
    _
  $region41: #{rnn_base_forward.7} parent=0 // pred_fallthru
    _
  // Predicated region
  $region42: #{rnn_base_forward.7} parent=0 // pred_check
    _
  $region43: #{rnn_base_forward.7} parent=0 // pred_check_branch
    %1580 = sbr.rel (0) target = $region45
  $region44: #{rnn_base_forward.7} parent=0 // pred_region
    _
  $region45: #{rnn_base_forward.7} parent=0 // pred_fallthru
    _
  // Predicated region
  $region46: #{rnn_base_forward.7} parent=0 // pred_check
    _
  $region47: #{rnn_base_forward.7} parent=0 // pred_check_branch
    %1582 = sbr.rel (0) target = $region49
  $region48: #{rnn_base_forward.7} parent=0 // pred_region
    _
  $region49: #{rnn_base_forward.7} parent=0 // pred_fallthru
    _

</llo_original>
